<compile_context>
chip_gen: v7x
topology: tpu7x:2x2x1
jax: 0.10.0
libtpu: 0.0.40
codegen_flags: <defaults>
</compile_context>

<pallas_src>
import functools

import jax
import jax.numpy as jnp
from jax.experimental import pallas as pl
from jax.experimental.pallas import tpu as pltpu


def attention_mil_kernel(
    n_valid,      # static: true number of patches (for last-tile masking)
    # --- inputs ---
    x_ref,        # (TN, D)  bf16 bag-feature tile (streams; last tile may be partial)
    wvu_ref,      # (D, 2H)  bf16 fused attention_V‖attention_U weight (resident)
    bvu_ref,      # (1, 2H)  f32  fused biases
    wa_ref,       # (H, 1)   f32  attention_weights weight (resident)
    ba_ref,       # (1, 1)   f32
    # --- outputs ---
    pooled_ref,   # (1, D)   f32 normalized attention-pooled feature (last tile)
    scores_ref,   # (1, TN)  f32 raw attention logits (streams, lane-dense)
    lse_ref,      # (1, 1)   f32 logsumexp over all patches (last tile)
    # --- scratch ---
    m_ref,        # (1, 1)   f32 running max
    l_ref,        # (1, 1)   f32 running exp-sum
    acc_ref,      # (1, D)   f32 running (unnormalized) pooled feature
):
    i = pl.program_id(0)
    tile_n = x_ref.shape[0]
    h = wvu_ref.shape[1] // 2

    @pl.when(i == 0)
    def _():
        m_ref[...] = jnp.full_like(m_ref, -jnp.inf)
        l_ref[...] = jnp.zeros_like(l_ref)
        acc_ref[...] = jnp.zeros_like(acc_ref)

    # Zero-mask rows past the true bag length: the last tile is a partial block whose
    # out-of-bounds content is unspecified; zero rows keep the pooling matmul NaN-free.
    row = jax.lax.broadcasted_iota(jnp.int32, (tile_n, 1), 0) + i * tile_n
    xt = jnp.where(row < n_valid, x_ref[...], 0)                 # (TN, D) bf16

    # Fused gated-attention projection: one bf16 MXU matmul, f32 accumulate,
    # then aligned 128-lane slices for the two nonlinear branches.
    g = jnp.dot(xt, wvu_ref[...], preferred_element_type=jnp.float32) + bvu_ref[...]
    hv = jnp.tanh(g[:, :h])                                      # (TN, H) f32
    hu = jax.nn.sigmoid(g[:, h:])                                # (TN, H) f32
    gated = hv * hu                                              # (TN, H) f32

    # Attention logits (f32 for softmax accuracy), then go lane-dense once.
    s_col = (
        jnp.dot(gated, wa_ref[...], preferred_element_type=jnp.float32) + ba_ref[...]
    )                                                            # (TN, 1)
    s_row = s_col.reshape(1, tile_n)                             # (1, TN) lane-dense

    # Mask logits of padded lanes (exp -> exactly 0 for those lanes).
    lane = jax.lax.broadcasted_iota(jnp.int32, (1, tile_n), 1) + i * tile_n
    s_row = jnp.where(lane < n_valid, s_row, -1e30)

    # Online softmax update.
    m_prev = m_ref[...]                                          # (1, 1)
    m_new = jnp.maximum(m_prev, jnp.max(s_row, axis=1, keepdims=True))
    alpha = jnp.exp(m_prev - m_new)                              # rescale factor
    p_row = jnp.exp(s_row - m_new)                               # (1, TN) f32
    l_ref[...] = alpha * l_ref[...] + jnp.sum(p_row, axis=1, keepdims=True)

    # Attention-weighted pooling on the MXU: (1, TN) @ (TN, D) -> (1, D).
    # p in (0, 1] so the bf16 cast costs ~2^-9 relative error, absorbed by tolerances.
    acc_ref[...] = alpha * acc_ref[...] + jnp.dot(
        p_row.astype(xt.dtype), xt, preferred_element_type=jnp.float32
    )
    m_ref[...] = m_new

    # Stream raw logits out lane-dense; normalized outside with the final lse.
    scores_ref[...] = s_row.astype(scores_ref.dtype)

    @pl.when(i == pl.num_programs(0) - 1)
    def _():
        pooled_ref[...] = acc_ref[...] / l_ref[...]              # exact, runs once
        lse_ref[...] = m_ref[...] + jnp.log(l_ref[...])


def attention_mil_forward(x, params, *, max_tile_n=1024):
    """x: (N, D) float32.  Returns (final_feature (1, O), A (1, N))."""
    N, D = x.shape
    H = params["wv"].shape[1]

    # Adaptive tile: small bags run in 1-2 grid steps with bounded padding waste;
    # large bags stream 1024-row (2 MiB bf16) tiles toward the HBM roofline.
    tile_n = min(max_tile_n, ((N + 127) // 128) * 128)
    n_tiles = pl.cdiv(N, tile_n)
    n_pad = n_tiles * tile_n

    # Single cast pass over x; NO wrapper pad pass (ragged last tile handled in-kernel).
    x_bf = x.astype(jnp.bfloat16)

    # Fuse the two gating projections into one MXU operand.
    wvu = jnp.concatenate([params["wv"], params["wu"]], axis=1).astype(jnp.bfloat16)
    bvu = jnp.concatenate([params["bv"], params["bu"]], axis=1).astype(jnp.float32)
    wa = params["wa"].astype(jnp.float32)    # tiny; keep f32 for score accuracy
    ba = params["ba"].astype(jnp.float32)

    def resident(shape):
        # Full-array block, constant index map: DMA'd once, stays in VMEM.
        return pl.BlockSpec(shape, lambda i, _s=shape: (0,) * len(_s))

    pooled, scores, lse = pl.pallas_call(
        functools.partial(attention_mil_kernel, N),
        out_shape=(
            jax.ShapeDtypeStruct((1, D), jnp.float32),       # pooled feature M
            jax.ShapeDtypeStruct((1, n_pad), jnp.float32),   # raw attention logits
            jax.ShapeDtypeStruct((1, 1), jnp.float32),       # logsumexp
        ),
        grid=(n_tiles,),
        in_specs=[
            pl.BlockSpec((tile_n, D), lambda i: (i, 0)),     # x tiles stream
            resident((D, 2 * H)), resident((1, 2 * H)),      # fused wv‖wu, bv‖bu
            resident((H, 1)), resident((1, 1)),              # wa, ba
        ],
        out_specs=(
            pl.BlockSpec((1, D), lambda i: (0, 0)),
            pl.BlockSpec((1, tile_n), lambda i: (0, i)),
            pl.BlockSpec((1, 1), lambda i: (0, 0)),
        ),
        scratch_shapes=[
            pltpu.VMEM((1, 1), jnp.float32),   # running max m
            pltpu.VMEM((1, 1), jnp.float32),   # running sum l
            pltpu.VMEM((1, D), jnp.float32),   # pooled accumulator
        ],
        compiler_params=pltpu.CompilerParams(
            # Running softmax over N => reduction axis must be "arbitrary".
            dimension_semantics=("arbitrary",),
        ),
    )(x_bf, wvu, bvu, wa, ba)

    # Tiny XLA epilogue: softmax normalization of the streamed logits, plus the
    # once-used (M=1) bottleneck matmul + ReLU in full f32 (dropout = identity, eval).
    attn = jnp.exp(scores - lse)[:, :N]
    feat = jnp.maximum(pooled @ params["wb"] + params["bb"], 0.0)
    return feat, attn


def init_params(key, input_dim, hidden_dim, output_dim):
    ks = jax.random.split(key, 8)
    scale = 0.05
    return {
        "wv": scale * jax.random.normal(ks[0], (input_dim, hidden_dim), jnp.float32),
        "bv": scale * jax.random.normal(ks[1], (1, hidden_dim), jnp.float32),
        "wu": scale * jax.random.normal(ks[2], (input_dim, hidden_dim), jnp.float32),
        "bu": scale * jax.random.normal(ks[3], (1, hidden_dim), jnp.float32),
        "wa": scale * jax.random.normal(ks[4], (hidden_dim, 1), jnp.float32),
        "ba": scale * jax.random.normal(ks[5], (1, 1), jnp.float32),
        "wb": scale * jax.random.normal(ks[6], (input_dim, output_dim), jnp.float32),
        "bb": scale * jax.random.normal(ks[7], (1, output_dim), jnp.float32),
    }


def reference_forward(x, p):
    """Pure-JAX f32 reference (matches the PyTorch module's eval-mode forward)."""
    h_v = jnp.tanh(x @ p["wv"] + p["bv"])
    h_u = jax.nn.sigmoid(x @ p["wu"] + p["bu"])
    s = (h_v * h_u) @ p["wa"] + p["ba"]          # (N, 1)
    a = jax.nn.softmax(s[:, 0])[None, :]          # (1, N)
    m = a @ x                                     # (1, D)
    feat = jnp.maximum(m @ p["wb"] + p["bb"], 0.0)
    return feat, a


if __name__ == "__main__":
    # Shapes matching the module spec: 500 patches of 1024-d features,
    # hidden_dim=128, output_dim=1024.  N=500 exercises the ragged-tile masking.
    N = 500
    D = 1024
    H = 128
    O = 1024

    key = jax.random.PRNGKey(0)
    kx, kp = jax.random.split(key)
    x = jax.random.normal(kx, (N, D), jnp.float32)
    params = init_params(kp, D, H, O)

    feat, attn = attention_mil_forward(x, params)
    jax.block_until_ready((feat, attn))

    ref_feat, ref_attn = reference_forward(x, params)
    assert feat.shape == (1, O) and attn.shape == (1, N)
    # bf16 MXU operands => loosened tolerances vs the f32 reference.
    assert jnp.allclose(jnp.sum(attn), 1.0, atol=1e-3)
    assert jnp.allclose(attn, ref_attn, atol=2e-4, rtol=5e-2)
    assert jnp.allclose(feat, ref_feat, atol=5e-3, rtol=5e-2)

    print("KERNEL_OK")
</pallas_src>

<mosaic_0001>
module attributes {stable_mosaic.version = 11 : i64} {
  func.func @attention_mil_kernel(%arg0: i32, %arg1: memref<512x1024xbf16, #tpu.memory_space<vmem>>, %arg2: memref<1024x256xbf16, #tpu.memory_space<vmem>>, %arg3: memref<1x256xf32, #tpu.memory_space<vmem>>, %arg4: memref<128x1xf32, #tpu.memory_space<vmem>>, %arg5: memref<1x1xf32, #tpu.memory_space<vmem>>, %arg6: memref<1x1024xf32, #tpu.memory_space<vmem>>, %arg7: memref<1x512xf32, #tpu.memory_space<vmem>>, %arg8: memref<1x1xf32, #tpu.memory_space<vmem>>, %arg9: memref<1x1xf32, #tpu.memory_space<vmem>>, %arg10: memref<1x1xf32, #tpu.memory_space<vmem>>, %arg11: memref<1x1024xf32, #tpu.memory_space<vmem>>) attributes {dimension_semantics = [#tpu.dimension_semantics<arbitrary>], iteration_bounds = array<i64: 1>, scalar_prefetch = 0 : i64, scratch_operands = 3 : i64, tpu.core_type = #tpu.core_type<tc>, window_params = [{transform_indices = @transform_0, window_bounds = array<i64: 512, 1024>}, {pipeline_mode = #tpu.pipeline_mode<synchronous>, transform_indices = @transform_1, window_bounds = array<i64: 1024, 256>}, {pipeline_mode = #tpu.pipeline_mode<synchronous>, transform_indices = @transform_2, window_bounds = array<i64: 1, 256>}, {pipeline_mode = #tpu.pipeline_mode<synchronous>, transform_indices = @transform_3, window_bounds = array<i64: 128, 1>}, {pipeline_mode = #tpu.pipeline_mode<synchronous>, transform_indices = @transform_4, window_bounds = array<i64: 1, 1>}, {pipeline_mode = #tpu.pipeline_mode<synchronous>, transform_indices = @transform_5, window_bounds = array<i64: 1, 1024>}, {transform_indices = @transform_6, window_bounds = array<i64: 1, 512>}, {pipeline_mode = #tpu.pipeline_mode<synchronous>, transform_indices = @transform_7, window_bounds = array<i64: 1, 1>}]} {
    %c0_i32 = arith.constant 0 : i32
    %0 = arith.cmpi eq, %arg0, %c0_i32 : i32
    %1 = arith.extui %0 : i1 to i32
    %c0_i32_0 = arith.constant 0 : i32
    %2 = arith.cmpi ne, %1, %c0_i32_0 : i32
    scf.if %2 {
      %cst_35 = arith.constant 0xFF800000 : f32
      %70 = vector.broadcast %cst_35 : f32 to vector<1x1xf32>
      %c0_36 = arith.constant 0 : index
      %c0_37 = arith.constant 0 : index
      %71 = vector.load %arg9[%c0_36, %c0_37] : memref<1x1xf32, #tpu.memory_space<vmem>>, vector<1x1xf32>
      tpu.vector_store %arg9[%c0_36, %c0_37], %70 {strides = array<i32>} : memref<1x1xf32, #tpu.memory_space<vmem>>, vector<1x1xf32>,
      %cst_38 = arith.constant 0.000000e+00 : f32
      %72 = vector.broadcast %cst_38 : f32 to vector<1x1xf32>
      %c0_39 = arith.constant 0 : index
      %c0_40 = arith.constant 0 : index
      %73 = vector.load %arg10[%c0_39, %c0_40] : memref<1x1xf32, #tpu.memory_space<vmem>>, vector<1x1xf32>
      tpu.vector_store %arg10[%c0_39, %c0_40], %72 {strides = array<i32>} : memref<1x1xf32, #tpu.memory_space<vmem>>, vector<1x1xf32>,
      %cst_41 = arith.constant 0.000000e+00 : f32
      %74 = vector.broadcast %cst_41 : f32 to vector<1x1024xf32>
      %c0_42 = arith.constant 0 : index
      %c0_43 = arith.constant 0 : index
      %75 = vector.load %arg11[%c0_42, %c0_43] : memref<1x1024xf32, #tpu.memory_space<vmem>>, vector<1x1024xf32>
      tpu.vector_store %arg11[%c0_42, %c0_43], %74 {strides = array<i32>} : memref<1x1024xf32, #tpu.memory_space<vmem>>, vector<1x1024xf32>,
    } else {
    }
    %3 = tpu.iota {dimensions = array<i32: 0>} : vector<512x1xi32>
    %c512_i32 = arith.constant 512 : i32
    %4 = arith.muli %arg0, %c512_i32 : i32
    %5 = vector.broadcast %4 : i32 to vector<512x1xi32>
    %6 = arith.addi %3, %5 : vector<512x1xi32>
    %c500_i32 = arith.constant 500 : i32
    %7 = vector.broadcast %c500_i32 : i32 to vector<512x1xi32>
    %8 = arith.cmpi slt, %6, %7 : vector<512x1xi32>
    %c0 = arith.constant 0 : index
    %c0_1 = arith.constant 0 : index
    %9 = vector.load %arg1[%c0, %c0_1] : memref<512x1024xbf16, #tpu.memory_space<vmem>>, vector<512x1024xbf16>
    %c0_i32_2 = arith.constant 0 : i32
    %10 = arith.sitofp %c0_i32_2 : i32 to bf16
    %11 = vector.shape_cast %8 : vector<512x1xi1> to vector<512x1xi1>
    %12 = vector.broadcast %11 : vector<512x1xi1> to vector<512x1024xi1>
    %13 = vector.broadcast %10 : bf16 to vector<512x1024xbf16>
    %14 = arith.select %12, %9, %13 : vector<512x1024xi1>, vector<512x1024xbf16>
    %c0_3 = arith.constant 0 : index
    %c0_4 = arith.constant 0 : index
    %15 = vector.load %arg2[%c0_3, %c0_4] : memref<1024x256xbf16, #tpu.memory_space<vmem>>, vector<1024x256xbf16>
    %cst = arith.constant dense<0.000000e+00> : vector<512x256xf32>
    %16 = tpu.matmul %14, %15, %cst {dimension_numbers = #tpu.dot_dimension_numbers<[1], [0], [0], [1], [0, 0, 1, 1], [], []>} : vector<512x1024xbf16>, vector<1024x256xbf16>, vector<512x256xf32> -> vector<512x256xf32>
    %c0_5 = arith.constant 0 : index
    %c0_6 = arith.constant 0 : index
    %17 = vector.load %arg3[%c0_5, %c0_6] : memref<1x256xf32, #tpu.memory_space<vmem>>, vector<1x256xf32>
    %18 = vector.broadcast %17 : vector<1x256xf32> to vector<512x256xf32>
    %19 = arith.addf %16, %18 : vector<512x256xf32>
    %20 = vector.extract_strided_slice %19 {offsets = [0, 0], sizes = [512, 128], strides = [1, 1]} : vector<512x256xf32> to vector<512x128xf32>
    %21 = math.tanh %20 : vector<512x128xf32>
    %22 = vector.extract_strided_slice %19 {offsets = [0, 128], sizes = [512, 128], strides = [1, 1]} : vector<512x256xf32> to vector<512x128xf32>
    %23 = arith.negf %22 : vector<512x128xf32>
    %24 = math.exp %23 : vector<512x128xf32>
    %cst_7 = arith.constant 1.000000e+00 : f32
    %25 = vector.broadcast %cst_7 : f32 to vector<512x128xf32>
    %26 = arith.addf %25, %24 : vector<512x128xf32>
    %27 = arith.divf %25, %26 : vector<512x128xf32>
    %28 = arith.mulf %21, %27 : vector<512x128xf32>
    %c0_8 = arith.constant 0 : index
    %c0_9 = arith.constant 0 : index
    %29 = vector.load %arg4[%c0_8, %c0_9] : memref<128x1xf32, #tpu.memory_space<vmem>>, vector<128x1xf32>
    %cst_10 = arith.constant dense<0.000000e+00> : vector<512x1xf32>
    %30 = tpu.matmul %28, %29, %cst_10 {dimension_numbers = #tpu.dot_dimension_numbers<[1], [0], [0], [1], [0, 0, 1, 1], [], []>} : vector<512x128xf32>, vector<128x1xf32>, vector<512x1xf32> -> vector<512x1xf32>
    %c0_11 = arith.constant 0 : index
    %c0_12 = arith.constant 0 : index
    %31 = vector.load %arg5[%c0_11, %c0_12] : memref<1x1xf32, #tpu.memory_space<vmem>>, vector<1x1xf32>
    %32 = vector.broadcast %31 : vector<1x1xf32> to vector<512x1xf32>
    %33 = arith.addf %30, %32 : vector<512x1xf32>
    %34 = vector.shape_cast %33 : vector<512x1xf32> to vector<1x512xf32>
    %35 = tpu.iota {dimensions = array<i32: 1>} : vector<1x512xi32>
    %c512_i32_13 = arith.constant 512 : i32
    %36 = arith.muli %arg0, %c512_i32_13 : i32
    %37 = vector.broadcast %36 : i32 to vector<1x512xi32>
    %38 = arith.addi %35, %37 : vector<1x512xi32>
    %c500_i32_14 = arith.constant 500 : i32
    %39 = vector.broadcast %c500_i32_14 : i32 to vector<1x512xi32>
    %40 = arith.cmpi slt, %38, %39 : vector<1x512xi32>
    %cst_15 = arith.constant -1.000000e+30 : f32
    %41 = vector.broadcast %cst_15 : f32 to vector<1x512xf32>
    %42 = arith.select %40, %34, %41 : vector<1x512xi1>, vector<1x512xf32>
    %c0_16 = arith.constant 0 : index
    %c0_17 = arith.constant 0 : index
    %43 = vector.load %arg9[%c0_16, %c0_17] : memref<1x1xf32, #tpu.memory_space<vmem>>, vector<1x1xf32>
    %cst_18 = arith.constant dense<0xFF800000> : vector<1xf32>
    %44 = vector.multi_reduction <maximumf>, %42, %cst_18 [1] : vector<1x512xf32> to vector<1xf32>
    %45 = vector.shape_cast %44 : vector<1xf32> to vector<1x1xf32>
    %46 = arith.maximumf %43, %45 : vector<1x1xf32>
    %47 = arith.subf %43, %46 : vector<1x1xf32>
    %48 = math.exp %47 : vector<1x1xf32>
    %49 = vector.broadcast %46 : vector<1x1xf32> to vector<1x512xf32>
    %50 = arith.subf %42, %49 : vector<1x512xf32>
    %51 = math.exp %50 : vector<1x512xf32>
    %c0_19 = arith.constant 0 : index
    %c0_20 = arith.constant 0 : index
    %52 = vector.load %arg10[%c0_19, %c0_20] : memref<1x1xf32, #tpu.memory_space<vmem>>, vector<1x1xf32>
    %53 = arith.mulf %48, %52 : vector<1x1xf32>
    %cst_21 = arith.constant dense<0.000000e+00> : vector<1xf32>
    %54 = vector.multi_reduction <add>, %51, %cst_21 [1] : vector<1x512xf32> to vector<1xf32>
    %55 = vector.shape_cast %54 : vector<1xf32> to vector<1x1xf32>
    %56 = arith.addf %53, %55 : vector<1x1xf32>
    %c0_22 = arith.constant 0 : index
    %c0_23 = arith.constant 0 : index
    %57 = vector.load %arg10[%c0_22, %c0_23] : memref<1x1xf32, #tpu.memory_space<vmem>>, vector<1x1xf32>
    tpu.vector_store %arg10[%c0_22, %c0_23], %56 {strides = array<i32>} : memref<1x1xf32, #tpu.memory_space<vmem>>, vector<1x1xf32>,
    %c0_24 = arith.constant 0 : index
    %c0_25 = arith.constant 0 : index
    %58 = vector.load %arg11[%c0_24, %c0_25] : memref<1x1024xf32, #tpu.memory_space<vmem>>, vector<1x1024xf32>
    %59 = vector.broadcast %48 : vector<1x1xf32> to vector<1x1024xf32>
    %60 = arith.mulf %59, %58 : vector<1x1024xf32>
    %61 = arith.truncf %51 : vector<1x512xf32> to vector<1x512xbf16>
    %cst_26 = arith.constant dense<0.000000e+00> : vector<1x1024xf32>
    %62 = tpu.matmul %61, %14, %cst_26 {dimension_numbers = #tpu.dot_dimension_numbers<[1], [0], [0], [1], [0, 0, 1, 1], [], []>} : vector<1x512xbf16>, vector<512x1024xbf16>, vector<1x1024xf32> -> vector<1x1024xf32>
    %63 = arith.addf %60, %62 : vector<1x1024xf32>
    %c0_27 = arith.constant 0 : index
    %c0_28 = arith.constant 0 : index
    %64 = vector.load %arg11[%c0_27, %c0_28] : memref<1x1024xf32, #tpu.memory_space<vmem>>, vector<1x1024xf32>
    tpu.vector_store %arg11[%c0_27, %c0_28], %63 {strides = array<i32>} : memref<1x1024xf32, #tpu.memory_space<vmem>>, vector<1x1024xf32>,
    %c0_29 = arith.constant 0 : index
    %c0_30 = arith.constant 0 : index
    %65 = vector.load %arg9[%c0_29, %c0_30] : memref<1x1xf32, #tpu.memory_space<vmem>>, vector<1x1xf32>
    tpu.vector_store %arg9[%c0_29, %c0_30], %46 {strides = array<i32>} : memref<1x1xf32, #tpu.memory_space<vmem>>, vector<1x1xf32>,
    %c0_31 = arith.constant 0 : index
    %c0_32 = arith.constant 0 : index
    %66 = vector.load %arg7[%c0_31, %c0_32] : memref<1x512xf32, #tpu.memory_space<vmem>>, vector<1x512xf32>
    tpu.vector_store %arg7[%c0_31, %c0_32], %42 {strides = array<i32>} : memref<1x512xf32, #tpu.memory_space<vmem>>, vector<1x512xf32>,
    %c0_i32_33 = arith.constant 0 : i32
    %67 = arith.cmpi eq, %arg0, %c0_i32_33 : i32
    %68 = arith.extui %67 : i1 to i32
    %c0_i32_34 = arith.constant 0 : i32
    %69 = arith.cmpi ne, %68, %c0_i32_34 : i32
    scf.if %69 {
      %c0_35 = arith.constant 0 : index
      %c0_36 = arith.constant 0 : index
      %70 = vector.load %arg11[%c0_35, %c0_36] : memref<1x1024xf32, #tpu.memory_space<vmem>>, vector<1x1024xf32>
      %c0_37 = arith.constant 0 : index
      %c0_38 = arith.constant 0 : index
      %71 = vector.load %arg10[%c0_37, %c0_38] : memref<1x1xf32, #tpu.memory_space<vmem>>, vector<1x1xf32>
      %72 = vector.broadcast %71 : vector<1x1xf32> to vector<1x1024xf32>
      %73 = arith.divf %70, %72 : vector<1x1024xf32>
      %c0_39 = arith.constant 0 : index
      %c0_40 = arith.constant 0 : index
      %74 = vector.load %arg6[%c0_39, %c0_40] : memref<1x1024xf32, #tpu.memory_space<vmem>>, vector<1x1024xf32>
      tpu.vector_store %arg6[%c0_39, %c0_40], %73 {strides = array<i32>} : memref<1x1024xf32, #tpu.memory_space<vmem>>, vector<1x1024xf32>,
      %c0_41 = arith.constant 0 : index
      %c0_42 = arith.constant 0 : index
      %75 = vector.load %arg9[%c0_41, %c0_42] : memref<1x1xf32, #tpu.memory_space<vmem>>, vector<1x1xf32>
      %c0_43 = arith.constant 0 : index
      %c0_44 = arith.constant 0 : index
      %76 = vector.load %arg10[%c0_43, %c0_44] : memref<1x1xf32, #tpu.memory_space<vmem>>, vector<1x1xf32>
      %77 = math.log %76 : vector<1x1xf32>
      %78 = arith.addf %75, %77 : vector<1x1xf32>
      %c0_45 = arith.constant 0 : index
      %c0_46 = arith.constant 0 : index
      %79 = vector.load %arg8[%c0_45, %c0_46] : memref<1x1xf32, #tpu.memory_space<vmem>>, vector<1x1xf32>
      tpu.vector_store %arg8[%c0_45, %c0_46], %78 {strides = array<i32>} : memref<1x1xf32, #tpu.memory_space<vmem>>, vector<1x1xf32>,
    } else {
    }
    return
  }
  func.func @transform_0(%arg0: i32) -> (i32, i32) {
    %c0_i32 = arith.constant 0 : i32
    %c0_i32_0 = arith.constant 0 : i32
    return %arg0, %c0_i32 : i32, i32
  }
  func.func @transform_1(%arg0: i32) -> (i32, i32) {
    %c0_i32 = arith.constant 0 : i32
    %c0_i32_0 = arith.constant 0 : i32
    %c0_i32_1 = arith.constant 0 : i32
    return %c0_i32, %c0_i32_0 : i32, i32
  }
  func.func @transform_2(%arg0: i32) -> (i32, i32) {
    %c0_i32 = arith.constant 0 : i32
    %c0_i32_0 = arith.constant 0 : i32
    %c0_i32_1 = arith.constant 0 : i32
    return %c0_i32, %c0_i32_0 : i32, i32
  }
  func.func @transform_3(%arg0: i32) -> (i32, i32) {
    %c0_i32 = arith.constant 0 : i32
    %c0_i32_0 = arith.constant 0 : i32
    %c0_i32_1 = arith.constant 0 : i32
    return %c0_i32, %c0_i32_0 : i32, i32
  }
  func.func @transform_4(%arg0: i32) -> (i32, i32) {
    %c0_i32 = arith.constant 0 : i32
    %c0_i32_0 = arith.constant 0 : i32
    %c0_i32_1 = arith.constant 0 : i32
    return %c0_i32, %c0_i32_0 : i32, i32
  }
  func.func @transform_5(%arg0: i32) -> (i32, i32) {
    %c0_i32 = arith.constant 0 : i32
    %c0_i32_0 = arith.constant 0 : i32
    %c0_i32_1 = arith.constant 0 : i32
    return %c0_i32, %c0_i32_0 : i32, i32
  }
  func.func @transform_6(%arg0: i32) -> (i32, i32) {
    %c0_i32 = arith.constant 0 : i32
    %c0_i32_0 = arith.constant 0 : i32
    return %c0_i32, %arg0 : i32, i32
  }
  func.func @transform_7(%arg0: i32) -> (i32, i32) {
    %c0_i32 = arith.constant 0 : i32
    %c0_i32_0 = arith.constant 0 : i32
    %c0_i32_1 = arith.constant 0 : i32
    return %c0_i32, %c0_i32_0 : i32, i32
  }
}

</mosaic_0001>

<llo_original>
// kernel: tpu_custom_call.1
$region0: #{tpu_custom_call.1}
  #allocation0 [shape = 'u32[]', space=smem, size = 0x4, offset = 0x4, fixed_abs, tag = 'smem constant byte address 0x4 - core index']
  #allocation1 [shape = 'u32[144,128]{1,0:T(1,128)}', space=vmem, size = 0x12000, scoped, tag = 'internal scratch']
  #allocation2 [shape = 'f32[1,1]{1,0:T(1,128)}', space=vmem, size = 0x200, scoped, tag = 'scratch operand']
  #allocation3 [shape = 'f32[1,1]{1,0:T(1,128)}', space=vmem, size = 0x200, scoped, tag = 'scratch operand']
  #allocation4 [shape = 'f32[1,1024]{1,0:T(1,128)}', space=vmem, size = 0x1000, scoped, tag = 'scratch operand']
  #allocation5 [shape = 'f32[1,1]{1,0:T(1,128)S(1)}', space=vmem, size = 0x200, scoped, tag = 'scoped memory for tpu_custom_call.1']
  %s0 = inlined_call_operand.hbm [shape: bf16[500,1024], index: 0, kind: input, shape index: {}]
  %s1 = inlined_call_operand.hbm [shape: bf16[1024,256], index: 1, kind: input, shape index: {}]
  %s2 = inlined_call_operand.vmem [shape: f32[1,256], index: 2, kind: input, shape index: {}]
  %s3 = inlined_call_operand.vmem [shape: f32[128,1], index: 3, kind: input, shape index: {}]
  %s4 = inlined_call_operand.<no memory space> [shape: f32[1,1], index: 4, kind: input, shape index: {}]
  %s5 = inlined_call_operand.hbm [shape: f32[1,1024], index: 5, kind: output, shape index: {0}]
  %s6 = inlined_call_operand.hbm [shape: f32[1,512], index: 6, kind: output, shape index: {1}]
  %s7 = inlined_call_operand.hbm [shape: f32[1,1], index: 7, kind: output, shape index: {2}]
  %8 = xla_tuple %s5, %s6, %s7
  %s9 = sld [smem:[#allocation0]]
  $region62: #{tpu_custom_call.1} parent=0
    _
  %s11 = ssub.s32 1, %s9
  %s12 = scalar_select 0, %s11, %s9
  %v13 = vstv %s4
  %14 = vst [vmem:[#allocation5] sm:$0x1] %v13
  $region1: #{tpu_custom_call.1} parent=0
    #allocation6 [shape = 'u8[1048576]{0}', space=vmem, size = 0x100000, scoped, tag = 'input window, operand 0, single buffered']
    #allocation7 [shape = 's32[1]{0}', space=sflag, size = 0x4, scoped, tag = 'scoped memory for tpu_custom_call.1']
    #allocation8 [shape = 's32[1]{0}', space=sflag, size = 0x4, scoped, tag = 'scoped memory for tpu_custom_call.1']
    #allocation9 [shape = 'u8[524288]{0}', space=vmem, size = 0x80000, scoped, tag = 'input window, operand 1, single buffered']
    #allocation10 [shape = 's32[1]{0}', space=sflag, size = 0x4, scoped, tag = 'scoped memory for tpu_custom_call.1']
    #allocation11 [shape = 'u8[4096]{0}', space=vmem, size = 0x1000, scoped, tag = 'output window, operand 0, single buffered']
    #allocation12 [shape = 'u8[2048]{0}', space=vmem, size = 0x800, scoped, tag = 'output window, operand 1, single buffered']
    #allocation13 [shape = 's32[1]{0}', space=sflag, size = 0x4, scoped, tag = 'scoped memory for tpu_custom_call.1']
    #allocation14 [shape = 'u8[512]{0}', space=vmem, size = 0x400, scoped, tag = 'output window, operand 2, single buffered']
    %15 = vsyncpa [#allocation7], 0
    %16 = vsyncpa [#allocation10], 0
    %17 = vsyncpa [#allocation8], 0
    %18 = vsyncpa [#allocation13], 0
    // Predicated region
    $region2: #{tpu_custom_call.1} parent=1 // pred_check
      _
    $region3: #{tpu_custom_call.1} parent=1 // pred_check_branch
      %20 = sbr.rel (0) target = $region5
    $region4: #{tpu_custom_call.1} parent=1 // pred_region
      %s22 = ssub.s32 32768, 32256
      %23 = vsyncadd [#allocation7], %s22
      %s24 = sshll.u32 [#allocation6], 4
      %s25 = int_to_ptr.vmem [resolvable:$true] %s24
      %30 = dma.hbm_to_vmem [thread:$0]  %s0, 32256, %s25, [#allocation7], 512, 512, 32
    $region5: #{tpu_custom_call.1} parent=1 // pred_fallthru
      _
    // Predicated region
    $region6: #{tpu_custom_call.1} parent=1 // pred_check
      _
    $region7: #{tpu_custom_call.1} parent=1 // pred_check_branch
      %32 = sbr.rel (0) target = $region9
    $region8: #{tpu_custom_call.1} parent=1 // pred_region
      %s34 = ssub.s32 16384, 16384
      %35 = vsyncadd [#allocation10], %s34
      %s36 = sshll.u32 [#allocation9], 4
      %s37 = int_to_ptr.vmem [resolvable:$true] %s36
      %42 = dma.hbm_to_vmem [thread:$0]  %s1, 16384, %s37, [#allocation10], 128, 128, 8
    $region9: #{tpu_custom_call.1} parent=1 // pred_fallthru
      _
    // Predicated region
    $region10: #{tpu_custom_call.1} parent=1 // pred_check
      _
    $region11: #{tpu_custom_call.1} parent=1 // pred_check_branch
      %44 = sbr.rel (0) target = $region13
    $region12: #{tpu_custom_call.1} parent=1 // pred_region
      _
    $region13: #{tpu_custom_call.1} parent=1 // pred_fallthru
      _
    // Predicated region
    $region14: #{tpu_custom_call.1} parent=1 // pred_check
      _
    $region15: #{tpu_custom_call.1} parent=1 // pred_check_branch
      %46 = sbr.rel (0) target = $region17
    $region16: #{tpu_custom_call.1} parent=1 // pred_region
      _
    $region17: #{tpu_custom_call.1} parent=1 // pred_fallthru
      _
    // Predicated region
    $region18: #{tpu_custom_call.1} parent=1 // pred_check
      _
    $region19: #{tpu_custom_call.1} parent=1 // pred_check_branch
      %48 = sbr.rel (0) target = $region21
    $region20: #{tpu_custom_call.1} parent=1 // pred_region
      _
    $region21: #{tpu_custom_call.1} parent=1 // pred_fallthru
      _
    // Predicated region
    $region22: #{tpu_custom_call.1} parent=1 // pred_check
      _
    $region23: #{tpu_custom_call.1} parent=1 // pred_check_branch
      %50 = sbr.rel (0) target = $region25
    $region24: #{tpu_custom_call.1} parent=1 // pred_region
      %51 = dma.done [#allocation7], 32768
    $region25: #{tpu_custom_call.1} parent=1 // pred_fallthru
      _
    // Predicated region
    $region26: #{tpu_custom_call.1} parent=1 // pred_check
      _
    $region27: #{tpu_custom_call.1} parent=1 // pred_check_branch
      %53 = sbr.rel (0) target = $region29
    $region28: #{tpu_custom_call.1} parent=1 // pred_region
      %54 = dma.done [#allocation10], 16384
    $region29: #{tpu_custom_call.1} parent=1 // pred_fallthru
      _
    %p56 = scmp.eq.s32.totalorder 0, 0
    // Predicated region
    $region30: #{tpu_custom_call.1} parent=1 // pred_check
      %p57 = pneg %p56
    $region31: #{tpu_custom_call.1} parent=1 // pred_check_branch
      %59 = sbr.rel (%p57) target = $region33
    $region32: #{tpu_custom_call.1} parent=1 // pred_region
      %vm60 = vcmask 0
      %61 = vst.msk [vmem:[#allocation2] sm:$0x1] %vm60, -inf
      %62 = vst.msk [vmem:[#allocation3] sm:$0x1] %vm60, 0.0
      %63 = vst [vmem:[#allocation4] sm:$0xff] 0.0
    $region33: #{tpu_custom_call.1} parent=1 // pred_fallthru
      _
    %v64 = vlaneseq
    %v65 = vshrl.u32 %v64, 7
    %v66 = vadd.s32 %v65, 8
    %v67 = vadd.s32 %v65, 16
    %v68 = vadd.s32 %v65, 24
    %v69 = vadd.s32 %v65, 32
    %v70 = vadd.s32 %v65, 40
    %v71 = vadd.s32 %v65, 48
    %v72 = vadd.s32 %v65, 56
    %v73 = vadd.s32 %v65, 64
    %v74 = vadd.s32 %v65, 72
    %v75 = vadd.s32 %v65, 80
    %v76 = vadd.s32 %v65, 88
    %v77 = vadd.s32 %v65, 96
    %v78 = vadd.s32 %v65, 104
    %v79 = vadd.s32 %v65, 112
    %v80 = vadd.s32 %v65, 120
    %v81 = vadd.s32 %v65, 128
    %v82 = vadd.s32 %v65, 136
    %v83 = vadd.s32 %v65, 144
    %v84 = vadd.s32 %v65, 152
    %v85 = vadd.s32 %v65, 160
    %v86 = vadd.s32 %v65, 168
    %v87 = vadd.s32 %v65, 176
    %v88 = vadd.s32 %v65, 184
    %v89 = vadd.s32 %v65, 192
    %v90 = vadd.s32 %v65, 200
    %v91 = vadd.s32 %v65, 208
    %v92 = vadd.s32 %v65, 216
    %v93 = vadd.s32 %v65, 224
    %v94 = vadd.s32 %v65, 232
    %v95 = vadd.s32 %v65, 240
    %v96 = vadd.s32 %v65, 248
    %v97 = vadd.s32 %v65, 256
    %v98 = vadd.s32 %v65, 264
    %v99 = vadd.s32 %v65, 272
    %v100 = vadd.s32 %v65, 280
    %v101 = vadd.s32 %v65, 288
    %v102 = vadd.s32 %v65, 296
    %v103 = vadd.s32 %v65, 304
    %v104 = vadd.s32 %v65, 312
    %v105 = vadd.s32 %v65, 320
    %v106 = vadd.s32 %v65, 328
    %v107 = vadd.s32 %v65, 336
    %v108 = vadd.s32 %v65, 344
    %v109 = vadd.s32 %v65, 352
    %v110 = vadd.s32 %v65, 360
    %v111 = vadd.s32 %v65, 368
    %v112 = vadd.s32 %v65, 376
    %v113 = vadd.s32 %v65, 384
    %v114 = vadd.s32 %v65, 392
    %v115 = vadd.s32 %v65, 400
    %v116 = vadd.s32 %v65, 408
    %v117 = vadd.s32 %v65, 416
    %v118 = vadd.s32 %v65, 424
    %v119 = vadd.s32 %v65, 432
    %v120 = vadd.s32 %v65, 440
    %v121 = vadd.s32 %v65, 448
    %v122 = vadd.s32 %v65, 456
    %v123 = vadd.s32 %v65, 464
    %v124 = vadd.s32 %v65, 472
    %v125 = vadd.s32 %v65, 480
    %v126 = vadd.s32 %v65, 488
    %v127 = vadd.s32 %v65, 496
    %v128 = vadd.s32 %v65, 504
    %s129 = smul.u32 0, 512
    %v130 = vstv %s129
    %v131 = vadd.s32 %v65, %v130
    %v132 = vadd.s32 %v66, %v130
    %v133 = vadd.s32 %v67, %v130
    %v134 = vadd.s32 %v68, %v130
    %v135 = vadd.s32 %v69, %v130
    %v136 = vadd.s32 %v70, %v130
    %v137 = vadd.s32 %v71, %v130
    %v138 = vadd.s32 %v72, %v130
    %v139 = vadd.s32 %v73, %v130
    %v140 = vadd.s32 %v74, %v130
    %v141 = vadd.s32 %v75, %v130
    %v142 = vadd.s32 %v76, %v130
    %v143 = vadd.s32 %v77, %v130
    %v144 = vadd.s32 %v78, %v130
    %v145 = vadd.s32 %v79, %v130
    %v146 = vadd.s32 %v80, %v130
    %v147 = vadd.s32 %v81, %v130
    %v148 = vadd.s32 %v82, %v130
    %v149 = vadd.s32 %v83, %v130
    %v150 = vadd.s32 %v84, %v130
    %v151 = vadd.s32 %v85, %v130
    %v152 = vadd.s32 %v86, %v130
    %v153 = vadd.s32 %v87, %v130
    %v154 = vadd.s32 %v88, %v130
    %v155 = vadd.s32 %v89, %v130
    %v156 = vadd.s32 %v90, %v130
    %v157 = vadd.s32 %v91, %v130
    %v158 = vadd.s32 %v92, %v130
    %v159 = vadd.s32 %v93, %v130
    %v160 = vadd.s32 %v94, %v130
    %v161 = vadd.s32 %v95, %v130
    %v162 = vadd.s32 %v96, %v130
    %v163 = vadd.s32 %v97, %v130
    %v164 = vadd.s32 %v98, %v130
    %v165 = vadd.s32 %v99, %v130
    %v166 = vadd.s32 %v100, %v130
    %v167 = vadd.s32 %v101, %v130
    %v168 = vadd.s32 %v102, %v130
    %v169 = vadd.s32 %v103, %v130
    %v170 = vadd.s32 %v104, %v130
    %v171 = vadd.s32 %v105, %v130
    %v172 = vadd.s32 %v106, %v130
    %v173 = vadd.s32 %v107, %v130
    %v174 = vadd.s32 %v108, %v130
    %v175 = vadd.s32 %v109, %v130
    %v176 = vadd.s32 %v110, %v130
    %v177 = vadd.s32 %v111, %v130
    %v178 = vadd.s32 %v112, %v130
    %v179 = vadd.s32 %v113, %v130
    %v180 = vadd.s32 %v114, %v130
    %v181 = vadd.s32 %v115, %v130
    %v182 = vadd.s32 %v116, %v130
    %v183 = vadd.s32 %v117, %v130
    %v184 = vadd.s32 %v118, %v130
    %v185 = vadd.s32 %v119, %v130
    %v186 = vadd.s32 %v120, %v130
    %v187 = vadd.s32 %v121, %v130
    %v188 = vadd.s32 %v122, %v130
    %v189 = vadd.s32 %v123, %v130
    %v190 = vadd.s32 %v124, %v130
    %v191 = vadd.s32 %v125, %v130
    %v192 = vadd.s32 %v126, %v130
    %v193 = vadd.s32 %v127, %v130
    %v194 = vadd.s32 %v128, %v130
    %vm195 = vcmp.lt.s32.totalorder %v131, 500
    %vm196 = vcmp.lt.s32.totalorder %v132, 500
    %vm197 = vcmp.lt.s32.totalorder %v133, 500
    %vm198 = vcmp.lt.s32.totalorder %v134, 500
    %vm199 = vcmp.lt.s32.totalorder %v135, 500
    %vm200 = vcmp.lt.s32.totalorder %v136, 500
    %vm201 = vcmp.lt.s32.totalorder %v137, 500
    %vm202 = vcmp.lt.s32.totalorder %v138, 500
    %vm203 = vcmp.lt.s32.totalorder %v139, 500
    %vm204 = vcmp.lt.s32.totalorder %v140, 500
    %vm205 = vcmp.lt.s32.totalorder %v141, 500
    %vm206 = vcmp.lt.s32.totalorder %v142, 500
    %vm207 = vcmp.lt.s32.totalorder %v143, 500
    %vm208 = vcmp.lt.s32.totalorder %v144, 500
    %vm209 = vcmp.lt.s32.totalorder %v145, 500
    %vm210 = vcmp.lt.s32.totalorder %v146, 500
    %vm211 = vcmp.lt.s32.totalorder %v147, 500
    %vm212 = vcmp.lt.s32.totalorder %v148, 500
    %vm213 = vcmp.lt.s32.totalorder %v149, 500
    %vm214 = vcmp.lt.s32.totalorder %v150, 500
    %vm215 = vcmp.lt.s32.totalorder %v151, 500
    %vm216 = vcmp.lt.s32.totalorder %v152, 500
    %vm217 = vcmp.lt.s32.totalorder %v153, 500
    %vm218 = vcmp.lt.s32.totalorder %v154, 500
    %vm219 = vcmp.lt.s32.totalorder %v155, 500
    %vm220 = vcmp.lt.s32.totalorder %v156, 500
    %vm221 = vcmp.lt.s32.totalorder %v157, 500
    %vm222 = vcmp.lt.s32.totalorder %v158, 500
    %vm223 = vcmp.lt.s32.totalorder %v159, 500
    %vm224 = vcmp.lt.s32.totalorder %v160, 500
    %vm225 = vcmp.lt.s32.totalorder %v161, 500
    %vm226 = vcmp.lt.s32.totalorder %v162, 500
    %vm227 = vcmp.lt.s32.totalorder %v163, 500
    %vm228 = vcmp.lt.s32.totalorder %v164, 500
    %vm229 = vcmp.lt.s32.totalorder %v165, 500
    %vm230 = vcmp.lt.s32.totalorder %v166, 500
    %vm231 = vcmp.lt.s32.totalorder %v167, 500
    %vm232 = vcmp.lt.s32.totalorder %v168, 500
    %vm233 = vcmp.lt.s32.totalorder %v169, 500
    %vm234 = vcmp.lt.s32.totalorder %v170, 500
    %vm235 = vcmp.lt.s32.totalorder %v171, 500
    %vm236 = vcmp.lt.s32.totalorder %v172, 500
    %vm237 = vcmp.lt.s32.totalorder %v173, 500
    %vm238 = vcmp.lt.s32.totalorder %v174, 500
    %vm239 = vcmp.lt.s32.totalorder %v175, 500
    %vm240 = vcmp.lt.s32.totalorder %v176, 500
    %vm241 = vcmp.lt.s32.totalorder %v177, 500
    %vm242 = vcmp.lt.s32.totalorder %v178, 500
    %vm243 = vcmp.lt.s32.totalorder %v179, 500
    %vm244 = vcmp.lt.s32.totalorder %v180, 500
    %vm245 = vcmp.lt.s32.totalorder %v181, 500
    %vm246 = vcmp.lt.s32.totalorder %v182, 500
    %vm247 = vcmp.lt.s32.totalorder %v183, 500
    %vm248 = vcmp.lt.s32.totalorder %v184, 500
    %vm249 = vcmp.lt.s32.totalorder %v185, 500
    %vm250 = vcmp.lt.s32.totalorder %v186, 500
    %vm251 = vcmp.lt.s32.totalorder %v187, 500
    %vm252 = vcmp.lt.s32.totalorder %v188, 500
    %vm253 = vcmp.lt.s32.totalorder %v189, 500
    %vm254 = vcmp.lt.s32.totalorder %v190, 500
    %vm255 = vcmp.lt.s32.totalorder %v191, 500
    %vm256 = vcmp.lt.s32.totalorder %v192, 500
    %vm257 = vcmp.lt.s32.totalorder %v193, 500
    %vm258 = vcmp.lt.s32.totalorder %v194, 500
    %v259 = vld [vmem:[#allocation6] sm:$0xff]
    %v260 = vld [vmem:[#allocation6 + $0x8] sm:$0xff]
    %v261 = vld [vmem:[#allocation6 + $0x10] sm:$0xff]
    %v262 = vld [vmem:[#allocation6 + $0x18] sm:$0xff]
    %v263 = vld [vmem:[#allocation6 + $0x20] sm:$0xff]
    %v264 = vld [vmem:[#allocation6 + $0x28] sm:$0xff]
    %v265 = vld [vmem:[#allocation6 + $0x30] sm:$0xff]
    %v266 = vld [vmem:[#allocation6 + $0x38] sm:$0xff]
    %v267 = vld [vmem:[#allocation6 + $0x40] sm:$0xff]
    %v268 = vld [vmem:[#allocation6 + $0x48] sm:$0xff]
    %v269 = vld [vmem:[#allocation6 + $0x50] sm:$0xff]
    %v270 = vld [vmem:[#allocation6 + $0x58] sm:$0xff]
    %v271 = vld [vmem:[#allocation6 + $0x60] sm:$0xff]
    %v272 = vld [vmem:[#allocation6 + $0x68] sm:$0xff]
    %v273 = vld [vmem:[#allocation6 + $0x70] sm:$0xff]
    %v274 = vld [vmem:[#allocation6 + $0x78] sm:$0xff]
    %v275 = vld [vmem:[#allocation6 + $0x80] sm:$0xff]
    %v276 = vld [vmem:[#allocation6 + $0x88] sm:$0xff]
    %v277 = vld [vmem:[#allocation6 + $0x90] sm:$0xff]
    %v278 = vld [vmem:[#allocation6 + $0x98] sm:$0xff]
    %v279 = vld [vmem:[#allocation6 + $0xa0] sm:$0xff]
    %v280 = vld [vmem:[#allocation6 + $0xa8] sm:$0xff]
    %v281 = vld [vmem:[#allocation6 + $0xb0] sm:$0xff]
    %v282 = vld [vmem:[#allocation6 + $0xb8] sm:$0xff]
    %v283 = vld [vmem:[#allocation6 + $0xc0] sm:$0xff]
    %v284 = vld [vmem:[#allocation6 + $0xc8] sm:$0xff]
    %v285 = vld [vmem:[#allocation6 + $0xd0] sm:$0xff]
    %v286 = vld [vmem:[#allocation6 + $0xd8] sm:$0xff]
    %v287 = vld [vmem:[#allocation6 + $0xe0] sm:$0xff]
    %v288 = vld [vmem:[#allocation6 + $0xe8] sm:$0xff]
    %v289 = vld [vmem:[#allocation6 + $0xf0] sm:$0xff]
    %v290 = vld [vmem:[#allocation6 + $0xf8] sm:$0xff]
    %v291 = vld [vmem:[#allocation6 + $0x100] sm:$0xff]
    %v292 = vld [vmem:[#allocation6 + $0x108] sm:$0xff]
    %v293 = vld [vmem:[#allocation6 + $0x110] sm:$0xff]
    %v294 = vld [vmem:[#allocation6 + $0x118] sm:$0xff]
    %v295 = vld [vmem:[#allocation6 + $0x120] sm:$0xff]
    %v296 = vld [vmem:[#allocation6 + $0x128] sm:$0xff]
    %v297 = vld [vmem:[#allocation6 + $0x130] sm:$0xff]
    %v298 = vld [vmem:[#allocation6 + $0x138] sm:$0xff]
    %v299 = vld [vmem:[#allocation6 + $0x140] sm:$0xff]
    %v300 = vld [vmem:[#allocation6 + $0x148] sm:$0xff]
    %v301 = vld [vmem:[#allocation6 + $0x150] sm:$0xff]
    %v302 = vld [vmem:[#allocation6 + $0x158] sm:$0xff]
    %v303 = vld [vmem:[#allocation6 + $0x160] sm:$0xff]
    %v304 = vld [vmem:[#allocation6 + $0x168] sm:$0xff]
    %v305 = vld [vmem:[#allocation6 + $0x170] sm:$0xff]
    %v306 = vld [vmem:[#allocation6 + $0x178] sm:$0xff]
    %v307 = vld [vmem:[#allocation6 + $0x180] sm:$0xff]
    %v308 = vld [vmem:[#allocation6 + $0x188] sm:$0xff]
    %v309 = vld [vmem:[#allocation6 + $0x190] sm:$0xff]
    %v310 = vld [vmem:[#allocation6 + $0x198] sm:$0xff]
    %v311 = vld [vmem:[#allocation6 + $0x1a0] sm:$0xff]
    %v312 = vld [vmem:[#allocation6 + $0x1a8] sm:$0xff]
    %v313 = vld [vmem:[#allocation6 + $0x1b0] sm:$0xff]
    %v314 = vld [vmem:[#allocation6 + $0x1b8] sm:$0xff]
    %v315 = vld [vmem:[#allocation6 + $0x1c0] sm:$0xff]
    %v316 = vld [vmem:[#allocation6 + $0x1c8] sm:$0xff]
    %v317 = vld [vmem:[#allocation6 + $0x1d0] sm:$0xff]
    %v318 = vld [vmem:[#allocation6 + $0x1d8] sm:$0xff]
    %v319 = vld [vmem:[#allocation6 + $0x1e0] sm:$0xff]
    %v320 = vld [vmem:[#allocation6 + $0x1e8] sm:$0xff]
    %v321 = vld [vmem:[#allocation6 + $0x1f0] sm:$0xff]
    %v322 = vld [vmem:[#allocation6 + $0x1f8] sm:$0xff]
    %v323 = vld [vmem:[#allocation6 + $0x200] sm:$0xff]
    %v324 = vld [vmem:[#allocation6 + $0x208] sm:$0xff]
    %v325 = vld [vmem:[#allocation6 + $0x210] sm:$0xff]
    %v326 = vld [vmem:[#allocation6 + $0x218] sm:$0xff]
    %v327 = vld [vmem:[#allocation6 + $0x220] sm:$0xff]
    %v328 = vld [vmem:[#allocation6 + $0x228] sm:$0xff]
    %v329 = vld [vmem:[#allocation6 + $0x230] sm:$0xff]
    %v330 = vld [vmem:[#allocation6 + $0x238] sm:$0xff]
    %v331 = vld [vmem:[#allocation6 + $0x240] sm:$0xff]
    %v332 = vld [vmem:[#allocation6 + $0x248] sm:$0xff]
    %v333 = vld [vmem:[#allocation6 + $0x250] sm:$0xff]
    %v334 = vld [vmem:[#allocation6 + $0x258] sm:$0xff]
    %v335 = vld [vmem:[#allocation6 + $0x260] sm:$0xff]
    %v336 = vld [vmem:[#allocation6 + $0x268] sm:$0xff]
    %v337 = vld [vmem:[#allocation6 + $0x270] sm:$0xff]
    %v338 = vld [vmem:[#allocation6 + $0x278] sm:$0xff]
    %v339 = vld [vmem:[#allocation6 + $0x280] sm:$0xff]
    %v340 = vld [vmem:[#allocation6 + $0x288] sm:$0xff]
    %v341 = vld [vmem:[#allocation6 + $0x290] sm:$0xff]
    %v342 = vld [vmem:[#allocation6 + $0x298] sm:$0xff]
    %v343 = vld [vmem:[#allocation6 + $0x2a0] sm:$0xff]
    %v344 = vld [vmem:[#allocation6 + $0x2a8] sm:$0xff]
    %v345 = vld [vmem:[#allocation6 + $0x2b0] sm:$0xff]
    %v346 = vld [vmem:[#allocation6 + $0x2b8] sm:$0xff]
    %v347 = vld [vmem:[#allocation6 + $0x2c0] sm:$0xff]
    %v348 = vld [vmem:[#allocation6 + $0x2c8] sm:$0xff]
    %v349 = vld [vmem:[#allocation6 + $0x2d0] sm:$0xff]
    %v350 = vld [vmem:[#allocation6 + $0x2d8] sm:$0xff]
    %v351 = vld [vmem:[#allocation6 + $0x2e0] sm:$0xff]
    %v352 = vld [vmem:[#allocation6 + $0x2e8] sm:$0xff]
    %v353 = vld [vmem:[#allocation6 + $0x2f0] sm:$0xff]
    %v354 = vld [vmem:[#allocation6 + $0x2f8] sm:$0xff]
    %v355 = vld [vmem:[#allocation6 + $0x300] sm:$0xff]
    %v356 = vld [vmem:[#allocation6 + $0x308] sm:$0xff]
    %v357 = vld [vmem:[#allocation6 + $0x310] sm:$0xff]
    %v358 = vld [vmem:[#allocation6 + $0x318] sm:$0xff]
    %v359 = vld [vmem:[#allocation6 + $0x320] sm:$0xff]
    %v360 = vld [vmem:[#allocation6 + $0x328] sm:$0xff]
    %v361 = vld [vmem:[#allocation6 + $0x330] sm:$0xff]
    %v362 = vld [vmem:[#allocation6 + $0x338] sm:$0xff]
    %v363 = vld [vmem:[#allocation6 + $0x340] sm:$0xff]
    %v364 = vld [vmem:[#allocation6 + $0x348] sm:$0xff]
    %v365 = vld [vmem:[#allocation6 + $0x350] sm:$0xff]
    %v366 = vld [vmem:[#allocation6 + $0x358] sm:$0xff]
    %v367 = vld [vmem:[#allocation6 + $0x360] sm:$0xff]
    %v368 = vld [vmem:[#allocation6 + $0x368] sm:$0xff]
    %v369 = vld [vmem:[#allocation6 + $0x370] sm:$0xff]
    %v370 = vld [vmem:[#allocation6 + $0x378] sm:$0xff]
    %v371 = vld [vmem:[#allocation6 + $0x380] sm:$0xff]
    %v372 = vld [vmem:[#allocation6 + $0x388] sm:$0xff]
    %v373 = vld [vmem:[#allocation6 + $0x390] sm:$0xff]
    %v374 = vld [vmem:[#allocation6 + $0x398] sm:$0xff]
    %v375 = vld [vmem:[#allocation6 + $0x3a0] sm:$0xff]
    %v376 = vld [vmem:[#allocation6 + $0x3a8] sm:$0xff]
    %v377 = vld [vmem:[#allocation6 + $0x3b0] sm:$0xff]
    %v378 = vld [vmem:[#allocation6 + $0x3b8] sm:$0xff]
    %v379 = vld [vmem:[#allocation6 + $0x3c0] sm:$0xff]
    %v380 = vld [vmem:[#allocation6 + $0x3c8] sm:$0xff]
    %v381 = vld [vmem:[#allocation6 + $0x3d0] sm:$0xff]
    %v382 = vld [vmem:[#allocation6 + $0x3d8] sm:$0xff]
    %v383 = vld [vmem:[#allocation6 + $0x3e0] sm:$0xff]
    %v384 = vld [vmem:[#allocation6 + $0x3e8] sm:$0xff]
    %v385 = vld [vmem:[#allocation6 + $0x3f0] sm:$0xff]
    %v386 = vld [vmem:[#allocation6 + $0x3f8] sm:$0xff]
    %v387 = vld [vmem:[#allocation6 + $0x400] sm:$0xff]
    %v388 = vld [vmem:[#allocation6 + $0x408] sm:$0xff]
    %v389 = vld [vmem:[#allocation6 + $0x410] sm:$0xff]
    %v390 = vld [vmem:[#allocation6 + $0x418] sm:$0xff]
    %v391 = vld [vmem:[#allocation6 + $0x420] sm:$0xff]
    %v392 = vld [vmem:[#allocation6 + $0x428] sm:$0xff]
    %v393 = vld [vmem:[#allocation6 + $0x430] sm:$0xff]
    %v394 = vld [vmem:[#allocation6 + $0x438] sm:$0xff]
    %v395 = vld [vmem:[#allocation6 + $0x440] sm:$0xff]
    %v396 = vld [vmem:[#allocation6 + $0x448] sm:$0xff]
    %v397 = vld [vmem:[#allocation6 + $0x450] sm:$0xff]
    %v398 = vld [vmem:[#allocation6 + $0x458] sm:$0xff]
    %v399 = vld [vmem:[#allocation6 + $0x460] sm:$0xff]
    %v400 = vld [vmem:[#allocation6 + $0x468] sm:$0xff]
    %v401 = vld [vmem:[#allocation6 + $0x470] sm:$0xff]
    %v402 = vld [vmem:[#allocation6 + $0x478] sm:$0xff]
    %v403 = vld [vmem:[#allocation6 + $0x480] sm:$0xff]
    %v404 = vld [vmem:[#allocation6 + $0x488] sm:$0xff]
    %v405 = vld [vmem:[#allocation6 + $0x490] sm:$0xff]
    %v406 = vld [vmem:[#allocation6 + $0x498] sm:$0xff]
    %v407 = vld [vmem:[#allocation6 + $0x4a0] sm:$0xff]
    %v408 = vld [vmem:[#allocation6 + $0x4a8] sm:$0xff]
    %v409 = vld [vmem:[#allocation6 + $0x4b0] sm:$0xff]
    %v410 = vld [vmem:[#allocation6 + $0x4b8] sm:$0xff]
    %v411 = vld [vmem:[#allocation6 + $0x4c0] sm:$0xff]
    %v412 = vld [vmem:[#allocation6 + $0x4c8] sm:$0xff]
    %v413 = vld [vmem:[#allocation6 + $0x4d0] sm:$0xff]
    %v414 = vld [vmem:[#allocation6 + $0x4d8] sm:$0xff]
    %v415 = vld [vmem:[#allocation6 + $0x4e0] sm:$0xff]
    %v416 = vld [vmem:[#allocation6 + $0x4e8] sm:$0xff]
    %v417 = vld [vmem:[#allocation6 + $0x4f0] sm:$0xff]
    %v418 = vld [vmem:[#allocation6 + $0x4f8] sm:$0xff]
    %v419 = vld [vmem:[#allocation6 + $0x500] sm:$0xff]
    %v420 = vld [vmem:[#allocation6 + $0x508] sm:$0xff]
    %v421 = vld [vmem:[#allocation6 + $0x510] sm:$0xff]
    %v422 = vld [vmem:[#allocation6 + $0x518] sm:$0xff]
    %v423 = vld [vmem:[#allocation6 + $0x520] sm:$0xff]
    %v424 = vld [vmem:[#allocation6 + $0x528] sm:$0xff]
    %v425 = vld [vmem:[#allocation6 + $0x530] sm:$0xff]
    %v426 = vld [vmem:[#allocation6 + $0x538] sm:$0xff]
    %v427 = vld [vmem:[#allocation6 + $0x540] sm:$0xff]
    %v428 = vld [vmem:[#allocation6 + $0x548] sm:$0xff]
    %v429 = vld [vmem:[#allocation6 + $0x550] sm:$0xff]
    %v430 = vld [vmem:[#allocation6 + $0x558] sm:$0xff]
    %v431 = vld [vmem:[#allocation6 + $0x560] sm:$0xff]
    %v432 = vld [vmem:[#allocation6 + $0x568] sm:$0xff]
    %v433 = vld [vmem:[#allocation6 + $0x570] sm:$0xff]
    %v434 = vld [vmem:[#allocation6 + $0x578] sm:$0xff]
    %v435 = vld [vmem:[#allocation6 + $0x580] sm:$0xff]
    %v436 = vld [vmem:[#allocation6 + $0x588] sm:$0xff]
    %v437 = vld [vmem:[#allocation6 + $0x590] sm:$0xff]
    %v438 = vld [vmem:[#allocation6 + $0x598] sm:$0xff]
    %v439 = vld [vmem:[#allocation6 + $0x5a0] sm:$0xff]
    %v440 = vld [vmem:[#allocation6 + $0x5a8] sm:$0xff]
    %v441 = vld [vmem:[#allocation6 + $0x5b0] sm:$0xff]
    %v442 = vld [vmem:[#allocation6 + $0x5b8] sm:$0xff]
    %v443 = vld [vmem:[#allocation6 + $0x5c0] sm:$0xff]
    %v444 = vld [vmem:[#allocation6 + $0x5c8] sm:$0xff]
    %v445 = vld [vmem:[#allocation6 + $0x5d0] sm:$0xff]
    %v446 = vld [vmem:[#allocation6 + $0x5d8] sm:$0xff]
    %v447 = vld [vmem:[#allocation6 + $0x5e0] sm:$0xff]
    %v448 = vld [vmem:[#allocation6 + $0x5e8] sm:$0xff]
    %v449 = vld [vmem:[#allocation6 + $0x5f0] sm:$0xff]
    %v450 = vld [vmem:[#allocation6 + $0x5f8] sm:$0xff]
    %v451 = vld [vmem:[#allocation6 + $0x600] sm:$0xff]
    %v452 = vld [vmem:[#allocation6 + $0x608] sm:$0xff]
    %v453 = vld [vmem:[#allocation6 + $0x610] sm:$0xff]
    %v454 = vld [vmem:[#allocation6 + $0x618] sm:$0xff]
    %v455 = vld [vmem:[#allocation6 + $0x620] sm:$0xff]
    %v456 = vld [vmem:[#allocation6 + $0x628] sm:$0xff]
    %v457 = vld [vmem:[#allocation6 + $0x630] sm:$0xff]
    %v458 = vld [vmem:[#allocation6 + $0x638] sm:$0xff]
    %v459 = vld [vmem:[#allocation6 + $0x640] sm:$0xff]
    %v460 = vld [vmem:[#allocation6 + $0x648] sm:$0xff]
    %v461 = vld [vmem:[#allocation6 + $0x650] sm:$0xff]
    %v462 = vld [vmem:[#allocation6 + $0x658] sm:$0xff]
    %v463 = vld [vmem:[#allocation6 + $0x660] sm:$0xff]
    %v464 = vld [vmem:[#allocation6 + $0x668] sm:$0xff]
    %v465 = vld [vmem:[#allocation6 + $0x670] sm:$0xff]
    %v466 = vld [vmem:[#allocation6 + $0x678] sm:$0xff]
    %v467 = vld [vmem:[#allocation6 + $0x680] sm:$0xff]
    %v468 = vld [vmem:[#allocation6 + $0x688] sm:$0xff]
    %v469 = vld [vmem:[#allocation6 + $0x690] sm:$0xff]
    %v470 = vld [vmem:[#allocation6 + $0x698] sm:$0xff]
    %v471 = vld [vmem:[#allocation6 + $0x6a0] sm:$0xff]
    %v472 = vld [vmem:[#allocation6 + $0x6a8] sm:$0xff]
    %v473 = vld [vmem:[#allocation6 + $0x6b0] sm:$0xff]
    %v474 = vld [vmem:[#allocation6 + $0x6b8] sm:$0xff]
    %v475 = vld [vmem:[#allocation6 + $0x6c0] sm:$0xff]
    %v476 = vld [vmem:[#allocation6 + $0x6c8] sm:$0xff]
    %v477 = vld [vmem:[#allocation6 + $0x6d0] sm:$0xff]
    %v478 = vld [vmem:[#allocation6 + $0x6d8] sm:$0xff]
    %v479 = vld [vmem:[#allocation6 + $0x6e0] sm:$0xff]
    %v480 = vld [vmem:[#allocation6 + $0x6e8] sm:$0xff]
    %v481 = vld [vmem:[#allocation6 + $0x6f0] sm:$0xff]
    %v482 = vld [vmem:[#allocation6 + $0x6f8] sm:$0xff]
    %v483 = vld [vmem:[#allocation6 + $0x700] sm:$0xff]
    %v484 = vld [vmem:[#allocation6 + $0x708] sm:$0xff]
    %v485 = vld [vmem:[#allocation6 + $0x710] sm:$0xff]
    %v486 = vld [vmem:[#allocation6 + $0x718] sm:$0xff]
    %v487 = vld [vmem:[#allocation6 + $0x720] sm:$0xff]
    %v488 = vld [vmem:[#allocation6 + $0x728] sm:$0xff]
    %v489 = vld [vmem:[#allocation6 + $0x730] sm:$0xff]
    %v490 = vld [vmem:[#allocation6 + $0x738] sm:$0xff]
    %v491 = vld [vmem:[#allocation6 + $0x740] sm:$0xff]
    %v492 = vld [vmem:[#allocation6 + $0x748] sm:$0xff]
    %v493 = vld [vmem:[#allocation6 + $0x750] sm:$0xff]
    %v494 = vld [vmem:[#allocation6 + $0x758] sm:$0xff]
    %v495 = vld [vmem:[#allocation6 + $0x760] sm:$0xff]
    %v496 = vld [vmem:[#allocation6 + $0x768] sm:$0xff]
    %v497 = vld [vmem:[#allocation6 + $0x770] sm:$0xff]
    %v498 = vld [vmem:[#allocation6 + $0x778] sm:$0xff]
    %v499 = vld [vmem:[#allocation6 + $0x780] sm:$0xff]
    %v500 = vld [vmem:[#allocation6 + $0x788] sm:$0xff]
    %v501 = vld [vmem:[#allocation6 + $0x790] sm:$0xff]
    %v502 = vld [vmem:[#allocation6 + $0x798] sm:$0xff]
    %v503 = vld [vmem:[#allocation6 + $0x7a0] sm:$0xff]
    %v504 = vld [vmem:[#allocation6 + $0x7a8] sm:$0xff]
    %v505 = vld [vmem:[#allocation6 + $0x7b0] sm:$0xff]
    %v506 = vld [vmem:[#allocation6 + $0x7b8] sm:$0xff]
    %v507 = vld [vmem:[#allocation6 + $0x7c0] sm:$0xff]
    %v508 = vld [vmem:[#allocation6 + $0x7c8] sm:$0xff]
    %v509 = vld [vmem:[#allocation6 + $0x7d0] sm:$0xff]
    %v510 = vld [vmem:[#allocation6 + $0x7d8] sm:$0xff]
    %v511 = vld [vmem:[#allocation6 + $0x7e0] sm:$0xff]
    %v512 = vld [vmem:[#allocation6 + $0x7e8] sm:$0xff]
    %v513 = vld [vmem:[#allocation6 + $0x7f0] sm:$0xff]
    %v514 = vld [vmem:[#allocation6 + $0x7f8] sm:$0xff]
    %v515 = vsel %vm195, 1, 0
    %v516 = vsel %vm196, 1, 0
    %v517 = vsel %vm197, 1, 0
    %v518 = vsel %vm198, 1, 0
    %v519 = vsel %vm199, 1, 0
    %v520 = vsel %vm200, 1, 0
    %v521 = vsel %vm201, 1, 0
    %v522 = vsel %vm202, 1, 0
    %v523 = vsel %vm203, 1, 0
    %v524 = vsel %vm204, 1, 0
    %v525 = vsel %vm205, 1, 0
    %v526 = vsel %vm206, 1, 0
    %v527 = vsel %vm207, 1, 0
    %v528 = vsel %vm208, 1, 0
    %v529 = vsel %vm209, 1, 0
    %v530 = vsel %vm210, 1, 0
    %v531 = vsel %vm211, 1, 0
    %v532 = vsel %vm212, 1, 0
    %v533 = vsel %vm213, 1, 0
    %v534 = vsel %vm214, 1, 0
    %v535 = vsel %vm215, 1, 0
    %v536 = vsel %vm216, 1, 0
    %v537 = vsel %vm217, 1, 0
    %v538 = vsel %vm218, 1, 0
    %v539 = vsel %vm219, 1, 0
    %v540 = vsel %vm220, 1, 0
    %v541 = vsel %vm221, 1, 0
    %v542 = vsel %vm222, 1, 0
    %v543 = vsel %vm223, 1, 0
    %v544 = vsel %vm224, 1, 0
    %v545 = vsel %vm225, 1, 0
    %v546 = vsel %vm226, 1, 0
    %v547 = vsel %vm227, 1, 0
    %v548 = vsel %vm228, 1, 0
    %v549 = vsel %vm229, 1, 0
    %v550 = vsel %vm230, 1, 0
    %v551 = vsel %vm231, 1, 0
    %v552 = vsel %vm232, 1, 0
    %v553 = vsel %vm233, 1, 0
    %v554 = vsel %vm234, 1, 0
    %v555 = vsel %vm235, 1, 0
    %v556 = vsel %vm236, 1, 0
    %v557 = vsel %vm237, 1, 0
    %v558 = vsel %vm238, 1, 0
    %v559 = vsel %vm239, 1, 0
    %v560 = vsel %vm240, 1, 0
    %v561 = vsel %vm241, 1, 0
    %v562 = vsel %vm242, 1, 0
    %v563 = vsel %vm243, 1, 0
    %v564 = vsel %vm244, 1, 0
    %v565 = vsel %vm245, 1, 0
    %v566 = vsel %vm246, 1, 0
    %v567 = vsel %vm247, 1, 0
    %v568 = vsel %vm248, 1, 0
    %v569 = vsel %vm249, 1, 0
    %v570 = vsel %vm250, 1, 0
    %v571 = vsel %vm251, 1, 0
    %v572 = vsel %vm252, 1, 0
    %v573 = vsel %vm253, 1, 0
    %v574 = vsel %vm254, 1, 0
    %v575 = vsel %vm255, 1, 0
    %v576 = vsel %vm256, 1, 0
    %v577 = vsel %vm257, 1, 0
    %v578 = vsel %vm258, 1, 0
    %vm579 = vcmp.eq.s32.totalorder %v515, 1
    %vm580 = vcmp.eq.s32.totalorder %v516, 1
    %vm581 = vcmp.eq.s32.totalorder %v517, 1
    %vm582 = vcmp.eq.s32.totalorder %v518, 1
    %vm583 = vcmp.eq.s32.totalorder %v519, 1
    %vm584 = vcmp.eq.s32.totalorder %v520, 1
    %vm585 = vcmp.eq.s32.totalorder %v521, 1
    %vm586 = vcmp.eq.s32.totalorder %v522, 1
    %vm587 = vcmp.eq.s32.totalorder %v523, 1
    %vm588 = vcmp.eq.s32.totalorder %v524, 1
    %vm589 = vcmp.eq.s32.totalorder %v525, 1
    %vm590 = vcmp.eq.s32.totalorder %v526, 1
    %vm591 = vcmp.eq.s32.totalorder %v527, 1
    %vm592 = vcmp.eq.s32.totalorder %v528, 1
    %vm593 = vcmp.eq.s32.totalorder %v529, 1
    %vm594 = vcmp.eq.s32.totalorder %v530, 1
    %vm595 = vcmp.eq.s32.totalorder %v531, 1
    %vm596 = vcmp.eq.s32.totalorder %v532, 1
    %vm597 = vcmp.eq.s32.totalorder %v533, 1
    %vm598 = vcmp.eq.s32.totalorder %v534, 1
    %vm599 = vcmp.eq.s32.totalorder %v535, 1
    %vm600 = vcmp.eq.s32.totalorder %v536, 1
    %vm601 = vcmp.eq.s32.totalorder %v537, 1
    %vm602 = vcmp.eq.s32.totalorder %v538, 1
    %vm603 = vcmp.eq.s32.totalorder %v539, 1
    %vm604 = vcmp.eq.s32.totalorder %v540, 1
    %vm605 = vcmp.eq.s32.totalorder %v541, 1
    %vm606 = vcmp.eq.s32.totalorder %v542, 1
    %vm607 = vcmp.eq.s32.totalorder %v543, 1
    %vm608 = vcmp.eq.s32.totalorder %v544, 1
    %vm609 = vcmp.eq.s32.totalorder %v545, 1
    %vm610 = vcmp.eq.s32.totalorder %v546, 1
    %vm611 = vcmp.eq.s32.totalorder %v547, 1
    %vm612 = vcmp.eq.s32.totalorder %v548, 1
    %vm613 = vcmp.eq.s32.totalorder %v549, 1
    %vm614 = vcmp.eq.s32.totalorder %v550, 1
    %vm615 = vcmp.eq.s32.totalorder %v551, 1
    %vm616 = vcmp.eq.s32.totalorder %v552, 1
    %vm617 = vcmp.eq.s32.totalorder %v553, 1
    %vm618 = vcmp.eq.s32.totalorder %v554, 1
    %vm619 = vcmp.eq.s32.totalorder %v555, 1
    %vm620 = vcmp.eq.s32.totalorder %v556, 1
    %vm621 = vcmp.eq.s32.totalorder %v557, 1
    %vm622 = vcmp.eq.s32.totalorder %v558, 1
    %vm623 = vcmp.eq.s32.totalorder %v559, 1
    %vm624 = vcmp.eq.s32.totalorder %v560, 1
    %vm625 = vcmp.eq.s32.totalorder %v561, 1
    %vm626 = vcmp.eq.s32.totalorder %v562, 1
    %vm627 = vcmp.eq.s32.totalorder %v563, 1
    %vm628 = vcmp.eq.s32.totalorder %v564, 1
    %vm629 = vcmp.eq.s32.totalorder %v565, 1
    %vm630 = vcmp.eq.s32.totalorder %v566, 1
    %vm631 = vcmp.eq.s32.totalorder %v567, 1
    %vm632 = vcmp.eq.s32.totalorder %v568, 1
    %vm633 = vcmp.eq.s32.totalorder %v569, 1
    %vm634 = vcmp.eq.s32.totalorder %v570, 1
    %vm635 = vcmp.eq.s32.totalorder %v571, 1
    %vm636 = vcmp.eq.s32.totalorder %v572, 1
    %vm637 = vcmp.eq.s32.totalorder %v573, 1
    %vm638 = vcmp.eq.s32.totalorder %v574, 1
    %vm639 = vcmp.eq.s32.totalorder %v575, 1
    %vm640 = vcmp.eq.s32.totalorder %v576, 1
    %vm641 = vcmp.eq.s32.totalorder %v577, 1
    %vm642 = vcmp.eq.s32.totalorder %v578, 1
    %vm643 = vmpackc.low %vm579, %vm579
    %vm644 = vmpackc.low %vm580, %vm580
    %vm645 = vmpackc.low %vm581, %vm581
    %vm646 = vmpackc.low %vm582, %vm582
    %vm647 = vmpackc.low %vm583, %vm583
    %vm648 = vmpackc.low %vm584, %vm584
    %vm649 = vmpackc.low %vm585, %vm585
    %vm650 = vmpackc.low %vm586, %vm586
    %vm651 = vmpackc.low %vm587, %vm587
    %vm652 = vmpackc.low %vm588, %vm588
    %vm653 = vmpackc.low %vm589, %vm589
    %vm654 = vmpackc.low %vm590, %vm590
    %vm655 = vmpackc.low %vm591, %vm591
    %vm656 = vmpackc.low %vm592, %vm592
    %vm657 = vmpackc.low %vm593, %vm593
    %vm658 = vmpackc.low %vm594, %vm594
    %vm659 = vmpackc.low %vm595, %vm595
    %vm660 = vmpackc.low %vm596, %vm596
    %vm661 = vmpackc.low %vm597, %vm597
    %vm662 = vmpackc.low %vm598, %vm598
    %vm663 = vmpackc.low %vm599, %vm599
    %vm664 = vmpackc.low %vm600, %vm600
    %vm665 = vmpackc.low %vm601, %vm601
    %vm666 = vmpackc.low %vm602, %vm602
    %vm667 = vmpackc.low %vm603, %vm603
    %vm668 = vmpackc.low %vm604, %vm604
    %vm669 = vmpackc.low %vm605, %vm605
    %vm670 = vmpackc.low %vm606, %vm606
    %vm671 = vmpackc.low %vm607, %vm607
    %vm672 = vmpackc.low %vm608, %vm608
    %vm673 = vmpackc.low %vm609, %vm609
    %vm674 = vmpackc.low %vm610, %vm610
    %vm675 = vmpackc.low %vm611, %vm611
    %vm676 = vmpackc.low %vm612, %vm612
    %vm677 = vmpackc.low %vm613, %vm613
    %vm678 = vmpackc.low %vm614, %vm614
    %vm679 = vmpackc.low %vm615, %vm615
    %vm680 = vmpackc.low %vm616, %vm616
    %vm681 = vmpackc.low %vm617, %vm617
    %vm682 = vmpackc.low %vm618, %vm618
    %vm683 = vmpackc.low %vm619, %vm619
    %vm684 = vmpackc.low %vm620, %vm620
    %vm685 = vmpackc.low %vm621, %vm621
    %vm686 = vmpackc.low %vm622, %vm622
    %vm687 = vmpackc.low %vm623, %vm623
    %vm688 = vmpackc.low %vm624, %vm624
    %vm689 = vmpackc.low %vm625, %vm625
    %vm690 = vmpackc.low %vm626, %vm626
    %vm691 = vmpackc.low %vm627, %vm627
    %vm692 = vmpackc.low %vm628, %vm628
    %vm693 = vmpackc.low %vm629, %vm629
    %vm694 = vmpackc.low %vm630, %vm630
    %vm695 = vmpackc.low %vm631, %vm631
    %vm696 = vmpackc.low %vm632, %vm632
    %vm697 = vmpackc.low %vm633, %vm633
    %vm698 = vmpackc.low %vm634, %vm634
    %vm699 = vmpackc.low %vm635, %vm635
    %vm700 = vmpackc.low %vm636, %vm636
    %vm701 = vmpackc.low %vm637, %vm637
    %vm702 = vmpackc.low %vm638, %vm638
    %vm703 = vmpackc.low %vm639, %vm639
    %vm704 = vmpackc.low %vm640, %vm640
    %vm705 = vmpackc.low %vm641, %vm641
    %vm706 = vmpackc.low %vm642, %vm642
    %v707 = vsel %vm643, %v259, 0
    %v708 = vsel %vm643, %v260, 0
    %v709 = vsel %vm643, %v261, 0
    %v710 = vsel %vm643, %v262, 0
    %v711 = vsel %vm644, %v263, 0
    %v712 = vsel %vm644, %v264, 0
    %v713 = vsel %vm644, %v265, 0
    %v714 = vsel %vm644, %v266, 0
    %v715 = vsel %vm645, %v267, 0
    %v716 = vsel %vm645, %v268, 0
    %v717 = vsel %vm645, %v269, 0
    %v718 = vsel %vm645, %v270, 0
    %v719 = vsel %vm646, %v271, 0
    %v720 = vsel %vm646, %v272, 0
    %v721 = vsel %vm646, %v273, 0
    %v722 = vsel %vm646, %v274, 0
    %v723 = vsel %vm647, %v275, 0
    %v724 = vsel %vm647, %v276, 0
    %v725 = vsel %vm647, %v277, 0
    %v726 = vsel %vm647, %v278, 0
    %v727 = vsel %vm648, %v279, 0
    %v728 = vsel %vm648, %v280, 0
    %v729 = vsel %vm648, %v281, 0
    %v730 = vsel %vm648, %v282, 0
    %v731 = vsel %vm649, %v283, 0
    %v732 = vsel %vm649, %v284, 0
    %v733 = vsel %vm649, %v285, 0
    %v734 = vsel %vm649, %v286, 0
    %v735 = vsel %vm650, %v287, 0
    %v736 = vsel %vm650, %v288, 0
    %v737 = vsel %vm650, %v289, 0
    %v738 = vsel %vm650, %v290, 0
    %v739 = vsel %vm651, %v291, 0
    %v740 = vsel %vm651, %v292, 0
    %v741 = vsel %vm651, %v293, 0
    %v742 = vsel %vm651, %v294, 0
    %v743 = vsel %vm652, %v295, 0
    %v744 = vsel %vm652, %v296, 0
    %v745 = vsel %vm652, %v297, 0
    %v746 = vsel %vm652, %v298, 0
    %v747 = vsel %vm653, %v299, 0
    %v748 = vsel %vm653, %v300, 0
    %v749 = vsel %vm653, %v301, 0
    %v750 = vsel %vm653, %v302, 0
    %v751 = vsel %vm654, %v303, 0
    %v752 = vsel %vm654, %v304, 0
    %v753 = vsel %vm654, %v305, 0
    %v754 = vsel %vm654, %v306, 0
    %v755 = vsel %vm655, %v307, 0
    %v756 = vsel %vm655, %v308, 0
    %v757 = vsel %vm655, %v309, 0
    %v758 = vsel %vm655, %v310, 0
    %v759 = vsel %vm656, %v311, 0
    %v760 = vsel %vm656, %v312, 0
    %v761 = vsel %vm656, %v313, 0
    %v762 = vsel %vm656, %v314, 0
    %v763 = vsel %vm657, %v315, 0
    %v764 = vsel %vm657, %v316, 0
    %v765 = vsel %vm657, %v317, 0
    %v766 = vsel %vm657, %v318, 0
    %v767 = vsel %vm658, %v319, 0
    %v768 = vsel %vm658, %v320, 0
    %v769 = vsel %vm658, %v321, 0
    %v770 = vsel %vm658, %v322, 0
    %v771 = vsel %vm659, %v323, 0
    %v772 = vsel %vm659, %v324, 0
    %v773 = vsel %vm659, %v325, 0
    %v774 = vsel %vm659, %v326, 0
    %v775 = vsel %vm660, %v327, 0
    %v776 = vsel %vm660, %v328, 0
    %v777 = vsel %vm660, %v329, 0
    %v778 = vsel %vm660, %v330, 0
    %v779 = vsel %vm661, %v331, 0
    %v780 = vsel %vm661, %v332, 0
    %v781 = vsel %vm661, %v333, 0
    %v782 = vsel %vm661, %v334, 0
    %v783 = vsel %vm662, %v335, 0
    %v784 = vsel %vm662, %v336, 0
    %v785 = vsel %vm662, %v337, 0
    %v786 = vsel %vm662, %v338, 0
    %v787 = vsel %vm663, %v339, 0
    %v788 = vsel %vm663, %v340, 0
    %v789 = vsel %vm663, %v341, 0
    %v790 = vsel %vm663, %v342, 0
    %v791 = vsel %vm664, %v343, 0
    %v792 = vsel %vm664, %v344, 0
    %v793 = vsel %vm664, %v345, 0
    %v794 = vsel %vm664, %v346, 0
    %v795 = vsel %vm665, %v347, 0
    %v796 = vsel %vm665, %v348, 0
    %v797 = vsel %vm665, %v349, 0
    %v798 = vsel %vm665, %v350, 0
    %v799 = vsel %vm666, %v351, 0
    %v800 = vsel %vm666, %v352, 0
    %v801 = vsel %vm666, %v353, 0
    %v802 = vsel %vm666, %v354, 0
    %v803 = vsel %vm667, %v355, 0
    %v804 = vsel %vm667, %v356, 0
    %v805 = vsel %vm667, %v357, 0
    %v806 = vsel %vm667, %v358, 0
    %v807 = vsel %vm668, %v359, 0
    %v808 = vsel %vm668, %v360, 0
    %v809 = vsel %vm668, %v361, 0
    %v810 = vsel %vm668, %v362, 0
    %v811 = vsel %vm669, %v363, 0
    %v812 = vsel %vm669, %v364, 0
    %v813 = vsel %vm669, %v365, 0
    %v814 = vsel %vm669, %v366, 0
    %v815 = vsel %vm670, %v367, 0
    %v816 = vsel %vm670, %v368, 0
    %v817 = vsel %vm670, %v369, 0
    %v818 = vsel %vm670, %v370, 0
    %v819 = vsel %vm671, %v371, 0
    %v820 = vsel %vm671, %v372, 0
    %v821 = vsel %vm671, %v373, 0
    %v822 = vsel %vm671, %v374, 0
    %v823 = vsel %vm672, %v375, 0
    %v824 = vsel %vm672, %v376, 0
    %v825 = vsel %vm672, %v377, 0
    %v826 = vsel %vm672, %v378, 0
    %v827 = vsel %vm673, %v379, 0
    %v828 = vsel %vm673, %v380, 0
    %v829 = vsel %vm673, %v381, 0
    %v830 = vsel %vm673, %v382, 0
    %v831 = vsel %vm674, %v383, 0
    %v832 = vsel %vm674, %v384, 0
    %v833 = vsel %vm674, %v385, 0
    %v834 = vsel %vm674, %v386, 0
    %v835 = vsel %vm675, %v387, 0
    %v836 = vsel %vm675, %v388, 0
    %v837 = vsel %vm675, %v389, 0
    %v838 = vsel %vm675, %v390, 0
    %v839 = vsel %vm676, %v391, 0
    %v840 = vsel %vm676, %v392, 0
    %v841 = vsel %vm676, %v393, 0
    %v842 = vsel %vm676, %v394, 0
    %v843 = vsel %vm677, %v395, 0
    %v844 = vsel %vm677, %v396, 0
    %v845 = vsel %vm677, %v397, 0
    %v846 = vsel %vm677, %v398, 0
    %v847 = vsel %vm678, %v399, 0
    %v848 = vsel %vm678, %v400, 0
    %v849 = vsel %vm678, %v401, 0
    %v850 = vsel %vm678, %v402, 0
    %v851 = vsel %vm679, %v403, 0
    %v852 = vsel %vm679, %v404, 0
    %v853 = vsel %vm679, %v405, 0
    %v854 = vsel %vm679, %v406, 0
    %v855 = vsel %vm680, %v407, 0
    %v856 = vsel %vm680, %v408, 0
    %v857 = vsel %vm680, %v409, 0
    %v858 = vsel %vm680, %v410, 0
    %v859 = vsel %vm681, %v411, 0
    %v860 = vsel %vm681, %v412, 0
    %v861 = vsel %vm681, %v413, 0
    %v862 = vsel %vm681, %v414, 0
    %v863 = vsel %vm682, %v415, 0
    %v864 = vsel %vm682, %v416, 0
    %v865 = vsel %vm682, %v417, 0
    %v866 = vsel %vm682, %v418, 0
    %v867 = vsel %vm683, %v419, 0
    %v868 = vsel %vm683, %v420, 0
    %v869 = vsel %vm683, %v421, 0
    %v870 = vsel %vm683, %v422, 0
    %v871 = vsel %vm684, %v423, 0
    %v872 = vsel %vm684, %v424, 0
    %v873 = vsel %vm684, %v425, 0
    %v874 = vsel %vm684, %v426, 0
    %v875 = vsel %vm685, %v427, 0
    %v876 = vsel %vm685, %v428, 0
    %v877 = vsel %vm685, %v429, 0
    %v878 = vsel %vm685, %v430, 0
    %v879 = vsel %vm686, %v431, 0
    %v880 = vsel %vm686, %v432, 0
    %v881 = vsel %vm686, %v433, 0
    %v882 = vsel %vm686, %v434, 0
    %v883 = vsel %vm687, %v435, 0
    %v884 = vsel %vm687, %v436, 0
    %v885 = vsel %vm687, %v437, 0
    %v886 = vsel %vm687, %v438, 0
    %v887 = vsel %vm688, %v439, 0
    %v888 = vsel %vm688, %v440, 0
    %v889 = vsel %vm688, %v441, 0
    %v890 = vsel %vm688, %v442, 0
    %v891 = vsel %vm689, %v443, 0
    %v892 = vsel %vm689, %v444, 0
    %v893 = vsel %vm689, %v445, 0
    %v894 = vsel %vm689, %v446, 0
    %v895 = vsel %vm690, %v447, 0
    %v896 = vsel %vm690, %v448, 0
    %v897 = vsel %vm690, %v449, 0
    %v898 = vsel %vm690, %v450, 0
    %v899 = vsel %vm691, %v451, 0
    %v900 = vsel %vm691, %v452, 0
    %v901 = vsel %vm691, %v453, 0
    %v902 = vsel %vm691, %v454, 0
    %v903 = vsel %vm692, %v455, 0
    %v904 = vsel %vm692, %v456, 0
    %v905 = vsel %vm692, %v457, 0
    %v906 = vsel %vm692, %v458, 0
    %v907 = vsel %vm693, %v459, 0
    %v908 = vsel %vm693, %v460, 0
    %v909 = vsel %vm693, %v461, 0
    %v910 = vsel %vm693, %v462, 0
    %v911 = vsel %vm694, %v463, 0
    %v912 = vsel %vm694, %v464, 0
    %v913 = vsel %vm694, %v465, 0
    %v914 = vsel %vm694, %v466, 0
    %v915 = vsel %vm695, %v467, 0
    %v916 = vsel %vm695, %v468, 0
    %v917 = vsel %vm695, %v469, 0
    %v918 = vsel %vm695, %v470, 0
    %v919 = vsel %vm696, %v471, 0
    %v920 = vsel %vm696, %v472, 0
    %v921 = vsel %vm696, %v473, 0
    %v922 = vsel %vm696, %v474, 0
    %v923 = vsel %vm697, %v475, 0
    %v924 = vsel %vm697, %v476, 0
    %v925 = vsel %vm697, %v477, 0
    %v926 = vsel %vm697, %v478, 0
    %v927 = vsel %vm698, %v479, 0
    %v928 = vsel %vm698, %v480, 0
    %v929 = vsel %vm698, %v481, 0
    %v930 = vsel %vm698, %v482, 0
    %v931 = vsel %vm699, %v483, 0
    %v932 = vsel %vm699, %v484, 0
    %v933 = vsel %vm699, %v485, 0
    %v934 = vsel %vm699, %v486, 0
    %v935 = vsel %vm700, %v487, 0
    %v936 = vsel %vm700, %v488, 0
    %v937 = vsel %vm700, %v489, 0
    %v938 = vsel %vm700, %v490, 0
    %v939 = vsel %vm701, %v491, 0
    %v940 = vsel %vm701, %v492, 0
    %v941 = vsel %vm701, %v493, 0
    %v942 = vsel %vm701, %v494, 0
    %v943 = vsel %vm702, %v495, 0
    %v944 = vsel %vm702, %v496, 0
    %v945 = vsel %vm702, %v497, 0
    %v946 = vsel %vm702, %v498, 0
    %v947 = vsel %vm703, %v499, 0
    %v948 = vsel %vm703, %v500, 0
    %v949 = vsel %vm703, %v501, 0
    %v950 = vsel %vm703, %v502, 0
    %v951 = vsel %vm704, %v503, 0
    %v952 = vsel %vm704, %v504, 0
    %v953 = vsel %vm704, %v505, 0
    %v954 = vsel %vm704, %v506, 0
    %v955 = vsel %vm705, %v507, 0
    %v956 = vsel %vm705, %v508, 0
    %v957 = vsel %vm705, %v509, 0
    %v958 = vsel %vm705, %v510, 0
    %v959 = vsel %vm706, %v511, 0
    %v960 = vsel %vm706, %v512, 0
    %v961 = vsel %vm706, %v513, 0
    %v962 = vsel %vm706, %v514, 0
    %v963 = vld [vmem:[#allocation9] sm:$0xff]
    %v964 = vld [vmem:[#allocation9 + $0x8] sm:$0xff]
    %v965 = vld [vmem:[#allocation9 + $0x10] sm:$0xff]
    %v966 = vld [vmem:[#allocation9 + $0x18] sm:$0xff]
    %v967 = vld [vmem:[#allocation9 + $0x20] sm:$0xff]
    %v968 = vld [vmem:[#allocation9 + $0x28] sm:$0xff]
    %v969 = vld [vmem:[#allocation9 + $0x30] sm:$0xff]
    %v970 = vld [vmem:[#allocation9 + $0x38] sm:$0xff]
    %v971 = vld [vmem:[#allocation9 + $0x40] sm:$0xff]
    %v972 = vld [vmem:[#allocation9 + $0x48] sm:$0xff]
    %v973 = vld [vmem:[#allocation9 + $0x50] sm:$0xff]
    %v974 = vld [vmem:[#allocation9 + $0x58] sm:$0xff]
    %v975 = vld [vmem:[#allocation9 + $0x60] sm:$0xff]
    %v976 = vld [vmem:[#allocation9 + $0x68] sm:$0xff]
    %v977 = vld [vmem:[#allocation9 + $0x70] sm:$0xff]
    %v978 = vld [vmem:[#allocation9 + $0x78] sm:$0xff]
    %v979 = vld [vmem:[#allocation9 + $0x80] sm:$0xff]
    %v980 = vld [vmem:[#allocation9 + $0x88] sm:$0xff]
    %v981 = vld [vmem:[#allocation9 + $0x90] sm:$0xff]
    %v982 = vld [vmem:[#allocation9 + $0x98] sm:$0xff]
    %v983 = vld [vmem:[#allocation9 + $0xa0] sm:$0xff]
    %v984 = vld [vmem:[#allocation9 + $0xa8] sm:$0xff]
    %v985 = vld [vmem:[#allocation9 + $0xb0] sm:$0xff]
    %v986 = vld [vmem:[#allocation9 + $0xb8] sm:$0xff]
    %v987 = vld [vmem:[#allocation9 + $0xc0] sm:$0xff]
    %v988 = vld [vmem:[#allocation9 + $0xc8] sm:$0xff]
    %v989 = vld [vmem:[#allocation9 + $0xd0] sm:$0xff]
    %v990 = vld [vmem:[#allocation9 + $0xd8] sm:$0xff]
    %v991 = vld [vmem:[#allocation9 + $0xe0] sm:$0xff]
    %v992 = vld [vmem:[#allocation9 + $0xe8] sm:$0xff]
    %v993 = vld [vmem:[#allocation9 + $0xf0] sm:$0xff]
    %v994 = vld [vmem:[#allocation9 + $0xf8] sm:$0xff]
    %v995 = vld [vmem:[#allocation9 + $0x100] sm:$0xff]
    %v996 = vld [vmem:[#allocation9 + $0x108] sm:$0xff]
    %v997 = vld [vmem:[#allocation9 + $0x110] sm:$0xff]
    %v998 = vld [vmem:[#allocation9 + $0x118] sm:$0xff]
    %v999 = vld [vmem:[#allocation9 + $0x120] sm:$0xff]
    %v1000 = vld [vmem:[#allocation9 + $0x128] sm:$0xff]
    %v1001 = vld [vmem:[#allocation9 + $0x130] sm:$0xff]
    %v1002 = vld [vmem:[#allocation9 + $0x138] sm:$0xff]
    %v1003 = vld [vmem:[#allocation9 + $0x140] sm:$0xff]
    %v1004 = vld [vmem:[#allocation9 + $0x148] sm:$0xff]
    %v1005 = vld [vmem:[#allocation9 + $0x150] sm:$0xff]
    %v1006 = vld [vmem:[#allocation9 + $0x158] sm:$0xff]
    %v1007 = vld [vmem:[#allocation9 + $0x160] sm:$0xff]
    %v1008 = vld [vmem:[#allocation9 + $0x168] sm:$0xff]
    %v1009 = vld [vmem:[#allocation9 + $0x170] sm:$0xff]
    %v1010 = vld [vmem:[#allocation9 + $0x178] sm:$0xff]
    %v1011 = vld [vmem:[#allocation9 + $0x180] sm:$0xff]
    %v1012 = vld [vmem:[#allocation9 + $0x188] sm:$0xff]
    %v1013 = vld [vmem:[#allocation9 + $0x190] sm:$0xff]
    %v1014 = vld [vmem:[#allocation9 + $0x198] sm:$0xff]
    %v1015 = vld [vmem:[#allocation9 + $0x1a0] sm:$0xff]
    %v1016 = vld [vmem:[#allocation9 + $0x1a8] sm:$0xff]
    %v1017 = vld [vmem:[#allocation9 + $0x1b0] sm:$0xff]
    %v1018 = vld [vmem:[#allocation9 + $0x1b8] sm:$0xff]
    %v1019 = vld [vmem:[#allocation9 + $0x1c0] sm:$0xff]
    %v1020 = vld [vmem:[#allocation9 + $0x1c8] sm:$0xff]
    %v1021 = vld [vmem:[#allocation9 + $0x1d0] sm:$0xff]
    %v1022 = vld [vmem:[#allocation9 + $0x1d8] sm:$0xff]
    %v1023 = vld [vmem:[#allocation9 + $0x1e0] sm:$0xff]
    %v1024 = vld [vmem:[#allocation9 + $0x1e8] sm:$0xff]
    %v1025 = vld [vmem:[#allocation9 + $0x1f0] sm:$0xff]
    %v1026 = vld [vmem:[#allocation9 + $0x1f8] sm:$0xff]
    %v1027 = vld [vmem:[#allocation9 + $0x200] sm:$0xff]
    %v1028 = vld [vmem:[#allocation9 + $0x208] sm:$0xff]
    %v1029 = vld [vmem:[#allocation9 + $0x210] sm:$0xff]
    %v1030 = vld [vmem:[#allocation9 + $0x218] sm:$0xff]
    %v1031 = vld [vmem:[#allocation9 + $0x220] sm:$0xff]
    %v1032 = vld [vmem:[#allocation9 + $0x228] sm:$0xff]
    %v1033 = vld [vmem:[#allocation9 + $0x230] sm:$0xff]
    %v1034 = vld [vmem:[#allocation9 + $0x238] sm:$0xff]
    %v1035 = vld [vmem:[#allocation9 + $0x240] sm:$0xff]
    %v1036 = vld [vmem:[#allocation9 + $0x248] sm:$0xff]
    %v1037 = vld [vmem:[#allocation9 + $0x250] sm:$0xff]
    %v1038 = vld [vmem:[#allocation9 + $0x258] sm:$0xff]
    %v1039 = vld [vmem:[#allocation9 + $0x260] sm:$0xff]
    %v1040 = vld [vmem:[#allocation9 + $0x268] sm:$0xff]
    %v1041 = vld [vmem:[#allocation9 + $0x270] sm:$0xff]
    %v1042 = vld [vmem:[#allocation9 + $0x278] sm:$0xff]
    %v1043 = vld [vmem:[#allocation9 + $0x280] sm:$0xff]
    %v1044 = vld [vmem:[#allocation9 + $0x288] sm:$0xff]
    %v1045 = vld [vmem:[#allocation9 + $0x290] sm:$0xff]
    %v1046 = vld [vmem:[#allocation9 + $0x298] sm:$0xff]
    %v1047 = vld [vmem:[#allocation9 + $0x2a0] sm:$0xff]
    %v1048 = vld [vmem:[#allocation9 + $0x2a8] sm:$0xff]
    %v1049 = vld [vmem:[#allocation9 + $0x2b0] sm:$0xff]
    %v1050 = vld [vmem:[#allocation9 + $0x2b8] sm:$0xff]
    %v1051 = vld [vmem:[#allocation9 + $0x2c0] sm:$0xff]
    %v1052 = vld [vmem:[#allocation9 + $0x2c8] sm:$0xff]
    %v1053 = vld [vmem:[#allocation9 + $0x2d0] sm:$0xff]
    %v1054 = vld [vmem:[#allocation9 + $0x2d8] sm:$0xff]
    %v1055 = vld [vmem:[#allocation9 + $0x2e0] sm:$0xff]
    %v1056 = vld [vmem:[#allocation9 + $0x2e8] sm:$0xff]
    %v1057 = vld [vmem:[#allocation9 + $0x2f0] sm:$0xff]
    %v1058 = vld [vmem:[#allocation9 + $0x2f8] sm:$0xff]
    %v1059 = vld [vmem:[#allocation9 + $0x300] sm:$0xff]
    %v1060 = vld [vmem:[#allocation9 + $0x308] sm:$0xff]
    %v1061 = vld [vmem:[#allocation9 + $0x310] sm:$0xff]
    %v1062 = vld [vmem:[#allocation9 + $0x318] sm:$0xff]
    %v1063 = vld [vmem:[#allocation9 + $0x320] sm:$0xff]
    %v1064 = vld [vmem:[#allocation9 + $0x328] sm:$0xff]
    %v1065 = vld [vmem:[#allocation9 + $0x330] sm:$0xff]
    %v1066 = vld [vmem:[#allocation9 + $0x338] sm:$0xff]
    %v1067 = vld [vmem:[#allocation9 + $0x340] sm:$0xff]
    %v1068 = vld [vmem:[#allocation9 + $0x348] sm:$0xff]
    %v1069 = vld [vmem:[#allocation9 + $0x350] sm:$0xff]
    %v1070 = vld [vmem:[#allocation9 + $0x358] sm:$0xff]
    %v1071 = vld [vmem:[#allocation9 + $0x360] sm:$0xff]
    %v1072 = vld [vmem:[#allocation9 + $0x368] sm:$0xff]
    %v1073 = vld [vmem:[#allocation9 + $0x370] sm:$0xff]
    %v1074 = vld [vmem:[#allocation9 + $0x378] sm:$0xff]
    %v1075 = vld [vmem:[#allocation9 + $0x380] sm:$0xff]
    %v1076 = vld [vmem:[#allocation9 + $0x388] sm:$0xff]
    %v1077 = vld [vmem:[#allocation9 + $0x390] sm:$0xff]
    %v1078 = vld [vmem:[#allocation9 + $0x398] sm:$0xff]
    %v1079 = vld [vmem:[#allocation9 + $0x3a0] sm:$0xff]
    %v1080 = vld [vmem:[#allocation9 + $0x3a8] sm:$0xff]
    %v1081 = vld [vmem:[#allocation9 + $0x3b0] sm:$0xff]
    %v1082 = vld [vmem:[#allocation9 + $0x3b8] sm:$0xff]
    %v1083 = vld [vmem:[#allocation9 + $0x3c0] sm:$0xff]
    %v1084 = vld [vmem:[#allocation9 + $0x3c8] sm:$0xff]
    %v1085 = vld [vmem:[#allocation9 + $0x3d0] sm:$0xff]
    %v1086 = vld [vmem:[#allocation9 + $0x3d8] sm:$0xff]
    %v1087 = vld [vmem:[#allocation9 + $0x3e0] sm:$0xff]
    %v1088 = vld [vmem:[#allocation9 + $0x3e8] sm:$0xff]
    %v1089 = vld [vmem:[#allocation9 + $0x3f0] sm:$0xff]
    %v1090 = vld [vmem:[#allocation9 + $0x3f8] sm:$0xff]
    %v1091 = vld [vmem:[%s2] sm:$0x3]
    %v1093 = vlaneseq
    %v1094 = vshrl.u32 %v1093, 7
    %v1095 = vsub.s32 0, %v1094
    %v1096 = vrot.slane %v1091, %v1095
    %v1097 = vlaneseq
    %v1098 = vshrl.u32 %v1097, 7
    %v1099 = vsub.s32 1, %v1098
    %v1100 = vrot.slane %v1091, %v1099
    %v1359 = vunpack.c.l.b16 %v707
    %v1360 = vunpack.c.h.b16 %v707
    %v1361 = vunpack.c.l.b16 %v708
    %v1362 = vunpack.c.h.b16 %v708
    %v1363 = vunpack.c.l.b16 %v709
    %v1364 = vunpack.c.h.b16 %v709
    %v1365 = vunpack.c.l.b16 %v710
    %v1366 = vunpack.c.h.b16 %v710
    %v1367 = vunpack.c.l.b16 %v711
    %v1368 = vunpack.c.h.b16 %v711
    %v1369 = vunpack.c.l.b16 %v712
    %v1370 = vunpack.c.h.b16 %v712
    %v1371 = vunpack.c.l.b16 %v713
    %v1372 = vunpack.c.h.b16 %v713
    %v1373 = vunpack.c.l.b16 %v714
    %v1374 = vunpack.c.h.b16 %v714
    %v1375 = vunpack.c.l.b16 %v715
    %v1376 = vunpack.c.h.b16 %v715
    %v1377 = vunpack.c.l.b16 %v716
    %v1378 = vunpack.c.h.b16 %v716
    %v1379 = vunpack.c.l.b16 %v717
    %v1380 = vunpack.c.h.b16 %v717
    %v1381 = vunpack.c.l.b16 %v718
    %v1382 = vunpack.c.h.b16 %v718
    %v1383 = vunpack.c.l.b16 %v719
    %v1384 = vunpack.c.h.b16 %v719
    %v1385 = vunpack.c.l.b16 %v720
    %v1386 = vunpack.c.h.b16 %v720
    %v1387 = vunpack.c.l.b16 %v721
    %v1388 = vunpack.c.h.b16 %v721
    %v1389 = vunpack.c.l.b16 %v722
    %v1390 = vunpack.c.h.b16 %v722
    %v1391 = vunpack.c.l.b16 %v723
    %v1392 = vunpack.c.h.b16 %v723
    %v1393 = vunpack.c.l.b16 %v724
    %v1394 = vunpack.c.h.b16 %v724
    %v1395 = vunpack.c.l.b16 %v725
    %v1396 = vunpack.c.h.b16 %v725
    %v1397 = vunpack.c.l.b16 %v726
    %v1398 = vunpack.c.h.b16 %v726
    %v1399 = vunpack.c.l.b16 %v727
    %v1400 = vunpack.c.h.b16 %v727
    %v1401 = vunpack.c.l.b16 %v728
    %v1402 = vunpack.c.h.b16 %v728
    %v1403 = vunpack.c.l.b16 %v729
    %v1404 = vunpack.c.h.b16 %v729
    %v1405 = vunpack.c.l.b16 %v730
    %v1406 = vunpack.c.h.b16 %v730
    %v1407 = vunpack.c.l.b16 %v731
    %v1408 = vunpack.c.h.b16 %v731
    %v1409 = vunpack.c.l.b16 %v732
    %v1410 = vunpack.c.h.b16 %v732
    %v1411 = vunpack.c.l.b16 %v733
    %v1412 = vunpack.c.h.b16 %v733
    %v1413 = vunpack.c.l.b16 %v734
    %v1414 = vunpack.c.h.b16 %v734
    %v1415 = vunpack.c.l.b16 %v735
    %v1416 = vunpack.c.h.b16 %v735
    %v1417 = vunpack.c.l.b16 %v736
    %v1418 = vunpack.c.h.b16 %v736
    %v1419 = vunpack.c.l.b16 %v737
    %v1420 = vunpack.c.h.b16 %v737
    %v1421 = vunpack.c.l.b16 %v738
    %v1422 = vunpack.c.h.b16 %v738
    %v1423 = vunpack.c.l.b16 %v739
    %v1424 = vunpack.c.h.b16 %v739
    %v1425 = vunpack.c.l.b16 %v740
    %v1426 = vunpack.c.h.b16 %v740
    %v1427 = vunpack.c.l.b16 %v741
    %v1428 = vunpack.c.h.b16 %v741
    %v1429 = vunpack.c.l.b16 %v742
    %v1430 = vunpack.c.h.b16 %v742
    %v1431 = vunpack.c.l.b16 %v743
    %v1432 = vunpack.c.h.b16 %v743
    %v1433 = vunpack.c.l.b16 %v744
    %v1434 = vunpack.c.h.b16 %v744
    %v1435 = vunpack.c.l.b16 %v745
    %v1436 = vunpack.c.h.b16 %v745
    %v1437 = vunpack.c.l.b16 %v746
    %v1438 = vunpack.c.h.b16 %v746
    %v1439 = vunpack.c.l.b16 %v747
    %v1440 = vunpack.c.h.b16 %v747
    %v1441 = vunpack.c.l.b16 %v748
    %v1442 = vunpack.c.h.b16 %v748
    %v1443 = vunpack.c.l.b16 %v749
    %v1444 = vunpack.c.h.b16 %v749
    %v1445 = vunpack.c.l.b16 %v750
    %v1446 = vunpack.c.h.b16 %v750
    %v1447 = vunpack.c.l.b16 %v751
    %v1448 = vunpack.c.h.b16 %v751
    %v1449 = vunpack.c.l.b16 %v752
    %v1450 = vunpack.c.h.b16 %v752
    %v1451 = vunpack.c.l.b16 %v753
    %v1452 = vunpack.c.h.b16 %v753
    %v1453 = vunpack.c.l.b16 %v754
    %v1454 = vunpack.c.h.b16 %v754
    %v1455 = vunpack.c.l.b16 %v755
    %v1456 = vunpack.c.h.b16 %v755
    %v1457 = vunpack.c.l.b16 %v756
    %v1458 = vunpack.c.h.b16 %v756
    %v1459 = vunpack.c.l.b16 %v757
    %v1460 = vunpack.c.h.b16 %v757
    %v1461 = vunpack.c.l.b16 %v758
    %v1462 = vunpack.c.h.b16 %v758
    %v1463 = vunpack.c.l.b16 %v759
    %v1464 = vunpack.c.h.b16 %v759
    %v1465 = vunpack.c.l.b16 %v760
    %v1466 = vunpack.c.h.b16 %v760
    %v1467 = vunpack.c.l.b16 %v761
    %v1468 = vunpack.c.h.b16 %v761
    %v1469 = vunpack.c.l.b16 %v762
    %v1470 = vunpack.c.h.b16 %v762
    %v1471 = vunpack.c.l.b16 %v763
    %v1472 = vunpack.c.h.b16 %v763
    %v1473 = vunpack.c.l.b16 %v764
    %v1474 = vunpack.c.h.b16 %v764
    %v1475 = vunpack.c.l.b16 %v765
    %v1476 = vunpack.c.h.b16 %v765
    %v1477 = vunpack.c.l.b16 %v766
    %v1478 = vunpack.c.h.b16 %v766
    %v1479 = vunpack.c.l.b16 %v767
    %v1480 = vunpack.c.h.b16 %v767
    %v1481 = vunpack.c.l.b16 %v768
    %v1482 = vunpack.c.h.b16 %v768
    %v1483 = vunpack.c.l.b16 %v769
    %v1484 = vunpack.c.h.b16 %v769
    %v1485 = vunpack.c.l.b16 %v770
    %v1486 = vunpack.c.h.b16 %v770
    %v1487 = vunpack.c.l.b16 %v771
    %v1488 = vunpack.c.h.b16 %v771
    %v1489 = vunpack.c.l.b16 %v772
    %v1490 = vunpack.c.h.b16 %v772
    %v1491 = vunpack.c.l.b16 %v773
    %v1492 = vunpack.c.h.b16 %v773
    %v1493 = vunpack.c.l.b16 %v774
    %v1494 = vunpack.c.h.b16 %v774
    %v1495 = vunpack.c.l.b16 %v775
    %v1496 = vunpack.c.h.b16 %v775
    %v1497 = vunpack.c.l.b16 %v776
    %v1498 = vunpack.c.h.b16 %v776
    %v1499 = vunpack.c.l.b16 %v777
    %v1500 = vunpack.c.h.b16 %v777
    %v1501 = vunpack.c.l.b16 %v778
    %v1502 = vunpack.c.h.b16 %v778
    %v1503 = vunpack.c.l.b16 %v779
    %v1504 = vunpack.c.h.b16 %v779
    %v1505 = vunpack.c.l.b16 %v780
    %v1506 = vunpack.c.h.b16 %v780
    %v1507 = vunpack.c.l.b16 %v781
    %v1508 = vunpack.c.h.b16 %v781
    %v1509 = vunpack.c.l.b16 %v782
    %v1510 = vunpack.c.h.b16 %v782
    %v1511 = vunpack.c.l.b16 %v783
    %v1512 = vunpack.c.h.b16 %v783
    %v1513 = vunpack.c.l.b16 %v784
    %v1514 = vunpack.c.h.b16 %v784
    %v1515 = vunpack.c.l.b16 %v785
    %v1516 = vunpack.c.h.b16 %v785
    %v1517 = vunpack.c.l.b16 %v786
    %v1518 = vunpack.c.h.b16 %v786
    %v1519 = vunpack.c.l.b16 %v787
    %v1520 = vunpack.c.h.b16 %v787
    %v1521 = vunpack.c.l.b16 %v788
    %v1522 = vunpack.c.h.b16 %v788
    %v1523 = vunpack.c.l.b16 %v789
    %v1524 = vunpack.c.h.b16 %v789
    %v1525 = vunpack.c.l.b16 %v790
    %v1526 = vunpack.c.h.b16 %v790
    %v1527 = vunpack.c.l.b16 %v791
    %v1528 = vunpack.c.h.b16 %v791
    %v1529 = vunpack.c.l.b16 %v792
    %v1530 = vunpack.c.h.b16 %v792
    %v1531 = vunpack.c.l.b16 %v793
    %v1532 = vunpack.c.h.b16 %v793
    %v1533 = vunpack.c.l.b16 %v794
    %v1534 = vunpack.c.h.b16 %v794
    %v1535 = vunpack.c.l.b16 %v795
    %v1536 = vunpack.c.h.b16 %v795
    %v1537 = vunpack.c.l.b16 %v796
    %v1538 = vunpack.c.h.b16 %v796
    %v1539 = vunpack.c.l.b16 %v797
    %v1540 = vunpack.c.h.b16 %v797
    %v1541 = vunpack.c.l.b16 %v798
    %v1542 = vunpack.c.h.b16 %v798
    %v1543 = vunpack.c.l.b16 %v799
    %v1544 = vunpack.c.h.b16 %v799
    %v1545 = vunpack.c.l.b16 %v800
    %v1546 = vunpack.c.h.b16 %v800
    %v1547 = vunpack.c.l.b16 %v801
    %v1548 = vunpack.c.h.b16 %v801
    %v1549 = vunpack.c.l.b16 %v802
    %v1550 = vunpack.c.h.b16 %v802
    %v1551 = vunpack.c.l.b16 %v803
    %v1552 = vunpack.c.h.b16 %v803
    %v1553 = vunpack.c.l.b16 %v804
    %v1554 = vunpack.c.h.b16 %v804
    %v1555 = vunpack.c.l.b16 %v805
    %v1556 = vunpack.c.h.b16 %v805
    %v1557 = vunpack.c.l.b16 %v806
    %v1558 = vunpack.c.h.b16 %v806
    %v1559 = vunpack.c.l.b16 %v807
    %v1560 = vunpack.c.h.b16 %v807
    %v1561 = vunpack.c.l.b16 %v808
    %v1562 = vunpack.c.h.b16 %v808
    %v1563 = vunpack.c.l.b16 %v809
    %v1564 = vunpack.c.h.b16 %v809
    %v1565 = vunpack.c.l.b16 %v810
    %v1566 = vunpack.c.h.b16 %v810
    %v1567 = vunpack.c.l.b16 %v811
    %v1568 = vunpack.c.h.b16 %v811
    %v1569 = vunpack.c.l.b16 %v812
    %v1570 = vunpack.c.h.b16 %v812
    %v1571 = vunpack.c.l.b16 %v813
    %v1572 = vunpack.c.h.b16 %v813
    %v1573 = vunpack.c.l.b16 %v814
    %v1574 = vunpack.c.h.b16 %v814
    %v1575 = vunpack.c.l.b16 %v815
    %v1576 = vunpack.c.h.b16 %v815
    %v1577 = vunpack.c.l.b16 %v816
    %v1578 = vunpack.c.h.b16 %v816
    %v1579 = vunpack.c.l.b16 %v817
    %v1580 = vunpack.c.h.b16 %v817
    %v1581 = vunpack.c.l.b16 %v818
    %v1582 = vunpack.c.h.b16 %v818
    %v1583 = vunpack.c.l.b16 %v819
    %v1584 = vunpack.c.h.b16 %v819
    %v1585 = vunpack.c.l.b16 %v820
    %v1586 = vunpack.c.h.b16 %v820
    %v1587 = vunpack.c.l.b16 %v821
    %v1588 = vunpack.c.h.b16 %v821
    %v1589 = vunpack.c.l.b16 %v822
    %v1590 = vunpack.c.h.b16 %v822
    %v1591 = vunpack.c.l.b16 %v823
    %v1592 = vunpack.c.h.b16 %v823
    %v1593 = vunpack.c.l.b16 %v824
    %v1594 = vunpack.c.h.b16 %v824
    %v1595 = vunpack.c.l.b16 %v825
    %v1596 = vunpack.c.h.b16 %v825
    %v1597 = vunpack.c.l.b16 %v826
    %v1598 = vunpack.c.h.b16 %v826
    %v1599 = vunpack.c.l.b16 %v827
    %v1600 = vunpack.c.h.b16 %v827
    %v1601 = vunpack.c.l.b16 %v828
    %v1602 = vunpack.c.h.b16 %v828
    %v1603 = vunpack.c.l.b16 %v829
    %v1604 = vunpack.c.h.b16 %v829
    %v1605 = vunpack.c.l.b16 %v830
    %v1606 = vunpack.c.h.b16 %v830
    %v1607 = vunpack.c.l.b16 %v831
    %v1608 = vunpack.c.h.b16 %v831
    %v1609 = vunpack.c.l.b16 %v832
    %v1610 = vunpack.c.h.b16 %v832
    %v1611 = vunpack.c.l.b16 %v833
    %v1612 = vunpack.c.h.b16 %v833
    %v1613 = vunpack.c.l.b16 %v834
    %v1614 = vunpack.c.h.b16 %v834
    %v1615 = vunpack.c.l.b16 %v835
    %v1616 = vunpack.c.h.b16 %v835
    %v1617 = vunpack.c.l.b16 %v836
    %v1618 = vunpack.c.h.b16 %v836
    %v1619 = vunpack.c.l.b16 %v837
    %v1620 = vunpack.c.h.b16 %v837
    %v1621 = vunpack.c.l.b16 %v838
    %v1622 = vunpack.c.h.b16 %v838
    %v1623 = vunpack.c.l.b16 %v839
    %v1624 = vunpack.c.h.b16 %v839
    %v1625 = vunpack.c.l.b16 %v840
    %v1626 = vunpack.c.h.b16 %v840
    %v1627 = vunpack.c.l.b16 %v841
    %v1628 = vunpack.c.h.b16 %v841
    %v1629 = vunpack.c.l.b16 %v842
    %v1630 = vunpack.c.h.b16 %v842
    %v1631 = vunpack.c.l.b16 %v843
    %v1632 = vunpack.c.h.b16 %v843
    %v1633 = vunpack.c.l.b16 %v844
    %v1634 = vunpack.c.h.b16 %v844
    %v1635 = vunpack.c.l.b16 %v845
    %v1636 = vunpack.c.h.b16 %v845
    %v1637 = vunpack.c.l.b16 %v846
    %v1638 = vunpack.c.h.b16 %v846
    %v1639 = vunpack.c.l.b16 %v847
    %v1640 = vunpack.c.h.b16 %v847
    %v1641 = vunpack.c.l.b16 %v848
    %v1642 = vunpack.c.h.b16 %v848
    %v1643 = vunpack.c.l.b16 %v849
    %v1644 = vunpack.c.h.b16 %v849
    %v1645 = vunpack.c.l.b16 %v850
    %v1646 = vunpack.c.h.b16 %v850
    %v1647 = vunpack.c.l.b16 %v851
    %v1648 = vunpack.c.h.b16 %v851
    %v1649 = vunpack.c.l.b16 %v852
    %v1650 = vunpack.c.h.b16 %v852
    %v1651 = vunpack.c.l.b16 %v853
    %v1652 = vunpack.c.h.b16 %v853
    %v1653 = vunpack.c.l.b16 %v854
    %v1654 = vunpack.c.h.b16 %v854
    %v1655 = vunpack.c.l.b16 %v855
    %v1656 = vunpack.c.h.b16 %v855
    %v1657 = vunpack.c.l.b16 %v856
    %v1658 = vunpack.c.h.b16 %v856
    %v1659 = vunpack.c.l.b16 %v857
    %v1660 = vunpack.c.h.b16 %v857
    %v1661 = vunpack.c.l.b16 %v858
    %v1662 = vunpack.c.h.b16 %v858
    %v1663 = vunpack.c.l.b16 %v859
    %v1664 = vunpack.c.h.b16 %v859
    %v1665 = vunpack.c.l.b16 %v860
    %v1666 = vunpack.c.h.b16 %v860
    %v1667 = vunpack.c.l.b16 %v861
    %v1668 = vunpack.c.h.b16 %v861
    %v1669 = vunpack.c.l.b16 %v862
    %v1670 = vunpack.c.h.b16 %v862
    %v1671 = vunpack.c.l.b16 %v863
    %v1672 = vunpack.c.h.b16 %v863
    %v1673 = vunpack.c.l.b16 %v864
    %v1674 = vunpack.c.h.b16 %v864
    %v1675 = vunpack.c.l.b16 %v865
    %v1676 = vunpack.c.h.b16 %v865
    %v1677 = vunpack.c.l.b16 %v866
    %v1678 = vunpack.c.h.b16 %v866
    %v1679 = vunpack.c.l.b16 %v867
    %v1680 = vunpack.c.h.b16 %v867
    %v1681 = vunpack.c.l.b16 %v868
    %v1682 = vunpack.c.h.b16 %v868
    %v1683 = vunpack.c.l.b16 %v869
    %v1684 = vunpack.c.h.b16 %v869
    %v1685 = vunpack.c.l.b16 %v870
    %v1686 = vunpack.c.h.b16 %v870
    %v1687 = vunpack.c.l.b16 %v871
    %v1688 = vunpack.c.h.b16 %v871
    %v1689 = vunpack.c.l.b16 %v872
    %v1690 = vunpack.c.h.b16 %v872
    %v1691 = vunpack.c.l.b16 %v873
    %v1692 = vunpack.c.h.b16 %v873
    %v1693 = vunpack.c.l.b16 %v874
    %v1694 = vunpack.c.h.b16 %v874
    %v1695 = vunpack.c.l.b16 %v875
    %v1696 = vunpack.c.h.b16 %v875
    %v1697 = vunpack.c.l.b16 %v876
    %v1698 = vunpack.c.h.b16 %v876
    %v1699 = vunpack.c.l.b16 %v877
    %v1700 = vunpack.c.h.b16 %v877
    %v1701 = vunpack.c.l.b16 %v878
    %v1702 = vunpack.c.h.b16 %v878
    %v1703 = vunpack.c.l.b16 %v879
    %v1704 = vunpack.c.h.b16 %v879
    %v1705 = vunpack.c.l.b16 %v880
    %v1706 = vunpack.c.h.b16 %v880
    %v1707 = vunpack.c.l.b16 %v881
    %v1708 = vunpack.c.h.b16 %v881
    %v1709 = vunpack.c.l.b16 %v882
    %v1710 = vunpack.c.h.b16 %v882
    %v1711 = vunpack.c.l.b16 %v883
    %v1712 = vunpack.c.h.b16 %v883
    %v1713 = vunpack.c.l.b16 %v884
    %v1714 = vunpack.c.h.b16 %v884
    %v1715 = vunpack.c.l.b16 %v885
    %v1716 = vunpack.c.h.b16 %v885
    %v1717 = vunpack.c.l.b16 %v886
    %v1718 = vunpack.c.h.b16 %v886
    %v1719 = vunpack.c.l.b16 %v887
    %v1720 = vunpack.c.h.b16 %v887
    %v1721 = vunpack.c.l.b16 %v888
    %v1722 = vunpack.c.h.b16 %v888
    %v1723 = vunpack.c.l.b16 %v889
    %v1724 = vunpack.c.h.b16 %v889
    %v1725 = vunpack.c.l.b16 %v890
    %v1726 = vunpack.c.h.b16 %v890
    %v1727 = vunpack.c.l.b16 %v891
    %v1728 = vunpack.c.h.b16 %v891
    %v1729 = vunpack.c.l.b16 %v892
    %v1730 = vunpack.c.h.b16 %v892
    %v1731 = vunpack.c.l.b16 %v893
    %v1732 = vunpack.c.h.b16 %v893
    %v1733 = vunpack.c.l.b16 %v894
    %v1734 = vunpack.c.h.b16 %v894
    %v1735 = vunpack.c.l.b16 %v895
    %v1736 = vunpack.c.h.b16 %v895
    %v1737 = vunpack.c.l.b16 %v896
    %v1738 = vunpack.c.h.b16 %v896
    %v1739 = vunpack.c.l.b16 %v897
    %v1740 = vunpack.c.h.b16 %v897
    %v1741 = vunpack.c.l.b16 %v898
    %v1742 = vunpack.c.h.b16 %v898
    %v1743 = vunpack.c.l.b16 %v899
    %v1744 = vunpack.c.h.b16 %v899
    %v1745 = vunpack.c.l.b16 %v900
    %v1746 = vunpack.c.h.b16 %v900
    %v1747 = vunpack.c.l.b16 %v901
    %v1748 = vunpack.c.h.b16 %v901
    %v1749 = vunpack.c.l.b16 %v902
    %v1750 = vunpack.c.h.b16 %v902
    %v1751 = vunpack.c.l.b16 %v903
    %v1752 = vunpack.c.h.b16 %v903
    %v1753 = vunpack.c.l.b16 %v904
    %v1754 = vunpack.c.h.b16 %v904
    %v1755 = vunpack.c.l.b16 %v905
    %v1756 = vunpack.c.h.b16 %v905
    %v1757 = vunpack.c.l.b16 %v906
    %v1758 = vunpack.c.h.b16 %v906
    %v1759 = vunpack.c.l.b16 %v907
    %v1760 = vunpack.c.h.b16 %v907
    %v1761 = vunpack.c.l.b16 %v908
    %v1762 = vunpack.c.h.b16 %v908
    %v1763 = vunpack.c.l.b16 %v909
    %v1764 = vunpack.c.h.b16 %v909
    %v1765 = vunpack.c.l.b16 %v910
    %v1766 = vunpack.c.h.b16 %v910
    %v1767 = vunpack.c.l.b16 %v911
    %v1768 = vunpack.c.h.b16 %v911
    %v1769 = vunpack.c.l.b16 %v912
    %v1770 = vunpack.c.h.b16 %v912
    %v1771 = vunpack.c.l.b16 %v913
    %v1772 = vunpack.c.h.b16 %v913
    %v1773 = vunpack.c.l.b16 %v914
    %v1774 = vunpack.c.h.b16 %v914
    %v1775 = vunpack.c.l.b16 %v915
    %v1776 = vunpack.c.h.b16 %v915
    %v1777 = vunpack.c.l.b16 %v916
    %v1778 = vunpack.c.h.b16 %v916
    %v1779 = vunpack.c.l.b16 %v917
    %v1780 = vunpack.c.h.b16 %v917
    %v1781 = vunpack.c.l.b16 %v918
    %v1782 = vunpack.c.h.b16 %v918
    %v1783 = vunpack.c.l.b16 %v919
    %v1784 = vunpack.c.h.b16 %v919
    %v1785 = vunpack.c.l.b16 %v920
    %v1786 = vunpack.c.h.b16 %v920
    %v1787 = vunpack.c.l.b16 %v921
    %v1788 = vunpack.c.h.b16 %v921
    %v1789 = vunpack.c.l.b16 %v922
    %v1790 = vunpack.c.h.b16 %v922
    %v1791 = vunpack.c.l.b16 %v923
    %v1792 = vunpack.c.h.b16 %v923
    %v1793 = vunpack.c.l.b16 %v924
    %v1794 = vunpack.c.h.b16 %v924
    %v1795 = vunpack.c.l.b16 %v925
    %v1796 = vunpack.c.h.b16 %v925
    %v1797 = vunpack.c.l.b16 %v926
    %v1798 = vunpack.c.h.b16 %v926
    %v1799 = vunpack.c.l.b16 %v927
    %v1800 = vunpack.c.h.b16 %v927
    %v1801 = vunpack.c.l.b16 %v928
    %v1802 = vunpack.c.h.b16 %v928
    %v1803 = vunpack.c.l.b16 %v929
    %v1804 = vunpack.c.h.b16 %v929
    %v1805 = vunpack.c.l.b16 %v930
    %v1806 = vunpack.c.h.b16 %v930
    %v1807 = vunpack.c.l.b16 %v931
    %v1808 = vunpack.c.h.b16 %v931
    %v1809 = vunpack.c.l.b16 %v932
    %v1810 = vunpack.c.h.b16 %v932
    %v1811 = vunpack.c.l.b16 %v933
    %v1812 = vunpack.c.h.b16 %v933
    %v1813 = vunpack.c.l.b16 %v934
    %v1814 = vunpack.c.h.b16 %v934
    %v1815 = vunpack.c.l.b16 %v935
    %v1816 = vunpack.c.h.b16 %v935
    %v1817 = vunpack.c.l.b16 %v936
    %v1818 = vunpack.c.h.b16 %v936
    %v1819 = vunpack.c.l.b16 %v937
    %v1820 = vunpack.c.h.b16 %v937
    %v1821 = vunpack.c.l.b16 %v938
    %v1822 = vunpack.c.h.b16 %v938
    %v1823 = vunpack.c.l.b16 %v939
    %v1824 = vunpack.c.h.b16 %v939
    %v1825 = vunpack.c.l.b16 %v940
    %v1826 = vunpack.c.h.b16 %v940
    %v1827 = vunpack.c.l.b16 %v941
    %v1828 = vunpack.c.h.b16 %v941
    %v1829 = vunpack.c.l.b16 %v942
    %v1830 = vunpack.c.h.b16 %v942
    %v1831 = vunpack.c.l.b16 %v943
    %v1832 = vunpack.c.h.b16 %v943
    %v1833 = vunpack.c.l.b16 %v944
    %v1834 = vunpack.c.h.b16 %v944
    %v1835 = vunpack.c.l.b16 %v945
    %v1836 = vunpack.c.h.b16 %v945
    %v1837 = vunpack.c.l.b16 %v946
    %v1838 = vunpack.c.h.b16 %v946
    %v1839 = vunpack.c.l.b16 %v947
    %v1840 = vunpack.c.h.b16 %v947
    %v1841 = vunpack.c.l.b16 %v948
    %v1842 = vunpack.c.h.b16 %v948
    %v1843 = vunpack.c.l.b16 %v949
    %v1844 = vunpack.c.h.b16 %v949
    %v1845 = vunpack.c.l.b16 %v950
    %v1846 = vunpack.c.h.b16 %v950
    %v1847 = vunpack.c.l.b16 %v951
    %v1848 = vunpack.c.h.b16 %v951
    %v1849 = vunpack.c.l.b16 %v952
    %v1850 = vunpack.c.h.b16 %v952
    %v1851 = vunpack.c.l.b16 %v953
    %v1852 = vunpack.c.h.b16 %v953
    %v1853 = vunpack.c.l.b16 %v954
    %v1854 = vunpack.c.h.b16 %v954
    %v1855 = vunpack.c.l.b16 %v955
    %v1856 = vunpack.c.h.b16 %v955
    %v1857 = vunpack.c.l.b16 %v956
    %v1858 = vunpack.c.h.b16 %v956
    %v1859 = vunpack.c.l.b16 %v957
    %v1860 = vunpack.c.h.b16 %v957
    %v1861 = vunpack.c.l.b16 %v958
    %v1862 = vunpack.c.h.b16 %v958
    %v1863 = vunpack.c.l.b16 %v959
    %v1864 = vunpack.c.h.b16 %v959
    %v1865 = vunpack.c.l.b16 %v960
    %v1866 = vunpack.c.h.b16 %v960
    %v1867 = vunpack.c.l.b16 %v961
    %v1868 = vunpack.c.h.b16 %v961
    %v1869 = vunpack.c.l.b16 %v962
    %v1870 = vunpack.c.h.b16 %v962
    %v1871 = vpack.c.b16 %v1367, %v1359
    %v1872 = vpack.c.b16 %v1368, %v1360
    %v1873 = vpack.c.b16 %v1369, %v1361
    %v1874 = vpack.c.b16 %v1370, %v1362
    %v1875 = vpack.c.b16 %v1371, %v1363
    %v1876 = vpack.c.b16 %v1372, %v1364
    %v1877 = vpack.c.b16 %v1373, %v1365
    %v1878 = vpack.c.b16 %v1374, %v1366
    %v1879 = vpack.c.b16 %v1383, %v1375
    %v1880 = vpack.c.b16 %v1384, %v1376
    %v1881 = vpack.c.b16 %v1385, %v1377
    %v1882 = vpack.c.b16 %v1386, %v1378
    %v1883 = vpack.c.b16 %v1387, %v1379
    %v1884 = vpack.c.b16 %v1388, %v1380
    %v1885 = vpack.c.b16 %v1389, %v1381
    %v1886 = vpack.c.b16 %v1390, %v1382
    %v1887 = vpack.c.b16 %v1399, %v1391
    %v1888 = vpack.c.b16 %v1400, %v1392
    %v1889 = vpack.c.b16 %v1401, %v1393
    %v1890 = vpack.c.b16 %v1402, %v1394
    %v1891 = vpack.c.b16 %v1403, %v1395
    %v1892 = vpack.c.b16 %v1404, %v1396
    %v1893 = vpack.c.b16 %v1405, %v1397
    %v1894 = vpack.c.b16 %v1406, %v1398
    %v1895 = vpack.c.b16 %v1415, %v1407
    %v1896 = vpack.c.b16 %v1416, %v1408
    %v1897 = vpack.c.b16 %v1417, %v1409
    %v1898 = vpack.c.b16 %v1418, %v1410
    %v1899 = vpack.c.b16 %v1419, %v1411
    %v1900 = vpack.c.b16 %v1420, %v1412
    %v1901 = vpack.c.b16 %v1421, %v1413
    %v1902 = vpack.c.b16 %v1422, %v1414
    %v1903 = vpack.c.b16 %v1431, %v1423
    %v1904 = vpack.c.b16 %v1432, %v1424
    %v1905 = vpack.c.b16 %v1433, %v1425
    %v1906 = vpack.c.b16 %v1434, %v1426
    %v1907 = vpack.c.b16 %v1435, %v1427
    %v1908 = vpack.c.b16 %v1436, %v1428
    %v1909 = vpack.c.b16 %v1437, %v1429
    %v1910 = vpack.c.b16 %v1438, %v1430
    %v1911 = vpack.c.b16 %v1447, %v1439
    %v1912 = vpack.c.b16 %v1448, %v1440
    %v1913 = vpack.c.b16 %v1449, %v1441
    %v1914 = vpack.c.b16 %v1450, %v1442
    %v1915 = vpack.c.b16 %v1451, %v1443
    %v1916 = vpack.c.b16 %v1452, %v1444
    %v1917 = vpack.c.b16 %v1453, %v1445
    %v1918 = vpack.c.b16 %v1454, %v1446
    %v1919 = vpack.c.b16 %v1463, %v1455
    %v1920 = vpack.c.b16 %v1464, %v1456
    %v1921 = vpack.c.b16 %v1465, %v1457
    %v1922 = vpack.c.b16 %v1466, %v1458
    %v1923 = vpack.c.b16 %v1467, %v1459
    %v1924 = vpack.c.b16 %v1468, %v1460
    %v1925 = vpack.c.b16 %v1469, %v1461
    %v1926 = vpack.c.b16 %v1470, %v1462
    %v1927 = vpack.c.b16 %v1479, %v1471
    %v1928 = vpack.c.b16 %v1480, %v1472
    %v1929 = vpack.c.b16 %v1481, %v1473
    %v1930 = vpack.c.b16 %v1482, %v1474
    %v1931 = vpack.c.b16 %v1483, %v1475
    %v1932 = vpack.c.b16 %v1484, %v1476
    %v1933 = vpack.c.b16 %v1485, %v1477
    %v1934 = vpack.c.b16 %v1486, %v1478
    %v1935 = vpack.c.b16 %v1495, %v1487
    %v1936 = vpack.c.b16 %v1496, %v1488
    %v1937 = vpack.c.b16 %v1497, %v1489
    %v1938 = vpack.c.b16 %v1498, %v1490
    %v1939 = vpack.c.b16 %v1499, %v1491
    %v1940 = vpack.c.b16 %v1500, %v1492
    %v1941 = vpack.c.b16 %v1501, %v1493
    %v1942 = vpack.c.b16 %v1502, %v1494
    %v1943 = vpack.c.b16 %v1511, %v1503
    %v1944 = vpack.c.b16 %v1512, %v1504
    %v1945 = vpack.c.b16 %v1513, %v1505
    %v1946 = vpack.c.b16 %v1514, %v1506
    %v1947 = vpack.c.b16 %v1515, %v1507
    %v1948 = vpack.c.b16 %v1516, %v1508
    %v1949 = vpack.c.b16 %v1517, %v1509
    %v1950 = vpack.c.b16 %v1518, %v1510
    %v1951 = vpack.c.b16 %v1527, %v1519
    %v1952 = vpack.c.b16 %v1528, %v1520
    %v1953 = vpack.c.b16 %v1529, %v1521
    %v1954 = vpack.c.b16 %v1530, %v1522
    %v1955 = vpack.c.b16 %v1531, %v1523
    %v1956 = vpack.c.b16 %v1532, %v1524
    %v1957 = vpack.c.b16 %v1533, %v1525
    %v1958 = vpack.c.b16 %v1534, %v1526
    %v1959 = vpack.c.b16 %v1543, %v1535
    %v1960 = vpack.c.b16 %v1544, %v1536
    %v1961 = vpack.c.b16 %v1545, %v1537
    %v1962 = vpack.c.b16 %v1546, %v1538
    %v1963 = vpack.c.b16 %v1547, %v1539
    %v1964 = vpack.c.b16 %v1548, %v1540
    %v1965 = vpack.c.b16 %v1549, %v1541
    %v1966 = vpack.c.b16 %v1550, %v1542
    %v1967 = vpack.c.b16 %v1559, %v1551
    %v1968 = vpack.c.b16 %v1560, %v1552
    %v1969 = vpack.c.b16 %v1561, %v1553
    %v1970 = vpack.c.b16 %v1562, %v1554
    %v1971 = vpack.c.b16 %v1563, %v1555
    %v1972 = vpack.c.b16 %v1564, %v1556
    %v1973 = vpack.c.b16 %v1565, %v1557
    %v1974 = vpack.c.b16 %v1566, %v1558
    %v1975 = vpack.c.b16 %v1575, %v1567
    %v1976 = vpack.c.b16 %v1576, %v1568
    %v1977 = vpack.c.b16 %v1577, %v1569
    %v1978 = vpack.c.b16 %v1578, %v1570
    %v1979 = vpack.c.b16 %v1579, %v1571
    %v1980 = vpack.c.b16 %v1580, %v1572
    %v1981 = vpack.c.b16 %v1581, %v1573
    %v1982 = vpack.c.b16 %v1582, %v1574
    %v1983 = vpack.c.b16 %v1591, %v1583
    %v1984 = vpack.c.b16 %v1592, %v1584
    %v1985 = vpack.c.b16 %v1593, %v1585
    %v1986 = vpack.c.b16 %v1594, %v1586
    %v1987 = vpack.c.b16 %v1595, %v1587
    %v1988 = vpack.c.b16 %v1596, %v1588
    %v1989 = vpack.c.b16 %v1597, %v1589
    %v1990 = vpack.c.b16 %v1598, %v1590
    %v1991 = vpack.c.b16 %v1607, %v1599
    %v1992 = vpack.c.b16 %v1608, %v1600
    %v1993 = vpack.c.b16 %v1609, %v1601
    %v1994 = vpack.c.b16 %v1610, %v1602
    %v1995 = vpack.c.b16 %v1611, %v1603
    %v1996 = vpack.c.b16 %v1612, %v1604
    %v1997 = vpack.c.b16 %v1613, %v1605
    %v1998 = vpack.c.b16 %v1614, %v1606
    %v1999 = vpack.c.b16 %v1623, %v1615
    %v2000 = vpack.c.b16 %v1624, %v1616
    %v2001 = vpack.c.b16 %v1625, %v1617
    %v2002 = vpack.c.b16 %v1626, %v1618
    %v2003 = vpack.c.b16 %v1627, %v1619
    %v2004 = vpack.c.b16 %v1628, %v1620
    %v2005 = vpack.c.b16 %v1629, %v1621
    %v2006 = vpack.c.b16 %v1630, %v1622
    %v2007 = vpack.c.b16 %v1639, %v1631
    %v2008 = vpack.c.b16 %v1640, %v1632
    %v2009 = vpack.c.b16 %v1641, %v1633
    %v2010 = vpack.c.b16 %v1642, %v1634
    %v2011 = vpack.c.b16 %v1643, %v1635
    %v2012 = vpack.c.b16 %v1644, %v1636
    %v2013 = vpack.c.b16 %v1645, %v1637
    %v2014 = vpack.c.b16 %v1646, %v1638
    %v2015 = vpack.c.b16 %v1655, %v1647
    %v2016 = vpack.c.b16 %v1656, %v1648
    %v2017 = vpack.c.b16 %v1657, %v1649
    %v2018 = vpack.c.b16 %v1658, %v1650
    %v2019 = vpack.c.b16 %v1659, %v1651
    %v2020 = vpack.c.b16 %v1660, %v1652
    %v2021 = vpack.c.b16 %v1661, %v1653
    %v2022 = vpack.c.b16 %v1662, %v1654
    %v2023 = vpack.c.b16 %v1671, %v1663
    %v2024 = vpack.c.b16 %v1672, %v1664
    %v2025 = vpack.c.b16 %v1673, %v1665
    %v2026 = vpack.c.b16 %v1674, %v1666
    %v2027 = vpack.c.b16 %v1675, %v1667
    %v2028 = vpack.c.b16 %v1676, %v1668
    %v2029 = vpack.c.b16 %v1677, %v1669
    %v2030 = vpack.c.b16 %v1678, %v1670
    %v2031 = vpack.c.b16 %v1687, %v1679
    %v2032 = vpack.c.b16 %v1688, %v1680
    %v2033 = vpack.c.b16 %v1689, %v1681
    %v2034 = vpack.c.b16 %v1690, %v1682
    %v2035 = vpack.c.b16 %v1691, %v1683
    %v2036 = vpack.c.b16 %v1692, %v1684
    %v2037 = vpack.c.b16 %v1693, %v1685
    %v2038 = vpack.c.b16 %v1694, %v1686
    %v2039 = vpack.c.b16 %v1703, %v1695
    %v2040 = vpack.c.b16 %v1704, %v1696
    %v2041 = vpack.c.b16 %v1705, %v1697
    %v2042 = vpack.c.b16 %v1706, %v1698
    %v2043 = vpack.c.b16 %v1707, %v1699
    %v2044 = vpack.c.b16 %v1708, %v1700
    %v2045 = vpack.c.b16 %v1709, %v1701
    %v2046 = vpack.c.b16 %v1710, %v1702
    %v2047 = vpack.c.b16 %v1719, %v1711
    %v2048 = vpack.c.b16 %v1720, %v1712
    %v2049 = vpack.c.b16 %v1721, %v1713
    %v2050 = vpack.c.b16 %v1722, %v1714
    %v2051 = vpack.c.b16 %v1723, %v1715
    %v2052 = vpack.c.b16 %v1724, %v1716
    %v2053 = vpack.c.b16 %v1725, %v1717
    %v2054 = vpack.c.b16 %v1726, %v1718
    %v2055 = vpack.c.b16 %v1735, %v1727
    %v2056 = vpack.c.b16 %v1736, %v1728
    %v2057 = vpack.c.b16 %v1737, %v1729
    %v2058 = vpack.c.b16 %v1738, %v1730
    %v2059 = vpack.c.b16 %v1739, %v1731
    %v2060 = vpack.c.b16 %v1740, %v1732
    %v2061 = vpack.c.b16 %v1741, %v1733
    %v2062 = vpack.c.b16 %v1742, %v1734
    %v2063 = vpack.c.b16 %v1751, %v1743
    %v2064 = vpack.c.b16 %v1752, %v1744
    %v2065 = vpack.c.b16 %v1753, %v1745
    %v2066 = vpack.c.b16 %v1754, %v1746
    %v2067 = vpack.c.b16 %v1755, %v1747
    %v2068 = vpack.c.b16 %v1756, %v1748
    %v2069 = vpack.c.b16 %v1757, %v1749
    %v2070 = vpack.c.b16 %v1758, %v1750
    %v2071 = vpack.c.b16 %v1767, %v1759
    %v2072 = vpack.c.b16 %v1768, %v1760
    %v2073 = vpack.c.b16 %v1769, %v1761
    %v2074 = vpack.c.b16 %v1770, %v1762
    %v2075 = vpack.c.b16 %v1771, %v1763
    %v2076 = vpack.c.b16 %v1772, %v1764
    %v2077 = vpack.c.b16 %v1773, %v1765
    %v2078 = vpack.c.b16 %v1774, %v1766
    %v2079 = vpack.c.b16 %v1783, %v1775
    %v2080 = vpack.c.b16 %v1784, %v1776
    %v2081 = vpack.c.b16 %v1785, %v1777
    %v2082 = vpack.c.b16 %v1786, %v1778
    %v2083 = vpack.c.b16 %v1787, %v1779
    %v2084 = vpack.c.b16 %v1788, %v1780
    %v2085 = vpack.c.b16 %v1789, %v1781
    %v2086 = vpack.c.b16 %v1790, %v1782
    %v2087 = vpack.c.b16 %v1799, %v1791
    %v2088 = vpack.c.b16 %v1800, %v1792
    %v2089 = vpack.c.b16 %v1801, %v1793
    %v2090 = vpack.c.b16 %v1802, %v1794
    %v2091 = vpack.c.b16 %v1803, %v1795
    %v2092 = vpack.c.b16 %v1804, %v1796
    %v2093 = vpack.c.b16 %v1805, %v1797
    %v2094 = vpack.c.b16 %v1806, %v1798
    %v2095 = vpack.c.b16 %v1815, %v1807
    %v2096 = vpack.c.b16 %v1816, %v1808
    %v2097 = vpack.c.b16 %v1817, %v1809
    %v2098 = vpack.c.b16 %v1818, %v1810
    %v2099 = vpack.c.b16 %v1819, %v1811
    %v2100 = vpack.c.b16 %v1820, %v1812
    %v2101 = vpack.c.b16 %v1821, %v1813
    %v2102 = vpack.c.b16 %v1822, %v1814
    %v2103 = vpack.c.b16 %v1831, %v1823
    %v2104 = vpack.c.b16 %v1832, %v1824
    %v2105 = vpack.c.b16 %v1833, %v1825
    %v2106 = vpack.c.b16 %v1834, %v1826
    %v2107 = vpack.c.b16 %v1835, %v1827
    %v2108 = vpack.c.b16 %v1836, %v1828
    %v2109 = vpack.c.b16 %v1837, %v1829
    %v2110 = vpack.c.b16 %v1838, %v1830
    %v2111 = vpack.c.b16 %v1847, %v1839
    %v2112 = vpack.c.b16 %v1848, %v1840
    %v2113 = vpack.c.b16 %v1849, %v1841
    %v2114 = vpack.c.b16 %v1850, %v1842
    %v2115 = vpack.c.b16 %v1851, %v1843
    %v2116 = vpack.c.b16 %v1852, %v1844
    %v2117 = vpack.c.b16 %v1853, %v1845
    %v2118 = vpack.c.b16 %v1854, %v1846
    %v2119 = vpack.c.b16 %v1863, %v1855
    %v2120 = vpack.c.b16 %v1864, %v1856
    %v2121 = vpack.c.b16 %v1865, %v1857
    %v2122 = vpack.c.b16 %v1866, %v1858
    %v2123 = vpack.c.b16 %v1867, %v1859
    %v2124 = vpack.c.b16 %v1868, %v1860
    %v2125 = vpack.c.b16 %v1869, %v1861
    %v2126 = vpack.c.b16 %v1870, %v1862
    %v2511 = vunpack.c.l.b16 %v963
    %v2512 = vunpack.c.h.b16 %v963
    %v2513 = vunpack.c.l.b16 %v964
    %v2514 = vunpack.c.h.b16 %v964
    %v2515 = vunpack.c.l.b16 %v965
    %v2516 = vunpack.c.h.b16 %v965
    %v2517 = vunpack.c.l.b16 %v966
    %v2518 = vunpack.c.h.b16 %v966
    %v2519 = vunpack.c.l.b16 %v967
    %v2520 = vunpack.c.h.b16 %v967
    %v2521 = vunpack.c.l.b16 %v968
    %v2522 = vunpack.c.h.b16 %v968
    %v2523 = vunpack.c.l.b16 %v969
    %v2524 = vunpack.c.h.b16 %v969
    %v2525 = vunpack.c.l.b16 %v970
    %v2526 = vunpack.c.h.b16 %v970
    %v2527 = vunpack.c.l.b16 %v971
    %v2528 = vunpack.c.h.b16 %v971
    %v2529 = vunpack.c.l.b16 %v972
    %v2530 = vunpack.c.h.b16 %v972
    %v2531 = vunpack.c.l.b16 %v973
    %v2532 = vunpack.c.h.b16 %v973
    %v2533 = vunpack.c.l.b16 %v974
    %v2534 = vunpack.c.h.b16 %v974
    %v2535 = vunpack.c.l.b16 %v975
    %v2536 = vunpack.c.h.b16 %v975
    %v2537 = vunpack.c.l.b16 %v976
    %v2538 = vunpack.c.h.b16 %v976
    %v2539 = vunpack.c.l.b16 %v977
    %v2540 = vunpack.c.h.b16 %v977
    %v2541 = vunpack.c.l.b16 %v978
    %v2542 = vunpack.c.h.b16 %v978
    %v2543 = vunpack.c.l.b16 %v979
    %v2544 = vunpack.c.h.b16 %v979
    %v2545 = vunpack.c.l.b16 %v980
    %v2546 = vunpack.c.h.b16 %v980
    %v2547 = vunpack.c.l.b16 %v981
    %v2548 = vunpack.c.h.b16 %v981
    %v2549 = vunpack.c.l.b16 %v982
    %v2550 = vunpack.c.h.b16 %v982
    %v2551 = vunpack.c.l.b16 %v983
    %v2552 = vunpack.c.h.b16 %v983
    %v2553 = vunpack.c.l.b16 %v984
    %v2554 = vunpack.c.h.b16 %v984
    %v2555 = vunpack.c.l.b16 %v985
    %v2556 = vunpack.c.h.b16 %v985
    %v2557 = vunpack.c.l.b16 %v986
    %v2558 = vunpack.c.h.b16 %v986
    %v2559 = vunpack.c.l.b16 %v987
    %v2560 = vunpack.c.h.b16 %v987
    %v2561 = vunpack.c.l.b16 %v988
    %v2562 = vunpack.c.h.b16 %v988
    %v2563 = vunpack.c.l.b16 %v989
    %v2564 = vunpack.c.h.b16 %v989
    %v2565 = vunpack.c.l.b16 %v990
    %v2566 = vunpack.c.h.b16 %v990
    %v2567 = vunpack.c.l.b16 %v991
    %v2568 = vunpack.c.h.b16 %v991
    %v2569 = vunpack.c.l.b16 %v992
    %v2570 = vunpack.c.h.b16 %v992
    %v2571 = vunpack.c.l.b16 %v993
    %v2572 = vunpack.c.h.b16 %v993
    %v2573 = vunpack.c.l.b16 %v994
    %v2574 = vunpack.c.h.b16 %v994
    %v2575 = vunpack.c.l.b16 %v995
    %v2576 = vunpack.c.h.b16 %v995
    %v2577 = vunpack.c.l.b16 %v996
    %v2578 = vunpack.c.h.b16 %v996
    %v2579 = vunpack.c.l.b16 %v997
    %v2580 = vunpack.c.h.b16 %v997
    %v2581 = vunpack.c.l.b16 %v998
    %v2582 = vunpack.c.h.b16 %v998
    %v2583 = vunpack.c.l.b16 %v999
    %v2584 = vunpack.c.h.b16 %v999
    %v2585 = vunpack.c.l.b16 %v1000
    %v2586 = vunpack.c.h.b16 %v1000
    %v2587 = vunpack.c.l.b16 %v1001
    %v2588 = vunpack.c.h.b16 %v1001
    %v2589 = vunpack.c.l.b16 %v1002
    %v2590 = vunpack.c.h.b16 %v1002
    %v2591 = vunpack.c.l.b16 %v1003
    %v2592 = vunpack.c.h.b16 %v1003
    %v2593 = vunpack.c.l.b16 %v1004
    %v2594 = vunpack.c.h.b16 %v1004
    %v2595 = vunpack.c.l.b16 %v1005
    %v2596 = vunpack.c.h.b16 %v1005
    %v2597 = vunpack.c.l.b16 %v1006
    %v2598 = vunpack.c.h.b16 %v1006
    %v2599 = vunpack.c.l.b16 %v1007
    %v2600 = vunpack.c.h.b16 %v1007
    %v2601 = vunpack.c.l.b16 %v1008
    %v2602 = vunpack.c.h.b16 %v1008
    %v2603 = vunpack.c.l.b16 %v1009
    %v2604 = vunpack.c.h.b16 %v1009
    %v2605 = vunpack.c.l.b16 %v1010
    %v2606 = vunpack.c.h.b16 %v1010
    %v2607 = vunpack.c.l.b16 %v1011
    %v2608 = vunpack.c.h.b16 %v1011
    %v2609 = vunpack.c.l.b16 %v1012
    %v2610 = vunpack.c.h.b16 %v1012
    %v2611 = vunpack.c.l.b16 %v1013
    %v2612 = vunpack.c.h.b16 %v1013
    %v2613 = vunpack.c.l.b16 %v1014
    %v2614 = vunpack.c.h.b16 %v1014
    %v2615 = vunpack.c.l.b16 %v1015
    %v2616 = vunpack.c.h.b16 %v1015
    %v2617 = vunpack.c.l.b16 %v1016
    %v2618 = vunpack.c.h.b16 %v1016
    %v2619 = vunpack.c.l.b16 %v1017
    %v2620 = vunpack.c.h.b16 %v1017
    %v2621 = vunpack.c.l.b16 %v1018
    %v2622 = vunpack.c.h.b16 %v1018
    %v2623 = vunpack.c.l.b16 %v1019
    %v2624 = vunpack.c.h.b16 %v1019
    %v2625 = vunpack.c.l.b16 %v1020
    %v2626 = vunpack.c.h.b16 %v1020
    %v2627 = vunpack.c.l.b16 %v1021
    %v2628 = vunpack.c.h.b16 %v1021
    %v2629 = vunpack.c.l.b16 %v1022
    %v2630 = vunpack.c.h.b16 %v1022
    %v2631 = vunpack.c.l.b16 %v1023
    %v2632 = vunpack.c.h.b16 %v1023
    %v2633 = vunpack.c.l.b16 %v1024
    %v2634 = vunpack.c.h.b16 %v1024
    %v2635 = vunpack.c.l.b16 %v1025
    %v2636 = vunpack.c.h.b16 %v1025
    %v2637 = vunpack.c.l.b16 %v1026
    %v2638 = vunpack.c.h.b16 %v1026
    %v2639 = vunpack.c.l.b16 %v1027
    %v2640 = vunpack.c.h.b16 %v1027
    %v2641 = vunpack.c.l.b16 %v1028
    %v2642 = vunpack.c.h.b16 %v1028
    %v2643 = vunpack.c.l.b16 %v1029
    %v2644 = vunpack.c.h.b16 %v1029
    %v2645 = vunpack.c.l.b16 %v1030
    %v2646 = vunpack.c.h.b16 %v1030
    %v2647 = vunpack.c.l.b16 %v1031
    %v2648 = vunpack.c.h.b16 %v1031
    %v2649 = vunpack.c.l.b16 %v1032
    %v2650 = vunpack.c.h.b16 %v1032
    %v2651 = vunpack.c.l.b16 %v1033
    %v2652 = vunpack.c.h.b16 %v1033
    %v2653 = vunpack.c.l.b16 %v1034
    %v2654 = vunpack.c.h.b16 %v1034
    %v2655 = vunpack.c.l.b16 %v1035
    %v2656 = vunpack.c.h.b16 %v1035
    %v2657 = vunpack.c.l.b16 %v1036
    %v2658 = vunpack.c.h.b16 %v1036
    %v2659 = vunpack.c.l.b16 %v1037
    %v2660 = vunpack.c.h.b16 %v1037
    %v2661 = vunpack.c.l.b16 %v1038
    %v2662 = vunpack.c.h.b16 %v1038
    %v2663 = vunpack.c.l.b16 %v1039
    %v2664 = vunpack.c.h.b16 %v1039
    %v2665 = vunpack.c.l.b16 %v1040
    %v2666 = vunpack.c.h.b16 %v1040
    %v2667 = vunpack.c.l.b16 %v1041
    %v2668 = vunpack.c.h.b16 %v1041
    %v2669 = vunpack.c.l.b16 %v1042
    %v2670 = vunpack.c.h.b16 %v1042
    %v2671 = vunpack.c.l.b16 %v1043
    %v2672 = vunpack.c.h.b16 %v1043
    %v2673 = vunpack.c.l.b16 %v1044
    %v2674 = vunpack.c.h.b16 %v1044
    %v2675 = vunpack.c.l.b16 %v1045
    %v2676 = vunpack.c.h.b16 %v1045
    %v2677 = vunpack.c.l.b16 %v1046
    %v2678 = vunpack.c.h.b16 %v1046
    %v2679 = vunpack.c.l.b16 %v1047
    %v2680 = vunpack.c.h.b16 %v1047
    %v2681 = vunpack.c.l.b16 %v1048
    %v2682 = vunpack.c.h.b16 %v1048
    %v2683 = vunpack.c.l.b16 %v1049
    %v2684 = vunpack.c.h.b16 %v1049
    %v2685 = vunpack.c.l.b16 %v1050
    %v2686 = vunpack.c.h.b16 %v1050
    %v2687 = vunpack.c.l.b16 %v1051
    %v2688 = vunpack.c.h.b16 %v1051
    %v2689 = vunpack.c.l.b16 %v1052
    %v2690 = vunpack.c.h.b16 %v1052
    %v2691 = vunpack.c.l.b16 %v1053
    %v2692 = vunpack.c.h.b16 %v1053
    %v2693 = vunpack.c.l.b16 %v1054
    %v2694 = vunpack.c.h.b16 %v1054
    %v2695 = vunpack.c.l.b16 %v1055
    %v2696 = vunpack.c.h.b16 %v1055
    %v2697 = vunpack.c.l.b16 %v1056
    %v2698 = vunpack.c.h.b16 %v1056
    %v2699 = vunpack.c.l.b16 %v1057
    %v2700 = vunpack.c.h.b16 %v1057
    %v2701 = vunpack.c.l.b16 %v1058
    %v2702 = vunpack.c.h.b16 %v1058
    %v2703 = vunpack.c.l.b16 %v1059
    %v2704 = vunpack.c.h.b16 %v1059
    %v2705 = vunpack.c.l.b16 %v1060
    %v2706 = vunpack.c.h.b16 %v1060
    %v2707 = vunpack.c.l.b16 %v1061
    %v2708 = vunpack.c.h.b16 %v1061
    %v2709 = vunpack.c.l.b16 %v1062
    %v2710 = vunpack.c.h.b16 %v1062
    %v2711 = vunpack.c.l.b16 %v1063
    %v2712 = vunpack.c.h.b16 %v1063
    %v2713 = vunpack.c.l.b16 %v1064
    %v2714 = vunpack.c.h.b16 %v1064
    %v2715 = vunpack.c.l.b16 %v1065
    %v2716 = vunpack.c.h.b16 %v1065
    %v2717 = vunpack.c.l.b16 %v1066
    %v2718 = vunpack.c.h.b16 %v1066
    %v2719 = vunpack.c.l.b16 %v1067
    %v2720 = vunpack.c.h.b16 %v1067
    %v2721 = vunpack.c.l.b16 %v1068
    %v2722 = vunpack.c.h.b16 %v1068
    %v2723 = vunpack.c.l.b16 %v1069
    %v2724 = vunpack.c.h.b16 %v1069
    %v2725 = vunpack.c.l.b16 %v1070
    %v2726 = vunpack.c.h.b16 %v1070
    %v2727 = vunpack.c.l.b16 %v1071
    %v2728 = vunpack.c.h.b16 %v1071
    %v2729 = vunpack.c.l.b16 %v1072
    %v2730 = vunpack.c.h.b16 %v1072
    %v2731 = vunpack.c.l.b16 %v1073
    %v2732 = vunpack.c.h.b16 %v1073
    %v2733 = vunpack.c.l.b16 %v1074
    %v2734 = vunpack.c.h.b16 %v1074
    %v2735 = vunpack.c.l.b16 %v1075
    %v2736 = vunpack.c.h.b16 %v1075
    %v2737 = vunpack.c.l.b16 %v1076
    %v2738 = vunpack.c.h.b16 %v1076
    %v2739 = vunpack.c.l.b16 %v1077
    %v2740 = vunpack.c.h.b16 %v1077
    %v2741 = vunpack.c.l.b16 %v1078
    %v2742 = vunpack.c.h.b16 %v1078
    %v2743 = vunpack.c.l.b16 %v1079
    %v2744 = vunpack.c.h.b16 %v1079
    %v2745 = vunpack.c.l.b16 %v1080
    %v2746 = vunpack.c.h.b16 %v1080
    %v2747 = vunpack.c.l.b16 %v1081
    %v2748 = vunpack.c.h.b16 %v1081
    %v2749 = vunpack.c.l.b16 %v1082
    %v2750 = vunpack.c.h.b16 %v1082
    %v2751 = vunpack.c.l.b16 %v1083
    %v2752 = vunpack.c.h.b16 %v1083
    %v2753 = vunpack.c.l.b16 %v1084
    %v2754 = vunpack.c.h.b16 %v1084
    %v2755 = vunpack.c.l.b16 %v1085
    %v2756 = vunpack.c.h.b16 %v1085
    %v2757 = vunpack.c.l.b16 %v1086
    %v2758 = vunpack.c.h.b16 %v1086
    %v2759 = vunpack.c.l.b16 %v1087
    %v2760 = vunpack.c.h.b16 %v1087
    %v2761 = vunpack.c.l.b16 %v1088
    %v2762 = vunpack.c.h.b16 %v1088
    %v2763 = vunpack.c.l.b16 %v1089
    %v2764 = vunpack.c.h.b16 %v1089
    %v2765 = vunpack.c.l.b16 %v1090
    %v2766 = vunpack.c.h.b16 %v1090
    %v2767 = vpack.c.b16 %v2513, %v2511
    %v2768 = vpack.c.b16 %v2514, %v2512
    %v2769 = vpack.c.b16 %v2517, %v2515
    %v2770 = vpack.c.b16 %v2518, %v2516
    %v2771 = vpack.c.b16 %v2521, %v2519
    %v2772 = vpack.c.b16 %v2522, %v2520
    %v2773 = vpack.c.b16 %v2525, %v2523
    %v2774 = vpack.c.b16 %v2526, %v2524
    %v2775 = vpack.c.b16 %v2529, %v2527
    %v2776 = vpack.c.b16 %v2530, %v2528
    %v2777 = vpack.c.b16 %v2533, %v2531
    %v2778 = vpack.c.b16 %v2534, %v2532
    %v2779 = vpack.c.b16 %v2537, %v2535
    %v2780 = vpack.c.b16 %v2538, %v2536
    %v2781 = vpack.c.b16 %v2541, %v2539
    %v2782 = vpack.c.b16 %v2542, %v2540
    %v2783 = vpack.c.b16 %v2545, %v2543
    %v2784 = vpack.c.b16 %v2546, %v2544
    %v2785 = vpack.c.b16 %v2549, %v2547
    %v2786 = vpack.c.b16 %v2550, %v2548
    %v2787 = vpack.c.b16 %v2553, %v2551
    %v2788 = vpack.c.b16 %v2554, %v2552
    %v2789 = vpack.c.b16 %v2557, %v2555
    %v2790 = vpack.c.b16 %v2558, %v2556
    %v2791 = vpack.c.b16 %v2561, %v2559
    %v2792 = vpack.c.b16 %v2562, %v2560
    %v2793 = vpack.c.b16 %v2565, %v2563
    %v2794 = vpack.c.b16 %v2566, %v2564
    %v2795 = vpack.c.b16 %v2569, %v2567
    %v2796 = vpack.c.b16 %v2570, %v2568
    %v2797 = vpack.c.b16 %v2573, %v2571
    %v2798 = vpack.c.b16 %v2574, %v2572
    %v2799 = vpack.c.b16 %v2577, %v2575
    %v2800 = vpack.c.b16 %v2578, %v2576
    %v2801 = vpack.c.b16 %v2581, %v2579
    %v2802 = vpack.c.b16 %v2582, %v2580
    %v2803 = vpack.c.b16 %v2585, %v2583
    %v2804 = vpack.c.b16 %v2586, %v2584
    %v2805 = vpack.c.b16 %v2589, %v2587
    %v2806 = vpack.c.b16 %v2590, %v2588
    %v2807 = vpack.c.b16 %v2593, %v2591
    %v2808 = vpack.c.b16 %v2594, %v2592
    %v2809 = vpack.c.b16 %v2597, %v2595
    %v2810 = vpack.c.b16 %v2598, %v2596
    %v2811 = vpack.c.b16 %v2601, %v2599
    %v2812 = vpack.c.b16 %v2602, %v2600
    %v2813 = vpack.c.b16 %v2605, %v2603
    %v2814 = vpack.c.b16 %v2606, %v2604
    %v2815 = vpack.c.b16 %v2609, %v2607
    %v2816 = vpack.c.b16 %v2610, %v2608
    %v2817 = vpack.c.b16 %v2613, %v2611
    %v2818 = vpack.c.b16 %v2614, %v2612
    %v2819 = vpack.c.b16 %v2617, %v2615
    %v2820 = vpack.c.b16 %v2618, %v2616
    %v2821 = vpack.c.b16 %v2621, %v2619
    %v2822 = vpack.c.b16 %v2622, %v2620
    %v2823 = vpack.c.b16 %v2625, %v2623
    %v2824 = vpack.c.b16 %v2626, %v2624
    %v2825 = vpack.c.b16 %v2629, %v2627
    %v2826 = vpack.c.b16 %v2630, %v2628
    %v2827 = vpack.c.b16 %v2633, %v2631
    %v2828 = vpack.c.b16 %v2634, %v2632
    %v2829 = vpack.c.b16 %v2637, %v2635
    %v2830 = vpack.c.b16 %v2638, %v2636
    %v2831 = vpack.c.b16 %v2641, %v2639
    %v2832 = vpack.c.b16 %v2642, %v2640
    %v2833 = vpack.c.b16 %v2645, %v2643
    %v2834 = vpack.c.b16 %v2646, %v2644
    %v2835 = vpack.c.b16 %v2649, %v2647
    %v2836 = vpack.c.b16 %v2650, %v2648
    %v2837 = vpack.c.b16 %v2653, %v2651
    %v2838 = vpack.c.b16 %v2654, %v2652
    %v2839 = vpack.c.b16 %v2657, %v2655
    %v2840 = vpack.c.b16 %v2658, %v2656
    %v2841 = vpack.c.b16 %v2661, %v2659
    %v2842 = vpack.c.b16 %v2662, %v2660
    %v2843 = vpack.c.b16 %v2665, %v2663
    %v2844 = vpack.c.b16 %v2666, %v2664
    %v2845 = vpack.c.b16 %v2669, %v2667
    %v2846 = vpack.c.b16 %v2670, %v2668
    %v2847 = vpack.c.b16 %v2673, %v2671
    %v2848 = vpack.c.b16 %v2674, %v2672
    %v2849 = vpack.c.b16 %v2677, %v2675
    %v2850 = vpack.c.b16 %v2678, %v2676
    %v2851 = vpack.c.b16 %v2681, %v2679
    %v2852 = vpack.c.b16 %v2682, %v2680
    %v2853 = vpack.c.b16 %v2685, %v2683
    %v2854 = vpack.c.b16 %v2686, %v2684
    %v2855 = vpack.c.b16 %v2689, %v2687
    %v2856 = vpack.c.b16 %v2690, %v2688
    %v2857 = vpack.c.b16 %v2693, %v2691
    %v2858 = vpack.c.b16 %v2694, %v2692
    %v2859 = vpack.c.b16 %v2697, %v2695
    %v2860 = vpack.c.b16 %v2698, %v2696
    %v2861 = vpack.c.b16 %v2701, %v2699
    %v2862 = vpack.c.b16 %v2702, %v2700
    %v2863 = vpack.c.b16 %v2705, %v2703
    %v2864 = vpack.c.b16 %v2706, %v2704
    %v2865 = vpack.c.b16 %v2709, %v2707
    %v2866 = vpack.c.b16 %v2710, %v2708
    %v2867 = vpack.c.b16 %v2713, %v2711
    %v2868 = vpack.c.b16 %v2714, %v2712
    %v2869 = vpack.c.b16 %v2717, %v2715
    %v2870 = vpack.c.b16 %v2718, %v2716
    %v2871 = vpack.c.b16 %v2721, %v2719
    %v2872 = vpack.c.b16 %v2722, %v2720
    %v2873 = vpack.c.b16 %v2725, %v2723
    %v2874 = vpack.c.b16 %v2726, %v2724
    %v2875 = vpack.c.b16 %v2729, %v2727
    %v2876 = vpack.c.b16 %v2730, %v2728
    %v2877 = vpack.c.b16 %v2733, %v2731
    %v2878 = vpack.c.b16 %v2734, %v2732
    %v2879 = vpack.c.b16 %v2737, %v2735
    %v2880 = vpack.c.b16 %v2738, %v2736
    %v2881 = vpack.c.b16 %v2741, %v2739
    %v2882 = vpack.c.b16 %v2742, %v2740
    %v2883 = vpack.c.b16 %v2745, %v2743
    %v2884 = vpack.c.b16 %v2746, %v2744
    %v2885 = vpack.c.b16 %v2749, %v2747
    %v2886 = vpack.c.b16 %v2750, %v2748
    %v2887 = vpack.c.b16 %v2753, %v2751
    %v2888 = vpack.c.b16 %v2754, %v2752
    %v2889 = vpack.c.b16 %v2757, %v2755
    %v2890 = vpack.c.b16 %v2758, %v2756
    %v2891 = vpack.c.b16 %v2761, %v2759
    %v2892 = vpack.c.b16 %v2762, %v2760
    %v2893 = vpack.c.b16 %v2765, %v2763
    %v2894 = vpack.c.b16 %v2766, %v2764
    %3023 = vmatprep.subr.bf16.mxu0 %v2768
    %3024 = vmatpush1.bf16.msra.mxu0 %v2767
    %3025 = vmatprep.subr.bf16.mxu0 %v2770
    %3026 = vmatpush1.bf16.msra.mxu0 %v2769
    %3027 = vmatprep.subr.bf16.mxu0 %v2772
    %3028 = vmatpush1.bf16.msra.mxu0 %v2771
    %3029 = vmatprep.subr.bf16.mxu0 %v2774
    %3030 = vmatpush1.bf16.msra.mxu0 %v2773
    %3031 = vmatprep.subr.bf16.mxu0 %v2776
    %3032 = vmatpush1.bf16.msra.mxu0 %v2775
    %3033 = vmatprep.subr.bf16.mxu0 %v2778
    %3034 = vmatpush1.bf16.msra.mxu0 %v2777
    %3035 = vmatprep.subr.bf16.mxu0 %v2780
    %3036 = vmatpush1.bf16.msra.mxu0 %v2779
    %3037 = vmatprep.subr.bf16.mxu0 %v2782
    %3038 = vmatpush1.bf16.msra.mxu0 %v2781
    %3039 = vmatprep.subr.bf16.mxu0 %v2784
    %3040 = vmatpush1.bf16.msra.mxu0 %v2783
    %3041 = vmatprep.subr.bf16.mxu0 %v2786
    %3042 = vmatpush1.bf16.msra.mxu0 %v2785
    %3043 = vmatprep.subr.bf16.mxu0 %v2788
    %3044 = vmatpush1.bf16.msra.mxu0 %v2787
    %3045 = vmatprep.subr.bf16.mxu0 %v2790
    %3046 = vmatpush1.bf16.msra.mxu0 %v2789
    %3047 = vmatprep.subr.bf16.mxu0 %v2792
    %3048 = vmatpush1.bf16.msra.mxu0 %v2791
    %3049 = vmatprep.subr.bf16.mxu0 %v2794
    %3050 = vmatpush1.bf16.msra.mxu0 %v2793
    %3051 = vmatprep.subr.bf16.mxu0 %v2796
    %3052 = vmatpush1.bf16.msra.mxu0 %v2795
    %3053 = vmatprep.subr.bf16.mxu0 %v2798
    %3054 = vmatpush1.bf16.msra.mxu0 %v2797
    %3055 = vmatprep.mubr.bf16.mxu0 %v1872
    %3056 = vmatmul.mubr.bf16.gmra.mrb[0].mxu0 %v1871
    %v3057 = vpop.f32.mrb[0].mxu0
    %v3058 = vadd.f32 %v1096, %v3057
    %v3059 = vpop.f32.mrb[0].mxu0
    %v3060 = vadd.f32 %v1100, %v3059
    %v3061 = vpop.f32.mrb[0].mxu0
    %v3062 = vadd.f32 %v1096, %v3061
    %v3063 = vpop.f32.mrb[0].mxu0
    %v3064 = vadd.f32 %v1100, %v3063
    %3065 = vmatprep.mubr.bf16.mxu0 %v1880
    %3066 = vmatmul.mubr.bf16.gmra.mrb[0].mxu0 %v1879
    %v3067 = vpop.f32.mrb[0].mxu0
    %v3068 = vadd.f32 %v1096, %v3067
    %v3069 = vpop.f32.mrb[0].mxu0
    %v3070 = vadd.f32 %v1100, %v3069
    %v3071 = vpop.f32.mrb[0].mxu0
    %v3072 = vadd.f32 %v1096, %v3071
    %v3073 = vpop.f32.mrb[0].mxu0
    %v3074 = vadd.f32 %v1100, %v3073
    %3075 = vmatprep.mubr.bf16.mxu0 %v1888
    %3076 = vmatmul.mubr.bf16.gmra.mrb[0].mxu0 %v1887
    %v3077 = vpop.f32.mrb[0].mxu0
    %v3078 = vadd.f32 %v1096, %v3077
    %v3079 = vpop.f32.mrb[0].mxu0
    %v3080 = vadd.f32 %v1100, %v3079
    %v3081 = vpop.f32.mrb[0].mxu0
    %v3082 = vadd.f32 %v1096, %v3081
    %v3083 = vpop.f32.mrb[0].mxu0
    %v3084 = vadd.f32 %v1100, %v3083
    %3085 = vmatprep.mubr.bf16.mxu0 %v1896
    %3086 = vmatmul.mubr.bf16.gmra.mrb[0].mxu0 %v1895
    %v3087 = vpop.f32.mrb[0].mxu0
    %v3088 = vadd.f32 %v1096, %v3087
    %v3089 = vpop.f32.mrb[0].mxu0
    %v3090 = vadd.f32 %v1100, %v3089
    %v3091 = vpop.f32.mrb[0].mxu0
    %v3092 = vadd.f32 %v1096, %v3091
    %v3093 = vpop.f32.mrb[0].mxu0
    %v3094 = vadd.f32 %v1100, %v3093
    %3095 = vmatprep.mubr.bf16.mxu0 %v1904
    %3096 = vmatmul.mubr.bf16.gmra.mrb[0].mxu0 %v1903
    %v3097 = vpop.f32.mrb[0].mxu0
    %v3098 = vadd.f32 %v1096, %v3097
    %v3099 = vpop.f32.mrb[0].mxu0
    %v3100 = vadd.f32 %v1100, %v3099
    %v3101 = vpop.f32.mrb[0].mxu0
    %v3102 = vadd.f32 %v1096, %v3101
    %v3103 = vpop.f32.mrb[0].mxu0
    %v3104 = vadd.f32 %v1100, %v3103
    %3105 = vmatprep.mubr.bf16.mxu0 %v1912
    %3106 = vmatmul.mubr.bf16.gmra.mrb[0].mxu0 %v1911
    %v3107 = vpop.f32.mrb[0].mxu0
    %v3108 = vadd.f32 %v1096, %v3107
    %v3109 = vpop.f32.mrb[0].mxu0
    %v3110 = vadd.f32 %v1100, %v3109
    %v3111 = vpop.f32.mrb[0].mxu0
    %v3112 = vadd.f32 %v1096, %v3111
    %v3113 = vpop.f32.mrb[0].mxu0
    %v3114 = vadd.f32 %v1100, %v3113
    %3115 = vmatprep.mubr.bf16.mxu0 %v1920
    %3116 = vmatmul.mubr.bf16.gmra.mrb[0].mxu0 %v1919
    %v3117 = vpop.f32.mrb[0].mxu0
    %v3118 = vadd.f32 %v1096, %v3117
    %v3119 = vpop.f32.mrb[0].mxu0
    %v3120 = vadd.f32 %v1100, %v3119
    %v3121 = vpop.f32.mrb[0].mxu0
    %v3122 = vadd.f32 %v1096, %v3121
    %v3123 = vpop.f32.mrb[0].mxu0
    %v3124 = vadd.f32 %v1100, %v3123
    %3125 = vmatprep.mubr.bf16.mxu0 %v1928
    %3126 = vmatmul.mubr.bf16.gmra.mrb[0].mxu0 %v1927
    %v3127 = vpop.f32.mrb[0].mxu0
    %v3128 = vadd.f32 %v1096, %v3127
    %v3129 = vpop.f32.mrb[0].mxu0
    %v3130 = vadd.f32 %v1100, %v3129
    %v3131 = vpop.f32.mrb[0].mxu0
    %v3132 = vadd.f32 %v1096, %v3131
    %v3133 = vpop.f32.mrb[0].mxu0
    %v3134 = vadd.f32 %v1100, %v3133
    %3135 = vmatprep.mubr.bf16.mxu0 %v1936
    %3136 = vmatmul.mubr.bf16.gmra.mrb[0].mxu0 %v1935
    %v3137 = vpop.f32.mrb[0].mxu0
    %v3138 = vadd.f32 %v1096, %v3137
    %v3139 = vpop.f32.mrb[0].mxu0
    %v3140 = vadd.f32 %v1100, %v3139
    %v3141 = vpop.f32.mrb[0].mxu0
    %v3142 = vadd.f32 %v1096, %v3141
    %v3143 = vpop.f32.mrb[0].mxu0
    %v3144 = vadd.f32 %v1100, %v3143
    %3145 = vmatprep.mubr.bf16.mxu0 %v1944
    %3146 = vmatmul.mubr.bf16.gmra.mrb[0].mxu0 %v1943
    %v3147 = vpop.f32.mrb[0].mxu0
    %v3148 = vadd.f32 %v1096, %v3147
    %v3149 = vpop.f32.mrb[0].mxu0
    %v3150 = vadd.f32 %v1100, %v3149
    %v3151 = vpop.f32.mrb[0].mxu0
    %v3152 = vadd.f32 %v1096, %v3151
    %v3153 = vpop.f32.mrb[0].mxu0
    %v3154 = vadd.f32 %v1100, %v3153
    %3155 = vmatprep.mubr.bf16.mxu0 %v1952
    %3156 = vmatmul.mubr.bf16.gmra.mrb[0].mxu0 %v1951
    %v3157 = vpop.f32.mrb[0].mxu0
    %v3158 = vadd.f32 %v1096, %v3157
    %v3159 = vpop.f32.mrb[0].mxu0
    %v3160 = vadd.f32 %v1100, %v3159
    %v3161 = vpop.f32.mrb[0].mxu0
    %v3162 = vadd.f32 %v1096, %v3161
    %v3163 = vpop.f32.mrb[0].mxu0
    %v3164 = vadd.f32 %v1100, %v3163
    %3165 = vmatprep.mubr.bf16.mxu0 %v1960
    %3166 = vmatmul.mubr.bf16.gmra.mrb[0].mxu0 %v1959
    %v3167 = vpop.f32.mrb[0].mxu0
    %v3168 = vadd.f32 %v1096, %v3167
    %v3169 = vpop.f32.mrb[0].mxu0
    %v3170 = vadd.f32 %v1100, %v3169
    %v3171 = vpop.f32.mrb[0].mxu0
    %v3172 = vadd.f32 %v1096, %v3171
    %v3173 = vpop.f32.mrb[0].mxu0
    %v3174 = vadd.f32 %v1100, %v3173
    %3175 = vmatprep.mubr.bf16.mxu0 %v1968
    %3176 = vmatmul.mubr.bf16.gmra.mrb[0].mxu0 %v1967
    %v3177 = vpop.f32.mrb[0].mxu0
    %v3178 = vadd.f32 %v1096, %v3177
    %v3179 = vpop.f32.mrb[0].mxu0
    %v3180 = vadd.f32 %v1100, %v3179
    %v3181 = vpop.f32.mrb[0].mxu0
    %v3182 = vadd.f32 %v1096, %v3181
    %v3183 = vpop.f32.mrb[0].mxu0
    %v3184 = vadd.f32 %v1100, %v3183
    %3185 = vmatprep.mubr.bf16.mxu0 %v1976
    %3186 = vmatmul.mubr.bf16.gmra.mrb[0].mxu0 %v1975
    %v3187 = vpop.f32.mrb[0].mxu0
    %v3188 = vadd.f32 %v1096, %v3187
    %v3189 = vpop.f32.mrb[0].mxu0
    %v3190 = vadd.f32 %v1100, %v3189
    %v3191 = vpop.f32.mrb[0].mxu0
    %v3192 = vadd.f32 %v1096, %v3191
    %v3193 = vpop.f32.mrb[0].mxu0
    %v3194 = vadd.f32 %v1100, %v3193
    %3195 = vmatprep.mubr.bf16.mxu0 %v1984
    %3196 = vmatmul.mubr.bf16.gmra.mrb[0].mxu0 %v1983
    %v3197 = vpop.f32.mrb[0].mxu0
    %v3198 = vadd.f32 %v1096, %v3197
    %v3199 = vpop.f32.mrb[0].mxu0
    %v3200 = vadd.f32 %v1100, %v3199
    %v3201 = vpop.f32.mrb[0].mxu0
    %v3202 = vadd.f32 %v1096, %v3201
    %v3203 = vpop.f32.mrb[0].mxu0
    %v3204 = vadd.f32 %v1100, %v3203
    %3205 = vmatprep.mubr.bf16.mxu0 %v1992
    %3206 = vmatmul.mubr.bf16.gmra.mrb[0].mxu0 %v1991
    %v3207 = vpop.f32.mrb[0].mxu0
    %v3208 = vadd.f32 %v1096, %v3207
    %v3209 = vpop.f32.mrb[0].mxu0
    %v3210 = vadd.f32 %v1100, %v3209
    %v3211 = vpop.f32.mrb[0].mxu0
    %v3212 = vadd.f32 %v1096, %v3211
    %v3213 = vpop.f32.mrb[0].mxu0
    %v3214 = vadd.f32 %v1100, %v3213
    %3215 = vmatprep.mubr.bf16.mxu0 %v2000
    %3216 = vmatmul.mubr.bf16.gmra.mrb[0].mxu0 %v1999
    %v3217 = vpop.f32.mrb[0].mxu0
    %v3218 = vadd.f32 %v1096, %v3217
    %v3219 = vpop.f32.mrb[0].mxu0
    %v3220 = vadd.f32 %v1100, %v3219
    %v3221 = vpop.f32.mrb[0].mxu0
    %v3222 = vadd.f32 %v1096, %v3221
    %v3223 = vpop.f32.mrb[0].mxu0
    %v3224 = vadd.f32 %v1100, %v3223
    %3225 = vmatprep.mubr.bf16.mxu0 %v2008
    %3226 = vmatmul.mubr.bf16.gmra.mrb[0].mxu0 %v2007
    %v3227 = vpop.f32.mrb[0].mxu0
    %v3228 = vadd.f32 %v1096, %v3227
    %v3229 = vpop.f32.mrb[0].mxu0
    %v3230 = vadd.f32 %v1100, %v3229
    %v3231 = vpop.f32.mrb[0].mxu0
    %v3232 = vadd.f32 %v1096, %v3231
    %v3233 = vpop.f32.mrb[0].mxu0
    %v3234 = vadd.f32 %v1100, %v3233
    %3235 = vmatprep.mubr.bf16.mxu0 %v2016
    %3236 = vmatmul.mubr.bf16.gmra.mrb[0].mxu0 %v2015
    %v3237 = vpop.f32.mrb[0].mxu0
    %v3238 = vadd.f32 %v1096, %v3237
    %v3239 = vpop.f32.mrb[0].mxu0
    %v3240 = vadd.f32 %v1100, %v3239
    %v3241 = vpop.f32.mrb[0].mxu0
    %v3242 = vadd.f32 %v1096, %v3241
    %v3243 = vpop.f32.mrb[0].mxu0
    %v3244 = vadd.f32 %v1100, %v3243
    %3245 = vmatprep.mubr.bf16.mxu0 %v2024
    %3246 = vmatmul.mubr.bf16.gmra.mrb[0].mxu0 %v2023
    %v3247 = vpop.f32.mrb[0].mxu0
    %v3248 = vadd.f32 %v1096, %v3247
    %v3249 = vpop.f32.mrb[0].mxu0
    %v3250 = vadd.f32 %v1100, %v3249
    %v3251 = vpop.f32.mrb[0].mxu0
    %v3252 = vadd.f32 %v1096, %v3251
    %v3253 = vpop.f32.mrb[0].mxu0
    %v3254 = vadd.f32 %v1100, %v3253
    %3255 = vmatprep.mubr.bf16.mxu0 %v2032
    %3256 = vmatmul.mubr.bf16.gmra.mrb[0].mxu0 %v2031
    %v3257 = vpop.f32.mrb[0].mxu0
    %v3258 = vadd.f32 %v1096, %v3257
    %v3259 = vpop.f32.mrb[0].mxu0
    %v3260 = vadd.f32 %v1100, %v3259
    %v3261 = vpop.f32.mrb[0].mxu0
    %v3262 = vadd.f32 %v1096, %v3261
    %v3263 = vpop.f32.mrb[0].mxu0
    %v3264 = vadd.f32 %v1100, %v3263
    %3265 = vmatprep.mubr.bf16.mxu0 %v2040
    %3266 = vmatmul.mubr.bf16.gmra.mrb[0].mxu0 %v2039
    %v3267 = vpop.f32.mrb[0].mxu0
    %v3268 = vadd.f32 %v1096, %v3267
    %v3269 = vpop.f32.mrb[0].mxu0
    %v3270 = vadd.f32 %v1100, %v3269
    %v3271 = vpop.f32.mrb[0].mxu0
    %v3272 = vadd.f32 %v1096, %v3271
    %v3273 = vpop.f32.mrb[0].mxu0
    %v3274 = vadd.f32 %v1100, %v3273
    %3275 = vmatprep.mubr.bf16.mxu0 %v2048
    %3276 = vmatmul.mubr.bf16.gmra.mrb[0].mxu0 %v2047
    %v3277 = vpop.f32.mrb[0].mxu0
    %v3278 = vadd.f32 %v1096, %v3277
    %v3279 = vpop.f32.mrb[0].mxu0
    %v3280 = vadd.f32 %v1100, %v3279
    %v3281 = vpop.f32.mrb[0].mxu0
    %v3282 = vadd.f32 %v1096, %v3281
    %v3283 = vpop.f32.mrb[0].mxu0
    %v3284 = vadd.f32 %v1100, %v3283
    %3285 = vmatprep.mubr.bf16.mxu0 %v2056
    %3286 = vmatmul.mubr.bf16.gmra.mrb[0].mxu0 %v2055
    %v3287 = vpop.f32.mrb[0].mxu0
    %v3288 = vadd.f32 %v1096, %v3287
    %v3289 = vpop.f32.mrb[0].mxu0
    %v3290 = vadd.f32 %v1100, %v3289
    %v3291 = vpop.f32.mrb[0].mxu0
    %v3292 = vadd.f32 %v1096, %v3291
    %v3293 = vpop.f32.mrb[0].mxu0
    %v3294 = vadd.f32 %v1100, %v3293
    %3295 = vmatprep.mubr.bf16.mxu0 %v2064
    %3296 = vmatmul.mubr.bf16.gmra.mrb[0].mxu0 %v2063
    %v3297 = vpop.f32.mrb[0].mxu0
    %v3298 = vadd.f32 %v1096, %v3297
    %v3299 = vpop.f32.mrb[0].mxu0
    %v3300 = vadd.f32 %v1100, %v3299
    %v3301 = vpop.f32.mrb[0].mxu0
    %v3302 = vadd.f32 %v1096, %v3301
    %v3303 = vpop.f32.mrb[0].mxu0
    %v3304 = vadd.f32 %v1100, %v3303
    %3305 = vmatprep.mubr.bf16.mxu0 %v2072
    %3306 = vmatmul.mubr.bf16.gmra.mrb[0].mxu0 %v2071
    %v3307 = vpop.f32.mrb[0].mxu0
    %v3308 = vadd.f32 %v1096, %v3307
    %v3309 = vpop.f32.mrb[0].mxu0
    %v3310 = vadd.f32 %v1100, %v3309
    %v3311 = vpop.f32.mrb[0].mxu0
    %v3312 = vadd.f32 %v1096, %v3311
    %v3313 = vpop.f32.mrb[0].mxu0
    %v3314 = vadd.f32 %v1100, %v3313
    %3315 = vmatprep.mubr.bf16.mxu0 %v2080
    %3316 = vmatmul.mubr.bf16.gmra.mrb[0].mxu0 %v2079
    %v3317 = vpop.f32.mrb[0].mxu0
    %v3318 = vadd.f32 %v1096, %v3317
    %v3319 = vpop.f32.mrb[0].mxu0
    %v3320 = vadd.f32 %v1100, %v3319
    %v3321 = vpop.f32.mrb[0].mxu0
    %v3322 = vadd.f32 %v1096, %v3321
    %v3323 = vpop.f32.mrb[0].mxu0
    %v3324 = vadd.f32 %v1100, %v3323
    %3325 = vmatprep.mubr.bf16.mxu0 %v2088
    %3326 = vmatmul.mubr.bf16.gmra.mrb[0].mxu0 %v2087
    %v3327 = vpop.f32.mrb[0].mxu0
    %v3328 = vadd.f32 %v1096, %v3327
    %v3329 = vpop.f32.mrb[0].mxu0
    %v3330 = vadd.f32 %v1100, %v3329
    %v3331 = vpop.f32.mrb[0].mxu0
    %v3332 = vadd.f32 %v1096, %v3331
    %v3333 = vpop.f32.mrb[0].mxu0
    %v3334 = vadd.f32 %v1100, %v3333
    %3335 = vmatprep.mubr.bf16.mxu0 %v2096
    %3336 = vmatmul.mubr.bf16.gmra.mrb[0].mxu0 %v2095
    %v3337 = vpop.f32.mrb[0].mxu0
    %v3338 = vadd.f32 %v1096, %v3337
    %v3339 = vpop.f32.mrb[0].mxu0
    %v3340 = vadd.f32 %v1100, %v3339
    %v3341 = vpop.f32.mrb[0].mxu0
    %v3342 = vadd.f32 %v1096, %v3341
    %v3343 = vpop.f32.mrb[0].mxu0
    %v3344 = vadd.f32 %v1100, %v3343
    %3345 = vmatprep.mubr.bf16.mxu0 %v2104
    %3346 = vmatmul.mubr.bf16.gmra.mrb[0].mxu0 %v2103
    %v3347 = vpop.f32.mrb[0].mxu0
    %v3348 = vadd.f32 %v1096, %v3347
    %v3349 = vpop.f32.mrb[0].mxu0
    %v3350 = vadd.f32 %v1100, %v3349
    %v3351 = vpop.f32.mrb[0].mxu0
    %v3352 = vadd.f32 %v1096, %v3351
    %v3353 = vpop.f32.mrb[0].mxu0
    %v3354 = vadd.f32 %v1100, %v3353
    %3355 = vmatprep.mubr.bf16.mxu0 %v2112
    %3356 = vmatmul.mubr.bf16.gmra.mrb[0].mxu0 %v2111
    %v3357 = vpop.f32.mrb[0].mxu0
    %v3358 = vadd.f32 %v1096, %v3357
    %v3359 = vpop.f32.mrb[0].mxu0
    %v3360 = vadd.f32 %v1100, %v3359
    %v3361 = vpop.f32.mrb[0].mxu0
    %v3362 = vadd.f32 %v1096, %v3361
    %v3363 = vpop.f32.mrb[0].mxu0
    %v3364 = vadd.f32 %v1100, %v3363
    %3365 = vmatprep.mubr.bf16.mxu0 %v2120
    %3366 = vmatmul.mubr.bf16.gmra.mrb[0].mxu0 %v2119
    %v3367 = vpop.f32.mrb[0].mxu0
    %v3368 = vadd.f32 %v1096, %v3367
    %v3369 = vpop.f32.mrb[0].mxu0
    %v3370 = vadd.f32 %v1100, %v3369
    %v3371 = vpop.f32.mrb[0].mxu0
    %v3372 = vadd.f32 %v1096, %v3371
    %v3373 = vpop.f32.mrb[0].mxu0
    %v3374 = vadd.f32 %v1100, %v3373
    %3375 = vdwg.mxu0
    %3376 = vmatprep.subr.bf16.mxu0 %v2800
    %3377 = vmatpush1.bf16.msra.mxu0 %v2799
    %3378 = vmatprep.subr.bf16.mxu0 %v2802
    %3379 = vmatpush1.bf16.msra.mxu0 %v2801
    %3380 = vmatprep.subr.bf16.mxu0 %v2804
    %3381 = vmatpush1.bf16.msra.mxu0 %v2803
    %3382 = vmatprep.subr.bf16.mxu0 %v2806
    %3383 = vmatpush1.bf16.msra.mxu0 %v2805
    %3384 = vmatprep.subr.bf16.mxu0 %v2808
    %3385 = vmatpush1.bf16.msra.mxu0 %v2807
    %3386 = vmatprep.subr.bf16.mxu0 %v2810
    %3387 = vmatpush1.bf16.msra.mxu0 %v2809
    %3388 = vmatprep.subr.bf16.mxu0 %v2812
    %3389 = vmatpush1.bf16.msra.mxu0 %v2811
    %3390 = vmatprep.subr.bf16.mxu0 %v2814
    %3391 = vmatpush1.bf16.msra.mxu0 %v2813
    %3392 = vmatprep.subr.bf16.mxu0 %v2816
    %3393 = vmatpush1.bf16.msra.mxu0 %v2815
    %3394 = vmatprep.subr.bf16.mxu0 %v2818
    %3395 = vmatpush1.bf16.msra.mxu0 %v2817
    %3396 = vmatprep.subr.bf16.mxu0 %v2820
    %3397 = vmatpush1.bf16.msra.mxu0 %v2819
    %3398 = vmatprep.subr.bf16.mxu0 %v2822
    %3399 = vmatpush1.bf16.msra.mxu0 %v2821
    %3400 = vmatprep.subr.bf16.mxu0 %v2824
    %3401 = vmatpush1.bf16.msra.mxu0 %v2823
    %3402 = vmatprep.subr.bf16.mxu0 %v2826
    %3403 = vmatpush1.bf16.msra.mxu0 %v2825
    %3404 = vmatprep.subr.bf16.mxu0 %v2828
    %3405 = vmatpush1.bf16.msra.mxu0 %v2827
    %3406 = vmatprep.subr.bf16.mxu0 %v2830
    %3407 = vmatpush1.bf16.msra.mxu0 %v2829
    %3408 = vmatprep.mubr.bf16.mxu0 %v1874
    %3409 = vmatmul.mubr.bf16.gmra.mrb[0].mxu0 %v1873
    %v3410 = vpop.f32.mrb[0].mxu0
    %v3411 = vadd.f32 %v3058, %v3410
    %v3412 = vpop.f32.mrb[0].mxu0
    %v3413 = vadd.f32 %v3060, %v3412
    %v3414 = vpop.f32.mrb[0].mxu0
    %v3415 = vadd.f32 %v3062, %v3414
    %v3416 = vpop.f32.mrb[0].mxu0
    %v3417 = vadd.f32 %v3064, %v3416
    %3418 = vmatprep.mubr.bf16.mxu0 %v1882
    %3419 = vmatmul.mubr.bf16.gmra.mrb[0].mxu0 %v1881
    %v3420 = vpop.f32.mrb[0].mxu0
    %v3421 = vadd.f32 %v3068, %v3420
    %v3422 = vpop.f32.mrb[0].mxu0
    %v3423 = vadd.f32 %v3070, %v3422
    %v3424 = vpop.f32.mrb[0].mxu0
    %v3425 = vadd.f32 %v3072, %v3424
    %v3426 = vpop.f32.mrb[0].mxu0
    %v3427 = vadd.f32 %v3074, %v3426
    %3428 = vmatprep.mubr.bf16.mxu0 %v1890
    %3429 = vmatmul.mubr.bf16.gmra.mrb[0].mxu0 %v1889
    %v3430 = vpop.f32.mrb[0].mxu0
    %v3431 = vadd.f32 %v3078, %v3430
    %v3432 = vpop.f32.mrb[0].mxu0
    %v3433 = vadd.f32 %v3080, %v3432
    %v3434 = vpop.f32.mrb[0].mxu0
    %v3435 = vadd.f32 %v3082, %v3434
    %v3436 = vpop.f32.mrb[0].mxu0
    %v3437 = vadd.f32 %v3084, %v3436
    %3438 = vmatprep.mubr.bf16.mxu0 %v1898
    %3439 = vmatmul.mubr.bf16.gmra.mrb[0].mxu0 %v1897
    %v3440 = vpop.f32.mrb[0].mxu0
    %v3441 = vadd.f32 %v3088, %v3440
    %v3442 = vpop.f32.mrb[0].mxu0
    %v3443 = vadd.f32 %v3090, %v3442
    %v3444 = vpop.f32.mrb[0].mxu0
    %v3445 = vadd.f32 %v3092, %v3444
    %v3446 = vpop.f32.mrb[0].mxu0
    %v3447 = vadd.f32 %v3094, %v3446
    %3448 = vmatprep.mubr.bf16.mxu0 %v1906
    %3449 = vmatmul.mubr.bf16.gmra.mrb[0].mxu0 %v1905
    %v3450 = vpop.f32.mrb[0].mxu0
    %v3451 = vadd.f32 %v3098, %v3450
    %v3452 = vpop.f32.mrb[0].mxu0
    %v3453 = vadd.f32 %v3100, %v3452
    %v3454 = vpop.f32.mrb[0].mxu0
    %v3455 = vadd.f32 %v3102, %v3454
    %v3456 = vpop.f32.mrb[0].mxu0
    %v3457 = vadd.f32 %v3104, %v3456
    %3458 = vmatprep.mubr.bf16.mxu0 %v1914
    %3459 = vmatmul.mubr.bf16.gmra.mrb[0].mxu0 %v1913
    %v3460 = vpop.f32.mrb[0].mxu0
    %v3461 = vadd.f32 %v3108, %v3460
    %v3462 = vpop.f32.mrb[0].mxu0
    %v3463 = vadd.f32 %v3110, %v3462
    %v3464 = vpop.f32.mrb[0].mxu0
    %v3465 = vadd.f32 %v3112, %v3464
    %v3466 = vpop.f32.mrb[0].mxu0
    %v3467 = vadd.f32 %v3114, %v3466
    %3468 = vmatprep.mubr.bf16.mxu0 %v1922
    %3469 = vmatmul.mubr.bf16.gmra.mrb[0].mxu0 %v1921
    %v3470 = vpop.f32.mrb[0].mxu0
    %v3471 = vadd.f32 %v3118, %v3470
    %v3472 = vpop.f32.mrb[0].mxu0
    %v3473 = vadd.f32 %v3120, %v3472
    %v3474 = vpop.f32.mrb[0].mxu0
    %v3475 = vadd.f32 %v3122, %v3474
    %v3476 = vpop.f32.mrb[0].mxu0
    %v3477 = vadd.f32 %v3124, %v3476
    %3478 = vmatprep.mubr.bf16.mxu0 %v1930
    %3479 = vmatmul.mubr.bf16.gmra.mrb[0].mxu0 %v1929
    %v3480 = vpop.f32.mrb[0].mxu0
    %v3481 = vadd.f32 %v3128, %v3480
    %v3482 = vpop.f32.mrb[0].mxu0
    %v3483 = vadd.f32 %v3130, %v3482
    %v3484 = vpop.f32.mrb[0].mxu0
    %v3485 = vadd.f32 %v3132, %v3484
    %v3486 = vpop.f32.mrb[0].mxu0
    %v3487 = vadd.f32 %v3134, %v3486
    %3488 = vmatprep.mubr.bf16.mxu0 %v1938
    %3489 = vmatmul.mubr.bf16.gmra.mrb[0].mxu0 %v1937
    %v3490 = vpop.f32.mrb[0].mxu0
    %v3491 = vadd.f32 %v3138, %v3490
    %v3492 = vpop.f32.mrb[0].mxu0
    %v3493 = vadd.f32 %v3140, %v3492
    %v3494 = vpop.f32.mrb[0].mxu0
    %v3495 = vadd.f32 %v3142, %v3494
    %v3496 = vpop.f32.mrb[0].mxu0
    %v3497 = vadd.f32 %v3144, %v3496
    %3498 = vmatprep.mubr.bf16.mxu0 %v1946
    %3499 = vmatmul.mubr.bf16.gmra.mrb[0].mxu0 %v1945
    %v3500 = vpop.f32.mrb[0].mxu0
    %v3501 = vadd.f32 %v3148, %v3500
    %v3502 = vpop.f32.mrb[0].mxu0
    %v3503 = vadd.f32 %v3150, %v3502
    %v3504 = vpop.f32.mrb[0].mxu0
    %v3505 = vadd.f32 %v3152, %v3504
    %v3506 = vpop.f32.mrb[0].mxu0
    %v3507 = vadd.f32 %v3154, %v3506
    %3508 = vmatprep.mubr.bf16.mxu0 %v1954
    %3509 = vmatmul.mubr.bf16.gmra.mrb[0].mxu0 %v1953
    %v3510 = vpop.f32.mrb[0].mxu0
    %v3511 = vadd.f32 %v3158, %v3510
    %v3512 = vpop.f32.mrb[0].mxu0
    %v3513 = vadd.f32 %v3160, %v3512
    %v3514 = vpop.f32.mrb[0].mxu0
    %v3515 = vadd.f32 %v3162, %v3514
    %v3516 = vpop.f32.mrb[0].mxu0
    %v3517 = vadd.f32 %v3164, %v3516
    %3518 = vmatprep.mubr.bf16.mxu0 %v1962
    %3519 = vmatmul.mubr.bf16.gmra.mrb[0].mxu0 %v1961
    %v3520 = vpop.f32.mrb[0].mxu0
    %v3521 = vadd.f32 %v3168, %v3520
    %v3522 = vpop.f32.mrb[0].mxu0
    %v3523 = vadd.f32 %v3170, %v3522
    %v3524 = vpop.f32.mrb[0].mxu0
    %v3525 = vadd.f32 %v3172, %v3524
    %v3526 = vpop.f32.mrb[0].mxu0
    %v3527 = vadd.f32 %v3174, %v3526
    %3528 = vmatprep.mubr.bf16.mxu0 %v1970
    %3529 = vmatmul.mubr.bf16.gmra.mrb[0].mxu0 %v1969
    %v3530 = vpop.f32.mrb[0].mxu0
    %v3531 = vadd.f32 %v3178, %v3530
    %v3532 = vpop.f32.mrb[0].mxu0
    %v3533 = vadd.f32 %v3180, %v3532
    %v3534 = vpop.f32.mrb[0].mxu0
    %v3535 = vadd.f32 %v3182, %v3534
    %v3536 = vpop.f32.mrb[0].mxu0
    %v3537 = vadd.f32 %v3184, %v3536
    %3538 = vmatprep.mubr.bf16.mxu0 %v1978
    %3539 = vmatmul.mubr.bf16.gmra.mrb[0].mxu0 %v1977
    %v3540 = vpop.f32.mrb[0].mxu0
    %v3541 = vadd.f32 %v3188, %v3540
    %v3542 = vpop.f32.mrb[0].mxu0
    %v3543 = vadd.f32 %v3190, %v3542
    %v3544 = vpop.f32.mrb[0].mxu0
    %v3545 = vadd.f32 %v3192, %v3544
    %v3546 = vpop.f32.mrb[0].mxu0
    %v3547 = vadd.f32 %v3194, %v3546
    %3548 = vmatprep.mubr.bf16.mxu0 %v1986
    %3549 = vmatmul.mubr.bf16.gmra.mrb[0].mxu0 %v1985
    %v3550 = vpop.f32.mrb[0].mxu0
    %v3551 = vadd.f32 %v3198, %v3550
    %v3552 = vpop.f32.mrb[0].mxu0
    %v3553 = vadd.f32 %v3200, %v3552
    %v3554 = vpop.f32.mrb[0].mxu0
    %v3555 = vadd.f32 %v3202, %v3554
    %v3556 = vpop.f32.mrb[0].mxu0
    %v3557 = vadd.f32 %v3204, %v3556
    %3558 = vmatprep.mubr.bf16.mxu0 %v1994
    %3559 = vmatmul.mubr.bf16.gmra.mrb[0].mxu0 %v1993
    %v3560 = vpop.f32.mrb[0].mxu0
    %v3561 = vadd.f32 %v3208, %v3560
    %v3562 = vpop.f32.mrb[0].mxu0
    %v3563 = vadd.f32 %v3210, %v3562
    %v3564 = vpop.f32.mrb[0].mxu0
    %v3565 = vadd.f32 %v3212, %v3564
    %v3566 = vpop.f32.mrb[0].mxu0
    %v3567 = vadd.f32 %v3214, %v3566
    %3568 = vmatprep.mubr.bf16.mxu0 %v2002
    %3569 = vmatmul.mubr.bf16.gmra.mrb[0].mxu0 %v2001
    %v3570 = vpop.f32.mrb[0].mxu0
    %v3571 = vadd.f32 %v3218, %v3570
    %v3572 = vpop.f32.mrb[0].mxu0
    %v3573 = vadd.f32 %v3220, %v3572
    %v3574 = vpop.f32.mrb[0].mxu0
    %v3575 = vadd.f32 %v3222, %v3574
    %v3576 = vpop.f32.mrb[0].mxu0
    %v3577 = vadd.f32 %v3224, %v3576
    %3578 = vmatprep.mubr.bf16.mxu0 %v2010
    %3579 = vmatmul.mubr.bf16.gmra.mrb[0].mxu0 %v2009
    %v3580 = vpop.f32.mrb[0].mxu0
    %v3581 = vadd.f32 %v3228, %v3580
    %v3582 = vpop.f32.mrb[0].mxu0
    %v3583 = vadd.f32 %v3230, %v3582
    %v3584 = vpop.f32.mrb[0].mxu0
    %v3585 = vadd.f32 %v3232, %v3584
    %v3586 = vpop.f32.mrb[0].mxu0
    %v3587 = vadd.f32 %v3234, %v3586
    %3588 = vmatprep.mubr.bf16.mxu0 %v2018
    %3589 = vmatmul.mubr.bf16.gmra.mrb[0].mxu0 %v2017
    %v3590 = vpop.f32.mrb[0].mxu0
    %v3591 = vadd.f32 %v3238, %v3590
    %v3592 = vpop.f32.mrb[0].mxu0
    %v3593 = vadd.f32 %v3240, %v3592
    %v3594 = vpop.f32.mrb[0].mxu0
    %v3595 = vadd.f32 %v3242, %v3594
    %v3596 = vpop.f32.mrb[0].mxu0
    %v3597 = vadd.f32 %v3244, %v3596
    %3598 = vmatprep.mubr.bf16.mxu0 %v2026
    %3599 = vmatmul.mubr.bf16.gmra.mrb[0].mxu0 %v2025
    %v3600 = vpop.f32.mrb[0].mxu0
    %v3601 = vadd.f32 %v3248, %v3600
    %v3602 = vpop.f32.mrb[0].mxu0
    %v3603 = vadd.f32 %v3250, %v3602
    %v3604 = vpop.f32.mrb[0].mxu0
    %v3605 = vadd.f32 %v3252, %v3604
    %v3606 = vpop.f32.mrb[0].mxu0
    %v3607 = vadd.f32 %v3254, %v3606
    %3608 = vmatprep.mubr.bf16.mxu0 %v2034
    %3609 = vmatmul.mubr.bf16.gmra.mrb[0].mxu0 %v2033
    %v3610 = vpop.f32.mrb[0].mxu0
    %v3611 = vadd.f32 %v3258, %v3610
    %v3612 = vpop.f32.mrb[0].mxu0
    %v3613 = vadd.f32 %v3260, %v3612
    %v3614 = vpop.f32.mrb[0].mxu0
    %v3615 = vadd.f32 %v3262, %v3614
    %v3616 = vpop.f32.mrb[0].mxu0
    %v3617 = vadd.f32 %v3264, %v3616
    %3618 = vmatprep.mubr.bf16.mxu0 %v2042
    %3619 = vmatmul.mubr.bf16.gmra.mrb[0].mxu0 %v2041
    %v3620 = vpop.f32.mrb[0].mxu0
    %v3621 = vadd.f32 %v3268, %v3620
    %v3622 = vpop.f32.mrb[0].mxu0
    %v3623 = vadd.f32 %v3270, %v3622
    %v3624 = vpop.f32.mrb[0].mxu0
    %v3625 = vadd.f32 %v3272, %v3624
    %v3626 = vpop.f32.mrb[0].mxu0
    %v3627 = vadd.f32 %v3274, %v3626
    %3628 = vmatprep.mubr.bf16.mxu0 %v2050
    %3629 = vmatmul.mubr.bf16.gmra.mrb[0].mxu0 %v2049
    %v3630 = vpop.f32.mrb[0].mxu0
    %v3631 = vadd.f32 %v3278, %v3630
    %v3632 = vpop.f32.mrb[0].mxu0
    %v3633 = vadd.f32 %v3280, %v3632
    %v3634 = vpop.f32.mrb[0].mxu0
    %v3635 = vadd.f32 %v3282, %v3634
    %v3636 = vpop.f32.mrb[0].mxu0
    %v3637 = vadd.f32 %v3284, %v3636
    %3638 = vmatprep.mubr.bf16.mxu0 %v2058
    %3639 = vmatmul.mubr.bf16.gmra.mrb[0].mxu0 %v2057
    %v3640 = vpop.f32.mrb[0].mxu0
    %v3641 = vadd.f32 %v3288, %v3640
    %v3642 = vpop.f32.mrb[0].mxu0
    %v3643 = vadd.f32 %v3290, %v3642
    %v3644 = vpop.f32.mrb[0].mxu0
    %v3645 = vadd.f32 %v3292, %v3644
    %v3646 = vpop.f32.mrb[0].mxu0
    %v3647 = vadd.f32 %v3294, %v3646
    %3648 = vmatprep.mubr.bf16.mxu0 %v2066
    %3649 = vmatmul.mubr.bf16.gmra.mrb[0].mxu0 %v2065
    %v3650 = vpop.f32.mrb[0].mxu0
    %v3651 = vadd.f32 %v3298, %v3650
    %v3652 = vpop.f32.mrb[0].mxu0
    %v3653 = vadd.f32 %v3300, %v3652
    %v3654 = vpop.f32.mrb[0].mxu0
    %v3655 = vadd.f32 %v3302, %v3654
    %v3656 = vpop.f32.mrb[0].mxu0
    %v3657 = vadd.f32 %v3304, %v3656
    %3658 = vmatprep.mubr.bf16.mxu0 %v2074
    %3659 = vmatmul.mubr.bf16.gmra.mrb[0].mxu0 %v2073
    %v3660 = vpop.f32.mrb[0].mxu0
    %v3661 = vadd.f32 %v3308, %v3660
    %v3662 = vpop.f32.mrb[0].mxu0
    %v3663 = vadd.f32 %v3310, %v3662
    %v3664 = vpop.f32.mrb[0].mxu0
    %v3665 = vadd.f32 %v3312, %v3664
    %v3666 = vpop.f32.mrb[0].mxu0
    %v3667 = vadd.f32 %v3314, %v3666
    %3668 = vmatprep.mubr.bf16.mxu0 %v2082
    %3669 = vmatmul.mubr.bf16.gmra.mrb[0].mxu0 %v2081
    %v3670 = vpop.f32.mrb[0].mxu0
    %v3671 = vadd.f32 %v3318, %v3670
    %v3672 = vpop.f32.mrb[0].mxu0
    %v3673 = vadd.f32 %v3320, %v3672
    %v3674 = vpop.f32.mrb[0].mxu0
    %v3675 = vadd.f32 %v3322, %v3674
    %v3676 = vpop.f32.mrb[0].mxu0
    %v3677 = vadd.f32 %v3324, %v3676
    %3678 = vmatprep.mubr.bf16.mxu0 %v2090
    %3679 = vmatmul.mubr.bf16.gmra.mrb[0].mxu0 %v2089
    %v3680 = vpop.f32.mrb[0].mxu0
    %v3681 = vadd.f32 %v3328, %v3680
    %v3682 = vpop.f32.mrb[0].mxu0
    %v3683 = vadd.f32 %v3330, %v3682
    %v3684 = vpop.f32.mrb[0].mxu0
    %v3685 = vadd.f32 %v3332, %v3684
    %v3686 = vpop.f32.mrb[0].mxu0
    %v3687 = vadd.f32 %v3334, %v3686
    %3688 = vmatprep.mubr.bf16.mxu0 %v2098
    %3689 = vmatmul.mubr.bf16.gmra.mrb[0].mxu0 %v2097
    %v3690 = vpop.f32.mrb[0].mxu0
    %v3691 = vadd.f32 %v3338, %v3690
    %v3692 = vpop.f32.mrb[0].mxu0
    %v3693 = vadd.f32 %v3340, %v3692
    %v3694 = vpop.f32.mrb[0].mxu0
    %v3695 = vadd.f32 %v3342, %v3694
    %v3696 = vpop.f32.mrb[0].mxu0
    %v3697 = vadd.f32 %v3344, %v3696
    %3698 = vmatprep.mubr.bf16.mxu0 %v2106
    %3699 = vmatmul.mubr.bf16.gmra.mrb[0].mxu0 %v2105
    %v3700 = vpop.f32.mrb[0].mxu0
    %v3701 = vadd.f32 %v3348, %v3700
    %v3702 = vpop.f32.mrb[0].mxu0
    %v3703 = vadd.f32 %v3350, %v3702
    %v3704 = vpop.f32.mrb[0].mxu0
    %v3705 = vadd.f32 %v3352, %v3704
    %v3706 = vpop.f32.mrb[0].mxu0
    %v3707 = vadd.f32 %v3354, %v3706
    %3708 = vmatprep.mubr.bf16.mxu0 %v2114
    %3709 = vmatmul.mubr.bf16.gmra.mrb[0].mxu0 %v2113
    %v3710 = vpop.f32.mrb[0].mxu0
    %v3711 = vadd.f32 %v3358, %v3710
    %v3712 = vpop.f32.mrb[0].mxu0
    %v3713 = vadd.f32 %v3360, %v3712
    %v3714 = vpop.f32.mrb[0].mxu0
    %v3715 = vadd.f32 %v3362, %v3714
    %v3716 = vpop.f32.mrb[0].mxu0
    %v3717 = vadd.f32 %v3364, %v3716
    %3718 = vmatprep.mubr.bf16.mxu0 %v2122
    %3719 = vmatmul.mubr.bf16.gmra.mrb[0].mxu0 %v2121
    %v3720 = vpop.f32.mrb[0].mxu0
    %v3721 = vadd.f32 %v3368, %v3720
    %v3722 = vpop.f32.mrb[0].mxu0
    %v3723 = vadd.f32 %v3370, %v3722
    %v3724 = vpop.f32.mrb[0].mxu0
    %v3725 = vadd.f32 %v3372, %v3724
    %v3726 = vpop.f32.mrb[0].mxu0
    %v3727 = vadd.f32 %v3374, %v3726
    %3728 = vdwg.mxu0
    %3729 = vmatprep.subr.bf16.mxu0 %v2832
    %3730 = vmatpush1.bf16.msra.mxu0 %v2831
    %3731 = vmatprep.subr.bf16.mxu0 %v2834
    %3732 = vmatpush1.bf16.msra.mxu0 %v2833
    %3733 = vmatprep.subr.bf16.mxu0 %v2836
    %3734 = vmatpush1.bf16.msra.mxu0 %v2835
    %3735 = vmatprep.subr.bf16.mxu0 %v2838
    %3736 = vmatpush1.bf16.msra.mxu0 %v2837
    %3737 = vmatprep.subr.bf16.mxu0 %v2840
    %3738 = vmatpush1.bf16.msra.mxu0 %v2839
    %3739 = vmatprep.subr.bf16.mxu0 %v2842
    %3740 = vmatpush1.bf16.msra.mxu0 %v2841
    %3741 = vmatprep.subr.bf16.mxu0 %v2844
    %3742 = vmatpush1.bf16.msra.mxu0 %v2843
    %3743 = vmatprep.subr.bf16.mxu0 %v2846
    %3744 = vmatpush1.bf16.msra.mxu0 %v2845
    %3745 = vmatprep.subr.bf16.mxu0 %v2848
    %3746 = vmatpush1.bf16.msra.mxu0 %v2847
    %3747 = vmatprep.subr.bf16.mxu0 %v2850
    %3748 = vmatpush1.bf16.msra.mxu0 %v2849
    %3749 = vmatprep.subr.bf16.mxu0 %v2852
    %3750 = vmatpush1.bf16.msra.mxu0 %v2851
    %3751 = vmatprep.subr.bf16.mxu0 %v2854
    %3752 = vmatpush1.bf16.msra.mxu0 %v2853
    %3753 = vmatprep.subr.bf16.mxu0 %v2856
    %3754 = vmatpush1.bf16.msra.mxu0 %v2855
    %3755 = vmatprep.subr.bf16.mxu0 %v2858
    %3756 = vmatpush1.bf16.msra.mxu0 %v2857
    %3757 = vmatprep.subr.bf16.mxu0 %v2860
    %3758 = vmatpush1.bf16.msra.mxu0 %v2859
    %3759 = vmatprep.subr.bf16.mxu0 %v2862
    %3760 = vmatpush1.bf16.msra.mxu0 %v2861
    %3761 = vmatprep.mubr.bf16.mxu0 %v1876
    %3762 = vmatmul.mubr.bf16.gmra.mrb[0].mxu0 %v1875
    %v3763 = vpop.f32.mrb[0].mxu0
    %v3764 = vadd.f32 %v3411, %v3763
    %v3765 = vpop.f32.mrb[0].mxu0
    %v3766 = vadd.f32 %v3413, %v3765
    %v3767 = vpop.f32.mrb[0].mxu0
    %v3768 = vadd.f32 %v3415, %v3767
    %v3769 = vpop.f32.mrb[0].mxu0
    %v3770 = vadd.f32 %v3417, %v3769
    %3771 = vmatprep.mubr.bf16.mxu0 %v1884
    %3772 = vmatmul.mubr.bf16.gmra.mrb[0].mxu0 %v1883
    %v3773 = vpop.f32.mrb[0].mxu0
    %v3774 = vadd.f32 %v3421, %v3773
    %v3775 = vpop.f32.mrb[0].mxu0
    %v3776 = vadd.f32 %v3423, %v3775
    %v3777 = vpop.f32.mrb[0].mxu0
    %v3778 = vadd.f32 %v3425, %v3777
    %v3779 = vpop.f32.mrb[0].mxu0
    %v3780 = vadd.f32 %v3427, %v3779
    %3781 = vmatprep.mubr.bf16.mxu0 %v1892
    %3782 = vmatmul.mubr.bf16.gmra.mrb[0].mxu0 %v1891
    %v3783 = vpop.f32.mrb[0].mxu0
    %v3784 = vadd.f32 %v3431, %v3783
    %v3785 = vpop.f32.mrb[0].mxu0
    %v3786 = vadd.f32 %v3433, %v3785
    %v3787 = vpop.f32.mrb[0].mxu0
    %v3788 = vadd.f32 %v3435, %v3787
    %v3789 = vpop.f32.mrb[0].mxu0
    %v3790 = vadd.f32 %v3437, %v3789
    %3791 = vmatprep.mubr.bf16.mxu0 %v1900
    %3792 = vmatmul.mubr.bf16.gmra.mrb[0].mxu0 %v1899
    %v3793 = vpop.f32.mrb[0].mxu0
    %v3794 = vadd.f32 %v3441, %v3793
    %v3795 = vpop.f32.mrb[0].mxu0
    %v3796 = vadd.f32 %v3443, %v3795
    %v3797 = vpop.f32.mrb[0].mxu0
    %v3798 = vadd.f32 %v3445, %v3797
    %v3799 = vpop.f32.mrb[0].mxu0
    %v3800 = vadd.f32 %v3447, %v3799
    %3801 = vmatprep.mubr.bf16.mxu0 %v1908
    %3802 = vmatmul.mubr.bf16.gmra.mrb[0].mxu0 %v1907
    %v3803 = vpop.f32.mrb[0].mxu0
    %v3804 = vadd.f32 %v3451, %v3803
    %v3805 = vpop.f32.mrb[0].mxu0
    %v3806 = vadd.f32 %v3453, %v3805
    %v3807 = vpop.f32.mrb[0].mxu0
    %v3808 = vadd.f32 %v3455, %v3807
    %v3809 = vpop.f32.mrb[0].mxu0
    %v3810 = vadd.f32 %v3457, %v3809
    %3811 = vmatprep.mubr.bf16.mxu0 %v1916
    %3812 = vmatmul.mubr.bf16.gmra.mrb[0].mxu0 %v1915
    %v3813 = vpop.f32.mrb[0].mxu0
    %v3814 = vadd.f32 %v3461, %v3813
    %v3815 = vpop.f32.mrb[0].mxu0
    %v3816 = vadd.f32 %v3463, %v3815
    %v3817 = vpop.f32.mrb[0].mxu0
    %v3818 = vadd.f32 %v3465, %v3817
    %v3819 = vpop.f32.mrb[0].mxu0
    %v3820 = vadd.f32 %v3467, %v3819
    %3821 = vmatprep.mubr.bf16.mxu0 %v1924
    %3822 = vmatmul.mubr.bf16.gmra.mrb[0].mxu0 %v1923
    %v3823 = vpop.f32.mrb[0].mxu0
    %v3824 = vadd.f32 %v3471, %v3823
    %v3825 = vpop.f32.mrb[0].mxu0
    %v3826 = vadd.f32 %v3473, %v3825
    %v3827 = vpop.f32.mrb[0].mxu0
    %v3828 = vadd.f32 %v3475, %v3827
    %v3829 = vpop.f32.mrb[0].mxu0
    %v3830 = vadd.f32 %v3477, %v3829
    %3831 = vmatprep.mubr.bf16.mxu0 %v1932
    %3832 = vmatmul.mubr.bf16.gmra.mrb[0].mxu0 %v1931
    %v3833 = vpop.f32.mrb[0].mxu0
    %v3834 = vadd.f32 %v3481, %v3833
    %v3835 = vpop.f32.mrb[0].mxu0
    %v3836 = vadd.f32 %v3483, %v3835
    %v3837 = vpop.f32.mrb[0].mxu0
    %v3838 = vadd.f32 %v3485, %v3837
    %v3839 = vpop.f32.mrb[0].mxu0
    %v3840 = vadd.f32 %v3487, %v3839
    %3841 = vmatprep.mubr.bf16.mxu0 %v1940
    %3842 = vmatmul.mubr.bf16.gmra.mrb[0].mxu0 %v1939
    %v3843 = vpop.f32.mrb[0].mxu0
    %v3844 = vadd.f32 %v3491, %v3843
    %v3845 = vpop.f32.mrb[0].mxu0
    %v3846 = vadd.f32 %v3493, %v3845
    %v3847 = vpop.f32.mrb[0].mxu0
    %v3848 = vadd.f32 %v3495, %v3847
    %v3849 = vpop.f32.mrb[0].mxu0
    %v3850 = vadd.f32 %v3497, %v3849
    %3851 = vmatprep.mubr.bf16.mxu0 %v1948
    %3852 = vmatmul.mubr.bf16.gmra.mrb[0].mxu0 %v1947
    %v3853 = vpop.f32.mrb[0].mxu0
    %v3854 = vadd.f32 %v3501, %v3853
    %v3855 = vpop.f32.mrb[0].mxu0
    %v3856 = vadd.f32 %v3503, %v3855
    %v3857 = vpop.f32.mrb[0].mxu0
    %v3858 = vadd.f32 %v3505, %v3857
    %v3859 = vpop.f32.mrb[0].mxu0
    %v3860 = vadd.f32 %v3507, %v3859
    %3861 = vmatprep.mubr.bf16.mxu0 %v1956
    %3862 = vmatmul.mubr.bf16.gmra.mrb[0].mxu0 %v1955
    %v3863 = vpop.f32.mrb[0].mxu0
    %v3864 = vadd.f32 %v3511, %v3863
    %v3865 = vpop.f32.mrb[0].mxu0
    %v3866 = vadd.f32 %v3513, %v3865
    %v3867 = vpop.f32.mrb[0].mxu0
    %v3868 = vadd.f32 %v3515, %v3867
    %v3869 = vpop.f32.mrb[0].mxu0
    %v3870 = vadd.f32 %v3517, %v3869
    %3871 = vmatprep.mubr.bf16.mxu0 %v1964
    %3872 = vmatmul.mubr.bf16.gmra.mrb[0].mxu0 %v1963
    %v3873 = vpop.f32.mrb[0].mxu0
    %v3874 = vadd.f32 %v3521, %v3873
    %v3875 = vpop.f32.mrb[0].mxu0
    %v3876 = vadd.f32 %v3523, %v3875
    %v3877 = vpop.f32.mrb[0].mxu0
    %v3878 = vadd.f32 %v3525, %v3877
    %v3879 = vpop.f32.mrb[0].mxu0
    %v3880 = vadd.f32 %v3527, %v3879
    %3881 = vmatprep.mubr.bf16.mxu0 %v1972
    %3882 = vmatmul.mubr.bf16.gmra.mrb[0].mxu0 %v1971
    %v3883 = vpop.f32.mrb[0].mxu0
    %v3884 = vadd.f32 %v3531, %v3883
    %v3885 = vpop.f32.mrb[0].mxu0
    %v3886 = vadd.f32 %v3533, %v3885
    %v3887 = vpop.f32.mrb[0].mxu0
    %v3888 = vadd.f32 %v3535, %v3887
    %v3889 = vpop.f32.mrb[0].mxu0
    %v3890 = vadd.f32 %v3537, %v3889
    %3891 = vmatprep.mubr.bf16.mxu0 %v1980
    %3892 = vmatmul.mubr.bf16.gmra.mrb[0].mxu0 %v1979
    %v3893 = vpop.f32.mrb[0].mxu0
    %v3894 = vadd.f32 %v3541, %v3893
    %v3895 = vpop.f32.mrb[0].mxu0
    %v3896 = vadd.f32 %v3543, %v3895
    %v3897 = vpop.f32.mrb[0].mxu0
    %v3898 = vadd.f32 %v3545, %v3897
    %v3899 = vpop.f32.mrb[0].mxu0
    %v3900 = vadd.f32 %v3547, %v3899
    %3901 = vmatprep.mubr.bf16.mxu0 %v1988
    %3902 = vmatmul.mubr.bf16.gmra.mrb[0].mxu0 %v1987
    %v3903 = vpop.f32.mrb[0].mxu0
    %v3904 = vadd.f32 %v3551, %v3903
    %v3905 = vpop.f32.mrb[0].mxu0
    %v3906 = vadd.f32 %v3553, %v3905
    %v3907 = vpop.f32.mrb[0].mxu0
    %v3908 = vadd.f32 %v3555, %v3907
    %v3909 = vpop.f32.mrb[0].mxu0
    %v3910 = vadd.f32 %v3557, %v3909
    %3911 = vmatprep.mubr.bf16.mxu0 %v1996
    %3912 = vmatmul.mubr.bf16.gmra.mrb[0].mxu0 %v1995
    %v3913 = vpop.f32.mrb[0].mxu0
    %v3914 = vadd.f32 %v3561, %v3913
    %v3915 = vpop.f32.mrb[0].mxu0
    %v3916 = vadd.f32 %v3563, %v3915
    %v3917 = vpop.f32.mrb[0].mxu0
    %v3918 = vadd.f32 %v3565, %v3917
    %v3919 = vpop.f32.mrb[0].mxu0
    %v3920 = vadd.f32 %v3567, %v3919
    %3921 = vmatprep.mubr.bf16.mxu0 %v2004
    %3922 = vmatmul.mubr.bf16.gmra.mrb[0].mxu0 %v2003
    %v3923 = vpop.f32.mrb[0].mxu0
    %v3924 = vadd.f32 %v3571, %v3923
    %v3925 = vpop.f32.mrb[0].mxu0
    %v3926 = vadd.f32 %v3573, %v3925
    %v3927 = vpop.f32.mrb[0].mxu0
    %v3928 = vadd.f32 %v3575, %v3927
    %v3929 = vpop.f32.mrb[0].mxu0
    %v3930 = vadd.f32 %v3577, %v3929
    %3931 = vmatprep.mubr.bf16.mxu0 %v2012
    %3932 = vmatmul.mubr.bf16.gmra.mrb[0].mxu0 %v2011
    %v3933 = vpop.f32.mrb[0].mxu0
    %v3934 = vadd.f32 %v3581, %v3933
    %v3935 = vpop.f32.mrb[0].mxu0
    %v3936 = vadd.f32 %v3583, %v3935
    %v3937 = vpop.f32.mrb[0].mxu0
    %v3938 = vadd.f32 %v3585, %v3937
    %v3939 = vpop.f32.mrb[0].mxu0
    %v3940 = vadd.f32 %v3587, %v3939
    %3941 = vmatprep.mubr.bf16.mxu0 %v2020
    %3942 = vmatmul.mubr.bf16.gmra.mrb[0].mxu0 %v2019
    %v3943 = vpop.f32.mrb[0].mxu0
    %v3944 = vadd.f32 %v3591, %v3943
    %v3945 = vpop.f32.mrb[0].mxu0
    %v3946 = vadd.f32 %v3593, %v3945
    %v3947 = vpop.f32.mrb[0].mxu0
    %v3948 = vadd.f32 %v3595, %v3947
    %v3949 = vpop.f32.mrb[0].mxu0
    %v3950 = vadd.f32 %v3597, %v3949
    %3951 = vmatprep.mubr.bf16.mxu0 %v2028
    %3952 = vmatmul.mubr.bf16.gmra.mrb[0].mxu0 %v2027
    %v3953 = vpop.f32.mrb[0].mxu0
    %v3954 = vadd.f32 %v3601, %v3953
    %v3955 = vpop.f32.mrb[0].mxu0
    %v3956 = vadd.f32 %v3603, %v3955
    %v3957 = vpop.f32.mrb[0].mxu0
    %v3958 = vadd.f32 %v3605, %v3957
    %v3959 = vpop.f32.mrb[0].mxu0
    %v3960 = vadd.f32 %v3607, %v3959
    %3961 = vmatprep.mubr.bf16.mxu0 %v2036
    %3962 = vmatmul.mubr.bf16.gmra.mrb[0].mxu0 %v2035
    %v3963 = vpop.f32.mrb[0].mxu0
    %v3964 = vadd.f32 %v3611, %v3963
    %v3965 = vpop.f32.mrb[0].mxu0
    %v3966 = vadd.f32 %v3613, %v3965
    %v3967 = vpop.f32.mrb[0].mxu0
    %v3968 = vadd.f32 %v3615, %v3967
    %v3969 = vpop.f32.mrb[0].mxu0
    %v3970 = vadd.f32 %v3617, %v3969
    %3971 = vmatprep.mubr.bf16.mxu0 %v2044
    %3972 = vmatmul.mubr.bf16.gmra.mrb[0].mxu0 %v2043
    %v3973 = vpop.f32.mrb[0].mxu0
    %v3974 = vadd.f32 %v3621, %v3973
    %v3975 = vpop.f32.mrb[0].mxu0
    %v3976 = vadd.f32 %v3623, %v3975
    %v3977 = vpop.f32.mrb[0].mxu0
    %v3978 = vadd.f32 %v3625, %v3977
    %v3979 = vpop.f32.mrb[0].mxu0
    %v3980 = vadd.f32 %v3627, %v3979
    %3981 = vmatprep.mubr.bf16.mxu0 %v2052
    %3982 = vmatmul.mubr.bf16.gmra.mrb[0].mxu0 %v2051
    %v3983 = vpop.f32.mrb[0].mxu0
    %v3984 = vadd.f32 %v3631, %v3983
    %v3985 = vpop.f32.mrb[0].mxu0
    %v3986 = vadd.f32 %v3633, %v3985
    %v3987 = vpop.f32.mrb[0].mxu0
    %v3988 = vadd.f32 %v3635, %v3987
    %v3989 = vpop.f32.mrb[0].mxu0
    %v3990 = vadd.f32 %v3637, %v3989
    %3991 = vmatprep.mubr.bf16.mxu0 %v2060
    %3992 = vmatmul.mubr.bf16.gmra.mrb[0].mxu0 %v2059
    %v3993 = vpop.f32.mrb[0].mxu0
    %v3994 = vadd.f32 %v3641, %v3993
    %v3995 = vpop.f32.mrb[0].mxu0
    %v3996 = vadd.f32 %v3643, %v3995
    %v3997 = vpop.f32.mrb[0].mxu0
    %v3998 = vadd.f32 %v3645, %v3997
    %v3999 = vpop.f32.mrb[0].mxu0
    %v4000 = vadd.f32 %v3647, %v3999
    %4001 = vmatprep.mubr.bf16.mxu0 %v2068
    %4002 = vmatmul.mubr.bf16.gmra.mrb[0].mxu0 %v2067
    %v4003 = vpop.f32.mrb[0].mxu0
    %v4004 = vadd.f32 %v3651, %v4003
    %v4005 = vpop.f32.mrb[0].mxu0
    %v4006 = vadd.f32 %v3653, %v4005
    %v4007 = vpop.f32.mrb[0].mxu0
    %v4008 = vadd.f32 %v3655, %v4007
    %v4009 = vpop.f32.mrb[0].mxu0
    %v4010 = vadd.f32 %v3657, %v4009
    %4011 = vmatprep.mubr.bf16.mxu0 %v2076
    %4012 = vmatmul.mubr.bf16.gmra.mrb[0].mxu0 %v2075
    %v4013 = vpop.f32.mrb[0].mxu0
    %v4014 = vadd.f32 %v3661, %v4013
    %v4015 = vpop.f32.mrb[0].mxu0
    %v4016 = vadd.f32 %v3663, %v4015
    %v4017 = vpop.f32.mrb[0].mxu0
    %v4018 = vadd.f32 %v3665, %v4017
    %v4019 = vpop.f32.mrb[0].mxu0
    %v4020 = vadd.f32 %v3667, %v4019
    %4021 = vmatprep.mubr.bf16.mxu0 %v2084
    %4022 = vmatmul.mubr.bf16.gmra.mrb[0].mxu0 %v2083
    %v4023 = vpop.f32.mrb[0].mxu0
    %v4024 = vadd.f32 %v3671, %v4023
    %v4025 = vpop.f32.mrb[0].mxu0
    %v4026 = vadd.f32 %v3673, %v4025
    %v4027 = vpop.f32.mrb[0].mxu0
    %v4028 = vadd.f32 %v3675, %v4027
    %v4029 = vpop.f32.mrb[0].mxu0
    %v4030 = vadd.f32 %v3677, %v4029
    %4031 = vmatprep.mubr.bf16.mxu0 %v2092
    %4032 = vmatmul.mubr.bf16.gmra.mrb[0].mxu0 %v2091
    %v4033 = vpop.f32.mrb[0].mxu0
    %v4034 = vadd.f32 %v3681, %v4033
    %v4035 = vpop.f32.mrb[0].mxu0
    %v4036 = vadd.f32 %v3683, %v4035
    %v4037 = vpop.f32.mrb[0].mxu0
    %v4038 = vadd.f32 %v3685, %v4037
    %v4039 = vpop.f32.mrb[0].mxu0
    %v4040 = vadd.f32 %v3687, %v4039
    %4041 = vmatprep.mubr.bf16.mxu0 %v2100
    %4042 = vmatmul.mubr.bf16.gmra.mrb[0].mxu0 %v2099
    %v4043 = vpop.f32.mrb[0].mxu0
    %v4044 = vadd.f32 %v3691, %v4043
    %v4045 = vpop.f32.mrb[0].mxu0
    %v4046 = vadd.f32 %v3693, %v4045
    %v4047 = vpop.f32.mrb[0].mxu0
    %v4048 = vadd.f32 %v3695, %v4047
    %v4049 = vpop.f32.mrb[0].mxu0
    %v4050 = vadd.f32 %v3697, %v4049
    %4051 = vmatprep.mubr.bf16.mxu0 %v2108
    %4052 = vmatmul.mubr.bf16.gmra.mrb[0].mxu0 %v2107
    %v4053 = vpop.f32.mrb[0].mxu0
    %v4054 = vadd.f32 %v3701, %v4053
    %v4055 = vpop.f32.mrb[0].mxu0
    %v4056 = vadd.f32 %v3703, %v4055
    %v4057 = vpop.f32.mrb[0].mxu0
    %v4058 = vadd.f32 %v3705, %v4057
    %v4059 = vpop.f32.mrb[0].mxu0
    %v4060 = vadd.f32 %v3707, %v4059
    %4061 = vmatprep.mubr.bf16.mxu0 %v2116
    %4062 = vmatmul.mubr.bf16.gmra.mrb[0].mxu0 %v2115
    %v4063 = vpop.f32.mrb[0].mxu0
    %v4064 = vadd.f32 %v3711, %v4063
    %v4065 = vpop.f32.mrb[0].mxu0
    %v4066 = vadd.f32 %v3713, %v4065
    %v4067 = vpop.f32.mrb[0].mxu0
    %v4068 = vadd.f32 %v3715, %v4067
    %v4069 = vpop.f32.mrb[0].mxu0
    %v4070 = vadd.f32 %v3717, %v4069
    %4071 = vmatprep.mubr.bf16.mxu0 %v2124
    %4072 = vmatmul.mubr.bf16.gmra.mrb[0].mxu0 %v2123
    %v4073 = vpop.f32.mrb[0].mxu0
    %v4074 = vadd.f32 %v3721, %v4073
    %v4075 = vpop.f32.mrb[0].mxu0
    %v4076 = vadd.f32 %v3723, %v4075
    %v4077 = vpop.f32.mrb[0].mxu0
    %v4078 = vadd.f32 %v3725, %v4077
    %v4079 = vpop.f32.mrb[0].mxu0
    %v4080 = vadd.f32 %v3727, %v4079
    %4081 = vdwg.mxu0
    %4082 = vmatprep.subr.bf16.mxu0 %v2864
    %4083 = vmatpush1.bf16.msra.mxu0 %v2863
    %4084 = vmatprep.subr.bf16.mxu0 %v2866
    %4085 = vmatpush1.bf16.msra.mxu0 %v2865
    %4086 = vmatprep.subr.bf16.mxu0 %v2868
    %4087 = vmatpush1.bf16.msra.mxu0 %v2867
    %4088 = vmatprep.subr.bf16.mxu0 %v2870
    %4089 = vmatpush1.bf16.msra.mxu0 %v2869
    %4090 = vmatprep.subr.bf16.mxu0 %v2872
    %4091 = vmatpush1.bf16.msra.mxu0 %v2871
    %4092 = vmatprep.subr.bf16.mxu0 %v2874
    %4093 = vmatpush1.bf16.msra.mxu0 %v2873
    %4094 = vmatprep.subr.bf16.mxu0 %v2876
    %4095 = vmatpush1.bf16.msra.mxu0 %v2875
    %4096 = vmatprep.subr.bf16.mxu0 %v2878
    %4097 = vmatpush1.bf16.msra.mxu0 %v2877
    %4098 = vmatprep.subr.bf16.mxu0 %v2880
    %4099 = vmatpush1.bf16.msra.mxu0 %v2879
    %4100 = vmatprep.subr.bf16.mxu0 %v2882
    %4101 = vmatpush1.bf16.msra.mxu0 %v2881
    %4102 = vmatprep.subr.bf16.mxu0 %v2884
    %4103 = vmatpush1.bf16.msra.mxu0 %v2883
    %4104 = vmatprep.subr.bf16.mxu0 %v2886
    %4105 = vmatpush1.bf16.msra.mxu0 %v2885
    %4106 = vmatprep.subr.bf16.mxu0 %v2888
    %4107 = vmatpush1.bf16.msra.mxu0 %v2887
    %4108 = vmatprep.subr.bf16.mxu0 %v2890
    %4109 = vmatpush1.bf16.msra.mxu0 %v2889
    %4110 = vmatprep.subr.bf16.mxu0 %v2892
    %4111 = vmatpush1.bf16.msra.mxu0 %v2891
    %4112 = vmatprep.subr.bf16.mxu0 %v2894
    %4113 = vmatpush1.bf16.msra.mxu0 %v2893
    %4114 = vmatprep.mubr.bf16.mxu0 %v1878
    %4115 = vmatmul.mubr.bf16.gmra.mrb[0].mxu0 %v1877
    %v4116 = vpop.f32.mrb[0].mxu0
    %v4117 = vadd.f32 %v3764, %v4116
    %v4118 = vpop.f32.mrb[0].mxu0
    %v4119 = vadd.f32 %v3766, %v4118
    %v4120 = vpop.f32.mrb[0].mxu0
    %v4121 = vadd.f32 %v3768, %v4120
    %v4122 = vpop.f32.mrb[0].mxu0
    %v4123 = vadd.f32 %v3770, %v4122
    %4124 = vmatprep.mubr.bf16.mxu0 %v1886
    %4125 = vmatmul.mubr.bf16.gmra.mrb[0].mxu0 %v1885
    %v4126 = vpop.f32.mrb[0].mxu0
    %v4127 = vadd.f32 %v3774, %v4126
    %v4128 = vpop.f32.mrb[0].mxu0
    %v4129 = vadd.f32 %v3776, %v4128
    %v4130 = vpop.f32.mrb[0].mxu0
    %v4131 = vadd.f32 %v3778, %v4130
    %v4132 = vpop.f32.mrb[0].mxu0
    %v4133 = vadd.f32 %v3780, %v4132
    %4134 = vmatprep.mubr.bf16.mxu0 %v1894
    %4135 = vmatmul.mubr.bf16.gmra.mrb[0].mxu0 %v1893
    %v4136 = vpop.f32.mrb[0].mxu0
    %v4137 = vadd.f32 %v3784, %v4136
    %v4138 = vpop.f32.mrb[0].mxu0
    %v4139 = vadd.f32 %v3786, %v4138
    %v4140 = vpop.f32.mrb[0].mxu0
    %v4141 = vadd.f32 %v3788, %v4140
    %v4142 = vpop.f32.mrb[0].mxu0
    %v4143 = vadd.f32 %v3790, %v4142
    %4144 = vmatprep.mubr.bf16.mxu0 %v1902
    %4145 = vmatmul.mubr.bf16.gmra.mrb[0].mxu0 %v1901
    %v4146 = vpop.f32.mrb[0].mxu0
    %v4147 = vadd.f32 %v3794, %v4146
    %v4148 = vpop.f32.mrb[0].mxu0
    %v4149 = vadd.f32 %v3796, %v4148
    %v4150 = vpop.f32.mrb[0].mxu0
    %v4151 = vadd.f32 %v3798, %v4150
    %v4152 = vpop.f32.mrb[0].mxu0
    %v4153 = vadd.f32 %v3800, %v4152
    %4154 = vmatprep.mubr.bf16.mxu0 %v1910
    %4155 = vmatmul.mubr.bf16.gmra.mrb[0].mxu0 %v1909
    %v4156 = vpop.f32.mrb[0].mxu0
    %v4157 = vadd.f32 %v3804, %v4156
    %v4158 = vpop.f32.mrb[0].mxu0
    %v4159 = vadd.f32 %v3806, %v4158
    %v4160 = vpop.f32.mrb[0].mxu0
    %v4161 = vadd.f32 %v3808, %v4160
    %v4162 = vpop.f32.mrb[0].mxu0
    %v4163 = vadd.f32 %v3810, %v4162
    %4164 = vmatprep.mubr.bf16.mxu0 %v1918
    %4165 = vmatmul.mubr.bf16.gmra.mrb[0].mxu0 %v1917
    %v4166 = vpop.f32.mrb[0].mxu0
    %v4167 = vadd.f32 %v3814, %v4166
    %v4168 = vpop.f32.mrb[0].mxu0
    %v4169 = vadd.f32 %v3816, %v4168
    %v4170 = vpop.f32.mrb[0].mxu0
    %v4171 = vadd.f32 %v3818, %v4170
    %v4172 = vpop.f32.mrb[0].mxu0
    %v4173 = vadd.f32 %v3820, %v4172
    %4174 = vmatprep.mubr.bf16.mxu0 %v1926
    %4175 = vmatmul.mubr.bf16.gmra.mrb[0].mxu0 %v1925
    %v4176 = vpop.f32.mrb[0].mxu0
    %v4177 = vadd.f32 %v3824, %v4176
    %v4178 = vpop.f32.mrb[0].mxu0
    %v4179 = vadd.f32 %v3826, %v4178
    %v4180 = vpop.f32.mrb[0].mxu0
    %v4181 = vadd.f32 %v3828, %v4180
    %v4182 = vpop.f32.mrb[0].mxu0
    %v4183 = vadd.f32 %v3830, %v4182
    %4184 = vmatprep.mubr.bf16.mxu0 %v1934
    %4185 = vmatmul.mubr.bf16.gmra.mrb[0].mxu0 %v1933
    %v4186 = vpop.f32.mrb[0].mxu0
    %v4187 = vadd.f32 %v3834, %v4186
    %v4188 = vpop.f32.mrb[0].mxu0
    %v4189 = vadd.f32 %v3836, %v4188
    %v4190 = vpop.f32.mrb[0].mxu0
    %v4191 = vadd.f32 %v3838, %v4190
    %v4192 = vpop.f32.mrb[0].mxu0
    %v4193 = vadd.f32 %v3840, %v4192
    %4194 = vmatprep.mubr.bf16.mxu0 %v1942
    %4195 = vmatmul.mubr.bf16.gmra.mrb[0].mxu0 %v1941
    %v4196 = vpop.f32.mrb[0].mxu0
    %v4197 = vadd.f32 %v3844, %v4196
    %v4198 = vpop.f32.mrb[0].mxu0
    %v4199 = vadd.f32 %v3846, %v4198
    %v4200 = vpop.f32.mrb[0].mxu0
    %v4201 = vadd.f32 %v3848, %v4200
    %v4202 = vpop.f32.mrb[0].mxu0
    %v4203 = vadd.f32 %v3850, %v4202
    %4204 = vmatprep.mubr.bf16.mxu0 %v1950
    %4205 = vmatmul.mubr.bf16.gmra.mrb[0].mxu0 %v1949
    %v4206 = vpop.f32.mrb[0].mxu0
    %v4207 = vadd.f32 %v3854, %v4206
    %v4208 = vpop.f32.mrb[0].mxu0
    %v4209 = vadd.f32 %v3856, %v4208
    %v4210 = vpop.f32.mrb[0].mxu0
    %v4211 = vadd.f32 %v3858, %v4210
    %v4212 = vpop.f32.mrb[0].mxu0
    %v4213 = vadd.f32 %v3860, %v4212
    %4214 = vmatprep.mubr.bf16.mxu0 %v1958
    %4215 = vmatmul.mubr.bf16.gmra.mrb[0].mxu0 %v1957
    %v4216 = vpop.f32.mrb[0].mxu0
    %v4217 = vadd.f32 %v3864, %v4216
    %v4218 = vpop.f32.mrb[0].mxu0
    %v4219 = vadd.f32 %v3866, %v4218
    %v4220 = vpop.f32.mrb[0].mxu0
    %v4221 = vadd.f32 %v3868, %v4220
    %v4222 = vpop.f32.mrb[0].mxu0
    %v4223 = vadd.f32 %v3870, %v4222
    %4224 = vmatprep.mubr.bf16.mxu0 %v1966
    %4225 = vmatmul.mubr.bf16.gmra.mrb[0].mxu0 %v1965
    %v4226 = vpop.f32.mrb[0].mxu0
    %v4227 = vadd.f32 %v3874, %v4226
    %v4228 = vpop.f32.mrb[0].mxu0
    %v4229 = vadd.f32 %v3876, %v4228
    %v4230 = vpop.f32.mrb[0].mxu0
    %v4231 = vadd.f32 %v3878, %v4230
    %v4232 = vpop.f32.mrb[0].mxu0
    %v4233 = vadd.f32 %v3880, %v4232
    %4234 = vmatprep.mubr.bf16.mxu0 %v1974
    %4235 = vmatmul.mubr.bf16.gmra.mrb[0].mxu0 %v1973
    %v4236 = vpop.f32.mrb[0].mxu0
    %v4237 = vadd.f32 %v3884, %v4236
    %v4238 = vpop.f32.mrb[0].mxu0
    %v4239 = vadd.f32 %v3886, %v4238
    %v4240 = vpop.f32.mrb[0].mxu0
    %v4241 = vadd.f32 %v3888, %v4240
    %v4242 = vpop.f32.mrb[0].mxu0
    %v4243 = vadd.f32 %v3890, %v4242
    %4244 = vmatprep.mubr.bf16.mxu0 %v1982
    %4245 = vmatmul.mubr.bf16.gmra.mrb[0].mxu0 %v1981
    %v4246 = vpop.f32.mrb[0].mxu0
    %v4247 = vadd.f32 %v3894, %v4246
    %v4248 = vpop.f32.mrb[0].mxu0
    %v4249 = vadd.f32 %v3896, %v4248
    %v4250 = vpop.f32.mrb[0].mxu0
    %v4251 = vadd.f32 %v3898, %v4250
    %v4252 = vpop.f32.mrb[0].mxu0
    %v4253 = vadd.f32 %v3900, %v4252
    %4254 = vmatprep.mubr.bf16.mxu0 %v1990
    %4255 = vmatmul.mubr.bf16.gmra.mrb[0].mxu0 %v1989
    %v4256 = vpop.f32.mrb[0].mxu0
    %v4257 = vadd.f32 %v3904, %v4256
    %v4258 = vpop.f32.mrb[0].mxu0
    %v4259 = vadd.f32 %v3906, %v4258
    %v4260 = vpop.f32.mrb[0].mxu0
    %v4261 = vadd.f32 %v3908, %v4260
    %v4262 = vpop.f32.mrb[0].mxu0
    %v4263 = vadd.f32 %v3910, %v4262
    %4264 = vmatprep.mubr.bf16.mxu0 %v1998
    %4265 = vmatmul.mubr.bf16.gmra.mrb[0].mxu0 %v1997
    %v4266 = vpop.f32.mrb[0].mxu0
    %v4267 = vadd.f32 %v3914, %v4266
    %v4268 = vpop.f32.mrb[0].mxu0
    %v4269 = vadd.f32 %v3916, %v4268
    %v4270 = vpop.f32.mrb[0].mxu0
    %v4271 = vadd.f32 %v3918, %v4270
    %v4272 = vpop.f32.mrb[0].mxu0
    %v4273 = vadd.f32 %v3920, %v4272
    %4274 = vmatprep.mubr.bf16.mxu0 %v2006
    %4275 = vmatmul.mubr.bf16.gmra.mrb[0].mxu0 %v2005
    %v4276 = vpop.f32.mrb[0].mxu0
    %v4277 = vadd.f32 %v3924, %v4276
    %v4278 = vpop.f32.mrb[0].mxu0
    %v4279 = vadd.f32 %v3926, %v4278
    %v4280 = vpop.f32.mrb[0].mxu0
    %v4281 = vadd.f32 %v3928, %v4280
    %v4282 = vpop.f32.mrb[0].mxu0
    %v4283 = vadd.f32 %v3930, %v4282
    %4284 = vmatprep.mubr.bf16.mxu0 %v2014
    %4285 = vmatmul.mubr.bf16.gmra.mrb[0].mxu0 %v2013
    %v4286 = vpop.f32.mrb[0].mxu0
    %v4287 = vadd.f32 %v3934, %v4286
    %v4288 = vpop.f32.mrb[0].mxu0
    %v4289 = vadd.f32 %v3936, %v4288
    %v4290 = vpop.f32.mrb[0].mxu0
    %v4291 = vadd.f32 %v3938, %v4290
    %v4292 = vpop.f32.mrb[0].mxu0
    %v4293 = vadd.f32 %v3940, %v4292
    %4294 = vmatprep.mubr.bf16.mxu0 %v2022
    %4295 = vmatmul.mubr.bf16.gmra.mrb[0].mxu0 %v2021
    %v4296 = vpop.f32.mrb[0].mxu0
    %v4297 = vadd.f32 %v3944, %v4296
    %v4298 = vpop.f32.mrb[0].mxu0
    %v4299 = vadd.f32 %v3946, %v4298
    %v4300 = vpop.f32.mrb[0].mxu0
    %v4301 = vadd.f32 %v3948, %v4300
    %v4302 = vpop.f32.mrb[0].mxu0
    %v4303 = vadd.f32 %v3950, %v4302
    %4304 = vmatprep.mubr.bf16.mxu0 %v2030
    %4305 = vmatmul.mubr.bf16.gmra.mrb[0].mxu0 %v2029
    %v4306 = vpop.f32.mrb[0].mxu0
    %v4307 = vadd.f32 %v3954, %v4306
    %v4308 = vpop.f32.mrb[0].mxu0
    %v4309 = vadd.f32 %v3956, %v4308
    %v4310 = vpop.f32.mrb[0].mxu0
    %v4311 = vadd.f32 %v3958, %v4310
    %v4312 = vpop.f32.mrb[0].mxu0
    %v4313 = vadd.f32 %v3960, %v4312
    %4314 = vmatprep.mubr.bf16.mxu0 %v2038
    %4315 = vmatmul.mubr.bf16.gmra.mrb[0].mxu0 %v2037
    %v4316 = vpop.f32.mrb[0].mxu0
    %v4317 = vadd.f32 %v3964, %v4316
    %v4318 = vpop.f32.mrb[0].mxu0
    %v4319 = vadd.f32 %v3966, %v4318
    %v4320 = vpop.f32.mrb[0].mxu0
    %v4321 = vadd.f32 %v3968, %v4320
    %v4322 = vpop.f32.mrb[0].mxu0
    %v4323 = vadd.f32 %v3970, %v4322
    %4324 = vmatprep.mubr.bf16.mxu0 %v2046
    %4325 = vmatmul.mubr.bf16.gmra.mrb[0].mxu0 %v2045
    %v4326 = vpop.f32.mrb[0].mxu0
    %v4327 = vadd.f32 %v3974, %v4326
    %v4328 = vpop.f32.mrb[0].mxu0
    %v4329 = vadd.f32 %v3976, %v4328
    %v4330 = vpop.f32.mrb[0].mxu0
    %v4331 = vadd.f32 %v3978, %v4330
    %v4332 = vpop.f32.mrb[0].mxu0
    %v4333 = vadd.f32 %v3980, %v4332
    %4334 = vmatprep.mubr.bf16.mxu0 %v2054
    %4335 = vmatmul.mubr.bf16.gmra.mrb[0].mxu0 %v2053
    %v4336 = vpop.f32.mrb[0].mxu0
    %v4337 = vadd.f32 %v3984, %v4336
    %v4338 = vpop.f32.mrb[0].mxu0
    %v4339 = vadd.f32 %v3986, %v4338
    %v4340 = vpop.f32.mrb[0].mxu0
    %v4341 = vadd.f32 %v3988, %v4340
    %v4342 = vpop.f32.mrb[0].mxu0
    %v4343 = vadd.f32 %v3990, %v4342
    %4344 = vmatprep.mubr.bf16.mxu0 %v2062
    %4345 = vmatmul.mubr.bf16.gmra.mrb[0].mxu0 %v2061
    %v4346 = vpop.f32.mrb[0].mxu0
    %v4347 = vadd.f32 %v3994, %v4346
    %v4348 = vpop.f32.mrb[0].mxu0
    %v4349 = vadd.f32 %v3996, %v4348
    %v4350 = vpop.f32.mrb[0].mxu0
    %v4351 = vadd.f32 %v3998, %v4350
    %v4352 = vpop.f32.mrb[0].mxu0
    %v4353 = vadd.f32 %v4000, %v4352
    %4354 = vmatprep.mubr.bf16.mxu0 %v2070
    %4355 = vmatmul.mubr.bf16.gmra.mrb[0].mxu0 %v2069
    %v4356 = vpop.f32.mrb[0].mxu0
    %v4357 = vadd.f32 %v4004, %v4356
    %v4358 = vpop.f32.mrb[0].mxu0
    %v4359 = vadd.f32 %v4006, %v4358
    %v4360 = vpop.f32.mrb[0].mxu0
    %v4361 = vadd.f32 %v4008, %v4360
    %v4362 = vpop.f32.mrb[0].mxu0
    %v4363 = vadd.f32 %v4010, %v4362
    %4364 = vmatprep.mubr.bf16.mxu0 %v2078
    %4365 = vmatmul.mubr.bf16.gmra.mrb[0].mxu0 %v2077
    %v4366 = vpop.f32.mrb[0].mxu0
    %v4367 = vadd.f32 %v4014, %v4366
    %v4368 = vpop.f32.mrb[0].mxu0
    %v4369 = vadd.f32 %v4016, %v4368
    %v4370 = vpop.f32.mrb[0].mxu0
    %v4371 = vadd.f32 %v4018, %v4370
    %v4372 = vpop.f32.mrb[0].mxu0
    %v4373 = vadd.f32 %v4020, %v4372
    %4374 = vmatprep.mubr.bf16.mxu0 %v2086
    %4375 = vmatmul.mubr.bf16.gmra.mrb[0].mxu0 %v2085
    %v4376 = vpop.f32.mrb[0].mxu0
    %v4377 = vadd.f32 %v4024, %v4376
    %v4378 = vpop.f32.mrb[0].mxu0
    %v4379 = vadd.f32 %v4026, %v4378
    %v4380 = vpop.f32.mrb[0].mxu0
    %v4381 = vadd.f32 %v4028, %v4380
    %v4382 = vpop.f32.mrb[0].mxu0
    %v4383 = vadd.f32 %v4030, %v4382
    %4384 = vmatprep.mubr.bf16.mxu0 %v2094
    %4385 = vmatmul.mubr.bf16.gmra.mrb[0].mxu0 %v2093
    %v4386 = vpop.f32.mrb[0].mxu0
    %v4387 = vadd.f32 %v4034, %v4386
    %v4388 = vpop.f32.mrb[0].mxu0
    %v4389 = vadd.f32 %v4036, %v4388
    %v4390 = vpop.f32.mrb[0].mxu0
    %v4391 = vadd.f32 %v4038, %v4390
    %v4392 = vpop.f32.mrb[0].mxu0
    %v4393 = vadd.f32 %v4040, %v4392
    %4394 = vmatprep.mubr.bf16.mxu0 %v2102
    %4395 = vmatmul.mubr.bf16.gmra.mrb[0].mxu0 %v2101
    %v4396 = vpop.f32.mrb[0].mxu0
    %v4397 = vadd.f32 %v4044, %v4396
    %v4398 = vpop.f32.mrb[0].mxu0
    %v4399 = vadd.f32 %v4046, %v4398
    %v4400 = vpop.f32.mrb[0].mxu0
    %v4401 = vadd.f32 %v4048, %v4400
    %v4402 = vpop.f32.mrb[0].mxu0
    %v4403 = vadd.f32 %v4050, %v4402
    %4404 = vmatprep.mubr.bf16.mxu0 %v2110
    %4405 = vmatmul.mubr.bf16.gmra.mrb[0].mxu0 %v2109
    %v4406 = vpop.f32.mrb[0].mxu0
    %v4407 = vadd.f32 %v4054, %v4406
    %v4408 = vpop.f32.mrb[0].mxu0
    %v4409 = vadd.f32 %v4056, %v4408
    %v4410 = vpop.f32.mrb[0].mxu0
    %v4411 = vadd.f32 %v4058, %v4410
    %v4412 = vpop.f32.mrb[0].mxu0
    %v4413 = vadd.f32 %v4060, %v4412
    %4414 = vmatprep.mubr.bf16.mxu0 %v2118
    %4415 = vmatmul.mubr.bf16.gmra.mrb[0].mxu0 %v2117
    %v4416 = vpop.f32.mrb[0].mxu0
    %v4417 = vadd.f32 %v4064, %v4416
    %v4418 = vpop.f32.mrb[0].mxu0
    %v4419 = vadd.f32 %v4066, %v4418
    %v4420 = vpop.f32.mrb[0].mxu0
    %v4421 = vadd.f32 %v4068, %v4420
    %v4422 = vpop.f32.mrb[0].mxu0
    %v4423 = vadd.f32 %v4070, %v4422
    %4424 = vmatprep.mubr.bf16.mxu0 %v2126
    %4425 = vmatmul.mubr.bf16.gmra.mrb[0].mxu0 %v2125
    %v4426 = vpop.f32.mrb[0].mxu0
    %v4427 = vadd.f32 %v4074, %v4426
    %v4428 = vpop.f32.mrb[0].mxu0
    %v4429 = vadd.f32 %v4076, %v4428
    %v4430 = vpop.f32.mrb[0].mxu0
    %v4431 = vadd.f32 %v4078, %v4430
    %v4432 = vpop.f32.mrb[0].mxu0
    %v4433 = vadd.f32 %v4080, %v4432
    %4434 = vdwg.mxu0
    %v4435 = vtanh.pop %v4117
    %v4436 = vtanh.pop %v4121
    %v4437 = vtanh.pop %v4127
    %v4438 = vtanh.pop %v4131
    %v4439 = vtanh.pop %v4137
    %v4440 = vtanh.pop %v4141
    %v4441 = vtanh.pop %v4147
    %v4442 = vtanh.pop %v4151
    %v4443 = vtanh.pop %v4157
    %v4444 = vtanh.pop %v4161
    %v4445 = vtanh.pop %v4167
    %v4446 = vtanh.pop %v4171
    %v4447 = vtanh.pop %v4177
    %v4448 = vtanh.pop %v4181
    %v4449 = vtanh.pop %v4187
    %v4450 = vtanh.pop %v4191
    %v4451 = vtanh.pop %v4197
    %v4452 = vtanh.pop %v4201
    %v4453 = vtanh.pop %v4207
    %v4454 = vtanh.pop %v4211
    %v4455 = vtanh.pop %v4217
    %v4456 = vtanh.pop %v4221
    %v4457 = vtanh.pop %v4227
    %v4458 = vtanh.pop %v4231
    %v4459 = vtanh.pop %v4237
    %v4460 = vtanh.pop %v4241
    %v4461 = vtanh.pop %v4247
    %v4462 = vtanh.pop %v4251
    %v4463 = vtanh.pop %v4257
    %v4464 = vtanh.pop %v4261
    %v4465 = vtanh.pop %v4267
    %v4466 = vtanh.pop %v4271
    %v4467 = vtanh.pop %v4277
    %v4468 = vtanh.pop %v4281
    %v4469 = vtanh.pop %v4287
    %v4470 = vtanh.pop %v4291
    %v4471 = vtanh.pop %v4297
    %v4472 = vtanh.pop %v4301
    %v4473 = vtanh.pop %v4307
    %v4474 = vtanh.pop %v4311
    %v4475 = vtanh.pop %v4317
    %v4476 = vtanh.pop %v4321
    %v4477 = vtanh.pop %v4327
    %v4478 = vtanh.pop %v4331
    %v4479 = vtanh.pop %v4337
    %v4480 = vtanh.pop %v4341
    %v4481 = vtanh.pop %v4347
    %v4482 = vtanh.pop %v4351
    %v4483 = vtanh.pop %v4357
    %v4484 = vtanh.pop %v4361
    %v4485 = vtanh.pop %v4367
    %v4486 = vtanh.pop %v4371
    %v4487 = vtanh.pop %v4377
    %v4488 = vtanh.pop %v4381
    %v4489 = vtanh.pop %v4387
    %v4490 = vtanh.pop %v4391
    %v4491 = vtanh.pop %v4397
    %v4492 = vtanh.pop %v4401
    %v4493 = vtanh.pop %v4407
    %v4494 = vtanh.pop %v4411
    %v4495 = vtanh.pop %v4417
    %v4496 = vtanh.pop %v4421
    %v4497 = vtanh.pop %v4427
    %v4498 = vtanh.pop %v4431
    %v4499 = vxor.u32 %v4119, 2147483648
    %v4500 = vxor.u32 %v4123, 2147483648
    %v4501 = vxor.u32 %v4129, 2147483648
    %v4502 = vxor.u32 %v4133, 2147483648
    %v4503 = vxor.u32 %v4139, 2147483648
    %v4504 = vxor.u32 %v4143, 2147483648
    %v4505 = vxor.u32 %v4149, 2147483648
    %v4506 = vxor.u32 %v4153, 2147483648
    %v4507 = vxor.u32 %v4159, 2147483648
    %v4508 = vxor.u32 %v4163, 2147483648
    %v4509 = vxor.u32 %v4169, 2147483648
    %v4510 = vxor.u32 %v4173, 2147483648
    %v4511 = vxor.u32 %v4179, 2147483648
    %v4512 = vxor.u32 %v4183, 2147483648
    %v4513 = vxor.u32 %v4189, 2147483648
    %v4514 = vxor.u32 %v4193, 2147483648
    %v4515 = vxor.u32 %v4199, 2147483648
    %v4516 = vxor.u32 %v4203, 2147483648
    %v4517 = vxor.u32 %v4209, 2147483648
    %v4518 = vxor.u32 %v4213, 2147483648
    %v4519 = vxor.u32 %v4219, 2147483648
    %v4520 = vxor.u32 %v4223, 2147483648
    %v4521 = vxor.u32 %v4229, 2147483648
    %v4522 = vxor.u32 %v4233, 2147483648
    %v4523 = vxor.u32 %v4239, 2147483648
    %v4524 = vxor.u32 %v4243, 2147483648
    %v4525 = vxor.u32 %v4249, 2147483648
    %v4526 = vxor.u32 %v4253, 2147483648
    %v4527 = vxor.u32 %v4259, 2147483648
    %v4528 = vxor.u32 %v4263, 2147483648
    %v4529 = vxor.u32 %v4269, 2147483648
    %v4530 = vxor.u32 %v4273, 2147483648
    %v4531 = vxor.u32 %v4279, 2147483648
    %v4532 = vxor.u32 %v4283, 2147483648
    %v4533 = vxor.u32 %v4289, 2147483648
    %v4534 = vxor.u32 %v4293, 2147483648
    %v4535 = vxor.u32 %v4299, 2147483648
    %v4536 = vxor.u32 %v4303, 2147483648
    %v4537 = vxor.u32 %v4309, 2147483648
    %v4538 = vxor.u32 %v4313, 2147483648
    %v4539 = vxor.u32 %v4319, 2147483648
    %v4540 = vxor.u32 %v4323, 2147483648
    %v4541 = vxor.u32 %v4329, 2147483648
    %v4542 = vxor.u32 %v4333, 2147483648
    %v4543 = vxor.u32 %v4339, 2147483648
    %v4544 = vxor.u32 %v4343, 2147483648
    %v4545 = vxor.u32 %v4349, 2147483648
    %v4546 = vxor.u32 %v4353, 2147483648
    %v4547 = vxor.u32 %v4359, 2147483648
    %v4548 = vxor.u32 %v4363, 2147483648
    %v4549 = vxor.u32 %v4369, 2147483648
    %v4550 = vxor.u32 %v4373, 2147483648
    %v4551 = vxor.u32 %v4379, 2147483648
    %v4552 = vxor.u32 %v4383, 2147483648
    %v4553 = vxor.u32 %v4389, 2147483648
    %v4554 = vxor.u32 %v4393, 2147483648
    %v4555 = vxor.u32 %v4399, 2147483648
    %v4556 = vxor.u32 %v4403, 2147483648
    %v4557 = vxor.u32 %v4409, 2147483648
    %v4558 = vxor.u32 %v4413, 2147483648
    %v4559 = vxor.u32 %v4419, 2147483648
    %v4560 = vxor.u32 %v4423, 2147483648
    %v4561 = vxor.u32 %v4429, 2147483648
    %v4562 = vxor.u32 %v4433, 2147483648
    %v4563 = vmul.f32 %v4499, 1.442695
    %v4564 = vpow.pop %v4563
    %v4565 = vmul.f32 %v4500, 1.442695
    %v4566 = vpow.pop %v4565
    %v4567 = vmul.f32 %v4501, 1.442695
    %v4568 = vpow.pop %v4567
    %v4569 = vmul.f32 %v4502, 1.442695
    %v4570 = vpow.pop %v4569
    %v4571 = vmul.f32 %v4503, 1.442695
    %v4572 = vpow.pop %v4571
    %v4573 = vmul.f32 %v4504, 1.442695
    %v4574 = vpow.pop %v4573
    %v4575 = vmul.f32 %v4505, 1.442695
    %v4576 = vpow.pop %v4575
    %v4577 = vmul.f32 %v4506, 1.442695
    %v4578 = vpow.pop %v4577
    %v4579 = vmul.f32 %v4507, 1.442695
    %v4580 = vpow.pop %v4579
    %v4581 = vmul.f32 %v4508, 1.442695
    %v4582 = vpow.pop %v4581
    %v4583 = vmul.f32 %v4509, 1.442695
    %v4584 = vpow.pop %v4583
    %v4585 = vmul.f32 %v4510, 1.442695
    %v4586 = vpow.pop %v4585
    %v4587 = vmul.f32 %v4511, 1.442695
    %v4588 = vpow.pop %v4587
    %v4589 = vmul.f32 %v4512, 1.442695
    %v4590 = vpow.pop %v4589
    %v4591 = vmul.f32 %v4513, 1.442695
    %v4592 = vpow.pop %v4591
    %v4593 = vmul.f32 %v4514, 1.442695
    %v4594 = vpow.pop %v4593
    %v4595 = vmul.f32 %v4515, 1.442695
    %v4596 = vpow.pop %v4595
    %v4597 = vmul.f32 %v4516, 1.442695
    %v4598 = vpow.pop %v4597
    %v4599 = vmul.f32 %v4517, 1.442695
    %v4600 = vpow.pop %v4599
    %v4601 = vmul.f32 %v4518, 1.442695
    %v4602 = vpow.pop %v4601
    %v4603 = vmul.f32 %v4519, 1.442695
    %v4604 = vpow.pop %v4603
    %v4605 = vmul.f32 %v4520, 1.442695
    %v4606 = vpow.pop %v4605
    %v4607 = vmul.f32 %v4521, 1.442695
    %v4608 = vpow.pop %v4607
    %v4609 = vmul.f32 %v4522, 1.442695
    %v4610 = vpow.pop %v4609
    %v4611 = vmul.f32 %v4523, 1.442695
    %v4612 = vpow.pop %v4611
    %v4613 = vmul.f32 %v4524, 1.442695
    %v4614 = vpow.pop %v4613
    %v4615 = vmul.f32 %v4525, 1.442695
    %v4616 = vpow.pop %v4615
    %v4617 = vmul.f32 %v4526, 1.442695
    %v4618 = vpow.pop %v4617
    %v4619 = vmul.f32 %v4527, 1.442695
    %v4620 = vpow.pop %v4619
    %v4621 = vmul.f32 %v4528, 1.442695
    %v4622 = vpow.pop %v4621
    %v4623 = vmul.f32 %v4529, 1.442695
    %v4624 = vpow.pop %v4623
    %v4625 = vmul.f32 %v4530, 1.442695
    %v4626 = vpow.pop %v4625
    %v4627 = vmul.f32 %v4531, 1.442695
    %v4628 = vpow.pop %v4627
    %v4629 = vmul.f32 %v4532, 1.442695
    %v4630 = vpow.pop %v4629
    %v4631 = vmul.f32 %v4533, 1.442695
    %v4632 = vpow.pop %v4631
    %v4633 = vmul.f32 %v4534, 1.442695
    %v4634 = vpow.pop %v4633
    %v4635 = vmul.f32 %v4535, 1.442695
    %v4636 = vpow.pop %v4635
    %v4637 = vmul.f32 %v4536, 1.442695
    %v4638 = vpow.pop %v4637
    %v4639 = vmul.f32 %v4537, 1.442695
    %v4640 = vpow.pop %v4639
    %v4641 = vmul.f32 %v4538, 1.442695
    %v4642 = vpow.pop %v4641
    %v4643 = vmul.f32 %v4539, 1.442695
    %v4644 = vpow.pop %v4643
    %v4645 = vmul.f32 %v4540, 1.442695
    %v4646 = vpow.pop %v4645
    %v4647 = vmul.f32 %v4541, 1.442695
    %v4648 = vpow.pop %v4647
    %v4649 = vmul.f32 %v4542, 1.442695
    %v4650 = vpow.pop %v4649
    %v4651 = vmul.f32 %v4543, 1.442695
    %v4652 = vpow.pop %v4651
    %v4653 = vmul.f32 %v4544, 1.442695
    %v4654 = vpow.pop %v4653
    %v4655 = vmul.f32 %v4545, 1.442695
    %v4656 = vpow.pop %v4655
    %v4657 = vmul.f32 %v4546, 1.442695
    %v4658 = vpow.pop %v4657
    %v4659 = vmul.f32 %v4547, 1.442695
    %v4660 = vpow.pop %v4659
    %v4661 = vmul.f32 %v4548, 1.442695
    %v4662 = vpow.pop %v4661
    %v4663 = vmul.f32 %v4549, 1.442695
    %v4664 = vpow.pop %v4663
    %v4665 = vmul.f32 %v4550, 1.442695
    %v4666 = vpow.pop %v4665
    %v4667 = vmul.f32 %v4551, 1.442695
    %v4668 = vpow.pop %v4667
    %v4669 = vmul.f32 %v4552, 1.442695
    %v4670 = vpow.pop %v4669
    %v4671 = vmul.f32 %v4553, 1.442695
    %v4672 = vpow.pop %v4671
    %v4673 = vmul.f32 %v4554, 1.442695
    %v4674 = vpow.pop %v4673
    %v4675 = vmul.f32 %v4555, 1.442695
    %v4676 = vpow.pop %v4675
    %v4677 = vmul.f32 %v4556, 1.442695
    %v4678 = vpow.pop %v4677
    %v4679 = vmul.f32 %v4557, 1.442695
    %v4680 = vpow.pop %v4679
    %v4681 = vmul.f32 %v4558, 1.442695
    %v4682 = vpow.pop %v4681
    %v4683 = vmul.f32 %v4559, 1.442695
    %v4684 = vpow.pop %v4683
    %v4685 = vmul.f32 %v4560, 1.442695
    %v4686 = vpow.pop %v4685
    %v4687 = vmul.f32 %v4561, 1.442695
    %v4688 = vpow.pop %v4687
    %v4689 = vmul.f32 %v4562, 1.442695
    %v4690 = vpow.pop %v4689
    %v4691 = vadd.f32 %v4564, 1.0
    %v4692 = vadd.f32 %v4566, 1.0
    %v4693 = vadd.f32 %v4568, 1.0
    %v4694 = vadd.f32 %v4570, 1.0
    %v4695 = vadd.f32 %v4572, 1.0
    %v4696 = vadd.f32 %v4574, 1.0
    %v4697 = vadd.f32 %v4576, 1.0
    %v4698 = vadd.f32 %v4578, 1.0
    %v4699 = vadd.f32 %v4580, 1.0
    %v4700 = vadd.f32 %v4582, 1.0
    %v4701 = vadd.f32 %v4584, 1.0
    %v4702 = vadd.f32 %v4586, 1.0
    %v4703 = vadd.f32 %v4588, 1.0
    %v4704 = vadd.f32 %v4590, 1.0
    %v4705 = vadd.f32 %v4592, 1.0
    %v4706 = vadd.f32 %v4594, 1.0
    %v4707 = vadd.f32 %v4596, 1.0
    %v4708 = vadd.f32 %v4598, 1.0
    %v4709 = vadd.f32 %v4600, 1.0
    %v4710 = vadd.f32 %v4602, 1.0
    %v4711 = vadd.f32 %v4604, 1.0
    %v4712 = vadd.f32 %v4606, 1.0
    %v4713 = vadd.f32 %v4608, 1.0
    %v4714 = vadd.f32 %v4610, 1.0
    %v4715 = vadd.f32 %v4612, 1.0
    %v4716 = vadd.f32 %v4614, 1.0
    %v4717 = vadd.f32 %v4616, 1.0
    %v4718 = vadd.f32 %v4618, 1.0
    %v4719 = vadd.f32 %v4620, 1.0
    %v4720 = vadd.f32 %v4622, 1.0
    %v4721 = vadd.f32 %v4624, 1.0
    %v4722 = vadd.f32 %v4626, 1.0
    %v4723 = vadd.f32 %v4628, 1.0
    %v4724 = vadd.f32 %v4630, 1.0
    %v4725 = vadd.f32 %v4632, 1.0
    %v4726 = vadd.f32 %v4634, 1.0
    %v4727 = vadd.f32 %v4636, 1.0
    %v4728 = vadd.f32 %v4638, 1.0
    %v4729 = vadd.f32 %v4640, 1.0
    %v4730 = vadd.f32 %v4642, 1.0
    %v4731 = vadd.f32 %v4644, 1.0
    %v4732 = vadd.f32 %v4646, 1.0
    %v4733 = vadd.f32 %v4648, 1.0
    %v4734 = vadd.f32 %v4650, 1.0
    %v4735 = vadd.f32 %v4652, 1.0
    %v4736 = vadd.f32 %v4654, 1.0
    %v4737 = vadd.f32 %v4656, 1.0
    %v4738 = vadd.f32 %v4658, 1.0
    %v4739 = vadd.f32 %v4660, 1.0
    %v4740 = vadd.f32 %v4662, 1.0
    %v4741 = vadd.f32 %v4664, 1.0
    %v4742 = vadd.f32 %v4666, 1.0
    %v4743 = vadd.f32 %v4668, 1.0
    %v4744 = vadd.f32 %v4670, 1.0
    %v4745 = vadd.f32 %v4672, 1.0
    %v4746 = vadd.f32 %v4674, 1.0
    %v4747 = vadd.f32 %v4676, 1.0
    %v4748 = vadd.f32 %v4678, 1.0
    %v4749 = vadd.f32 %v4680, 1.0
    %v4750 = vadd.f32 %v4682, 1.0
    %v4751 = vadd.f32 %v4684, 1.0
    %v4752 = vadd.f32 %v4686, 1.0
    %v4753 = vadd.f32 %v4688, 1.0
    %v4754 = vadd.f32 %v4690, 1.0
    %v4755 = vrcp.pop %v4691
    %v4756 = vmul.f32 1.0, %v4755
    %v4757 = vrcp.pop %v4692
    %v4758 = vmul.f32 1.0, %v4757
    %v4759 = vrcp.pop %v4693
    %v4760 = vmul.f32 1.0, %v4759
    %v4761 = vrcp.pop %v4694
    %v4762 = vmul.f32 1.0, %v4761
    %v4763 = vrcp.pop %v4695
    %v4764 = vmul.f32 1.0, %v4763
    %v4765 = vrcp.pop %v4696
    %v4766 = vmul.f32 1.0, %v4765
    %v4767 = vrcp.pop %v4697
    %v4768 = vmul.f32 1.0, %v4767
    %v4769 = vrcp.pop %v4698
    %v4770 = vmul.f32 1.0, %v4769
    %v4771 = vrcp.pop %v4699
    %v4772 = vmul.f32 1.0, %v4771
    %v4773 = vrcp.pop %v4700
    %v4774 = vmul.f32 1.0, %v4773
    %v4775 = vrcp.pop %v4701
    %v4776 = vmul.f32 1.0, %v4775
    %v4777 = vrcp.pop %v4702
    %v4778 = vmul.f32 1.0, %v4777
    %v4779 = vrcp.pop %v4703
    %v4780 = vmul.f32 1.0, %v4779
    %v4781 = vrcp.pop %v4704
    %v4782 = vmul.f32 1.0, %v4781
    %v4783 = vrcp.pop %v4705
    %v4784 = vmul.f32 1.0, %v4783
    %v4785 = vrcp.pop %v4706
    %v4786 = vmul.f32 1.0, %v4785
    %v4787 = vrcp.pop %v4707
    %v4788 = vmul.f32 1.0, %v4787
    %v4789 = vrcp.pop %v4708
    %v4790 = vmul.f32 1.0, %v4789
    %v4791 = vrcp.pop %v4709
    %v4792 = vmul.f32 1.0, %v4791
    %v4793 = vrcp.pop %v4710
    %v4794 = vmul.f32 1.0, %v4793
    %v4795 = vrcp.pop %v4711
    %v4796 = vmul.f32 1.0, %v4795
    %v4797 = vrcp.pop %v4712
    %v4798 = vmul.f32 1.0, %v4797
    %v4799 = vrcp.pop %v4713
    %v4800 = vmul.f32 1.0, %v4799
    %v4801 = vrcp.pop %v4714
    %v4802 = vmul.f32 1.0, %v4801
    %v4803 = vrcp.pop %v4715
    %v4804 = vmul.f32 1.0, %v4803
    %v4805 = vrcp.pop %v4716
    %v4806 = vmul.f32 1.0, %v4805
    %v4807 = vrcp.pop %v4717
    %v4808 = vmul.f32 1.0, %v4807
    %v4809 = vrcp.pop %v4718
    %v4810 = vmul.f32 1.0, %v4809
    %v4811 = vrcp.pop %v4719
    %v4812 = vmul.f32 1.0, %v4811
    %v4813 = vrcp.pop %v4720
    %v4814 = vmul.f32 1.0, %v4813
    %v4815 = vrcp.pop %v4721
    %v4816 = vmul.f32 1.0, %v4815
    %v4817 = vrcp.pop %v4722
    %v4818 = vmul.f32 1.0, %v4817
    %v4819 = vrcp.pop %v4723
    %v4820 = vmul.f32 1.0, %v4819
    %v4821 = vrcp.pop %v4724
    %v4822 = vmul.f32 1.0, %v4821
    %v4823 = vrcp.pop %v4725
    %v4824 = vmul.f32 1.0, %v4823
    %v4825 = vrcp.pop %v4726
    %v4826 = vmul.f32 1.0, %v4825
    %v4827 = vrcp.pop %v4727
    %v4828 = vmul.f32 1.0, %v4827
    %v4829 = vrcp.pop %v4728
    %v4830 = vmul.f32 1.0, %v4829
    %v4831 = vrcp.pop %v4729
    %v4832 = vmul.f32 1.0, %v4831
    %v4833 = vrcp.pop %v4730
    %v4834 = vmul.f32 1.0, %v4833
    %v4835 = vrcp.pop %v4731
    %v4836 = vmul.f32 1.0, %v4835
    %v4837 = vrcp.pop %v4732
    %v4838 = vmul.f32 1.0, %v4837
    %v4839 = vrcp.pop %v4733
    %v4840 = vmul.f32 1.0, %v4839
    %v4841 = vrcp.pop %v4734
    %v4842 = vmul.f32 1.0, %v4841
    %v4843 = vrcp.pop %v4735
    %v4844 = vmul.f32 1.0, %v4843
    %v4845 = vrcp.pop %v4736
    %v4846 = vmul.f32 1.0, %v4845
    %v4847 = vrcp.pop %v4737
    %v4848 = vmul.f32 1.0, %v4847
    %v4849 = vrcp.pop %v4738
    %v4850 = vmul.f32 1.0, %v4849
    %v4851 = vrcp.pop %v4739
    %v4852 = vmul.f32 1.0, %v4851
    %v4853 = vrcp.pop %v4740
    %v4854 = vmul.f32 1.0, %v4853
    %v4855 = vrcp.pop %v4741
    %v4856 = vmul.f32 1.0, %v4855
    %v4857 = vrcp.pop %v4742
    %v4858 = vmul.f32 1.0, %v4857
    %v4859 = vrcp.pop %v4743
    %v4860 = vmul.f32 1.0, %v4859
    %v4861 = vrcp.pop %v4744
    %v4862 = vmul.f32 1.0, %v4861
    %v4863 = vrcp.pop %v4745
    %v4864 = vmul.f32 1.0, %v4863
    %v4865 = vrcp.pop %v4746
    %v4866 = vmul.f32 1.0, %v4865
    %v4867 = vrcp.pop %v4747
    %v4868 = vmul.f32 1.0, %v4867
    %v4869 = vrcp.pop %v4748
    %v4870 = vmul.f32 1.0, %v4869
    %v4871 = vrcp.pop %v4749
    %v4872 = vmul.f32 1.0, %v4871
    %v4873 = vrcp.pop %v4750
    %v4874 = vmul.f32 1.0, %v4873
    %v4875 = vrcp.pop %v4751
    %v4876 = vmul.f32 1.0, %v4875
    %v4877 = vrcp.pop %v4752
    %v4878 = vmul.f32 1.0, %v4877
    %v4879 = vrcp.pop %v4753
    %v4880 = vmul.f32 1.0, %v4879
    %v4881 = vrcp.pop %v4754
    %v4882 = vmul.f32 1.0, %v4881
    %v4883 = vmul.f32 %v4435, %v4756
    %v4884 = vmul.f32 %v4436, %v4758
    %v4885 = vmul.f32 %v4437, %v4760
    %v4886 = vmul.f32 %v4438, %v4762
    %v4887 = vmul.f32 %v4439, %v4764
    %v4888 = vmul.f32 %v4440, %v4766
    %v4889 = vmul.f32 %v4441, %v4768
    %v4890 = vmul.f32 %v4442, %v4770
    %v4891 = vmul.f32 %v4443, %v4772
    %v4892 = vmul.f32 %v4444, %v4774
    %v4893 = vmul.f32 %v4445, %v4776
    %v4894 = vmul.f32 %v4446, %v4778
    %v4895 = vmul.f32 %v4447, %v4780
    %v4896 = vmul.f32 %v4448, %v4782
    %v4897 = vmul.f32 %v4449, %v4784
    %v4898 = vmul.f32 %v4450, %v4786
    %v4899 = vmul.f32 %v4451, %v4788
    %v4900 = vmul.f32 %v4452, %v4790
    %v4901 = vmul.f32 %v4453, %v4792
    %v4902 = vmul.f32 %v4454, %v4794
    %v4903 = vmul.f32 %v4455, %v4796
    %v4904 = vmul.f32 %v4456, %v4798
    %v4905 = vmul.f32 %v4457, %v4800
    %v4906 = vmul.f32 %v4458, %v4802
    %v4907 = vmul.f32 %v4459, %v4804
    %v4908 = vmul.f32 %v4460, %v4806
    %v4909 = vmul.f32 %v4461, %v4808
    %v4910 = vmul.f32 %v4462, %v4810
    %v4911 = vmul.f32 %v4463, %v4812
    %v4912 = vmul.f32 %v4464, %v4814
    %v4913 = vmul.f32 %v4465, %v4816
    %v4914 = vmul.f32 %v4466, %v4818
    %v4915 = vmul.f32 %v4467, %v4820
    %v4916 = vmul.f32 %v4468, %v4822
    %v4917 = vmul.f32 %v4469, %v4824
    %v4918 = vmul.f32 %v4470, %v4826
    %v4919 = vmul.f32 %v4471, %v4828
    %v4920 = vmul.f32 %v4472, %v4830
    %v4921 = vmul.f32 %v4473, %v4832
    %v4922 = vmul.f32 %v4474, %v4834
    %v4923 = vmul.f32 %v4475, %v4836
    %v4924 = vmul.f32 %v4476, %v4838
    %v4925 = vmul.f32 %v4477, %v4840
    %v4926 = vmul.f32 %v4478, %v4842
    %v4927 = vmul.f32 %v4479, %v4844
    %v4928 = vmul.f32 %v4480, %v4846
    %v4929 = vmul.f32 %v4481, %v4848
    %v4930 = vmul.f32 %v4482, %v4850
    %v4931 = vmul.f32 %v4483, %v4852
    %v4932 = vmul.f32 %v4484, %v4854
    %v4933 = vmul.f32 %v4485, %v4856
    %v4934 = vmul.f32 %v4486, %v4858
    %v4935 = vmul.f32 %v4487, %v4860
    %v4936 = vmul.f32 %v4488, %v4862
    %v4937 = vmul.f32 %v4489, %v4864
    %v4938 = vmul.f32 %v4490, %v4866
    %v4939 = vmul.f32 %v4491, %v4868
    %v4940 = vmul.f32 %v4492, %v4870
    %v4941 = vmul.f32 %v4493, %v4872
    %v4942 = vmul.f32 %v4494, %v4874
    %v4943 = vmul.f32 %v4495, %v4876
    %v4944 = vmul.f32 %v4496, %v4878
    %v4945 = vmul.f32 %v4497, %v4880
    %v4946 = vmul.f32 %v4498, %v4882
    %v4947 = vld [vmem:[%s3] sm:$0xff]
    %v4948 = vld [vmem:[%s3 + $0x8] sm:$0xff]
    %v4949 = vld [vmem:[%s3 + $0x10] sm:$0xff]
    %v4950 = vld [vmem:[%s3 + $0x18] sm:$0xff]
    %v4951 = vld [vmem:[%s3 + $0x20] sm:$0xff]
    %v4952 = vld [vmem:[%s3 + $0x28] sm:$0xff]
    %v4953 = vld [vmem:[%s3 + $0x30] sm:$0xff]
    %v4954 = vld [vmem:[%s3 + $0x38] sm:$0xff]
    %v4955 = vld [vmem:[%s3 + $0x40] sm:$0xff]
    %v4956 = vld [vmem:[%s3 + $0x48] sm:$0xff]
    %v4957 = vld [vmem:[%s3 + $0x50] sm:$0xff]
    %v4958 = vld [vmem:[%s3 + $0x58] sm:$0xff]
    %v4959 = vld [vmem:[%s3 + $0x60] sm:$0xff]
    %v4960 = vld [vmem:[%s3 + $0x68] sm:$0xff]
    %v4961 = vld [vmem:[%s3 + $0x70] sm:$0xff]
    %v4962 = vld [vmem:[%s3 + $0x78] sm:$0xff]
    %v4963 = vld [vmem:[#allocation5] sm:$0x1]
    %v4965 = vlaneseq
    %v4966 = vshrl.u32 %v4965, 7
    %v4967 = vsub.s32 0, %v4966
    %v4968 = vrot.slane %v4963, %v4967
    %4970 = vmatprep.subr.mxu0 0.0
    %4971 = vmatpush1.msra.mxu0 %v4947
    %4972 = vmatprep.subr.mxu0 0.0
    %4973 = vmatpush1.msra.mxu0 %v4948
    %4974 = vmatprep.subr.mxu0 0.0
    %4975 = vmatpush1.msra.mxu0 %v4949
    %4976 = vmatprep.subr.mxu0 0.0
    %4977 = vmatpush1.msra.mxu0 %v4950
    %4978 = vmatprep.subr.mxu0 0.0
    %4979 = vmatpush1.msra.mxu0 %v4951
    %4980 = vmatprep.subr.mxu0 0.0
    %4981 = vmatpush1.msra.mxu0 %v4952
    %4982 = vmatprep.subr.mxu0 0.0
    %4983 = vmatpush1.msra.mxu0 %v4953
    %4984 = vmatprep.subr.mxu0 0.0
    %4985 = vmatpush1.msra.mxu0 %v4954
    %4986 = vmatprep.subr.mxu0 0.0
    %4987 = vmatpush1.msra.mxu0 %v4955
    %4988 = vmatprep.subr.mxu0 0.0
    %4989 = vmatpush1.msra.mxu0 %v4956
    %4990 = vmatprep.subr.mxu0 0.0
    %4991 = vmatpush1.msra.mxu0 %v4957
    %4992 = vmatprep.subr.mxu0 0.0
    %4993 = vmatpush1.msra.mxu0 %v4958
    %4994 = vmatprep.subr.mxu0 0.0
    %4995 = vmatpush1.msra.mxu0 %v4959
    %4996 = vmatprep.subr.mxu0 0.0
    %4997 = vmatpush1.msra.mxu0 %v4960
    %4998 = vmatprep.subr.mxu0 0.0
    %4999 = vmatpush1.msra.mxu0 %v4961
    %5000 = vmatprep.subr.mxu0 0.0
    %5001 = vmatpush1.msra.mxu0 %v4962
    %5002 = vmatprep.subr.mxu0 0.0
    %5003 = vmatpush1.msra.mxu0 0.0
    %5004 = vmatprep.subr.mxu0 0.0
    %5005 = vmatpush1.msra.mxu0 0.0
    %5006 = vmatprep.subr.mxu0 0.0
    %5007 = vmatpush1.msra.mxu0 0.0
    %5008 = vmatprep.subr.mxu0 0.0
    %5009 = vmatpush1.msra.mxu0 0.0
    %5010 = vmatprep.subr.mxu0 0.0
    %5011 = vmatpush1.msra.mxu0 0.0
    %5012 = vmatprep.subr.mxu0 0.0
    %5013 = vmatpush1.msra.mxu0 0.0
    %5014 = vmatprep.subr.mxu0 0.0
    %5015 = vmatpush1.msra.mxu0 0.0
    %5016 = vmatprep.subr.mxu0 0.0
    %5017 = vmatpush1.msra.mxu0 0.0
    %5018 = vmatprep.subr.mxu0 0.0
    %5019 = vmatpush1.msra.mxu0 0.0
    %5020 = vmatprep.subr.mxu0 0.0
    %5021 = vmatpush1.msra.mxu0 0.0
    %5022 = vmatprep.subr.mxu0 0.0
    %5023 = vmatpush1.msra.mxu0 0.0
    %5024 = vmatprep.subr.mxu0 0.0
    %5025 = vmatpush1.msra.mxu0 0.0
    %5026 = vmatprep.subr.mxu0 0.0
    %5027 = vmatpush1.msra.mxu0 0.0
    %5028 = vmatprep.subr.mxu0 0.0
    %5029 = vmatpush1.msra.mxu0 0.0
    %5030 = vmatprep.subr.mxu0 0.0
    %5031 = vmatpush1.msra.mxu0 0.0
    %5032 = vmatprep.subr.mxu0 0.0
    %5033 = vmatpush1.msra.mxu0 0.0
    %5034 = vmatprep.mubr.f32.mxu0 0.0
    %5035 = vmatmul.mubr.f32.gmra.mrb[0].mxu0 %v4883
    %v5036 = vpop.f32.mrb[0].mxu0
    %v5037 = vadd.f32 %v4968, %v5036
    %v5038 = vpop.f32.mrb[0].mxu0
    %5039 = vmatprep.mubr.f32.mxu0 0.0
    %5040 = vmatmul.mubr.f32.gmra.mrb[0].mxu0 %v4884
    %v5041 = vpop.f32.mrb[0].mxu0
    %v5042 = vadd.f32 %v4968, %v5041
    %v5043 = vpop.f32.mrb[0].mxu0
    %5044 = vmatprep.mubr.f32.mxu0 0.0
    %5045 = vmatmul.mubr.f32.gmra.mrb[0].mxu0 %v4885
    %v5046 = vpop.f32.mrb[0].mxu0
    %v5047 = vadd.f32 %v4968, %v5046
    %v5048 = vpop.f32.mrb[0].mxu0
    %5049 = vmatprep.mubr.f32.mxu0 0.0
    %5050 = vmatmul.mubr.f32.gmra.mrb[0].mxu0 %v4886
    %v5051 = vpop.f32.mrb[0].mxu0
    %v5052 = vadd.f32 %v4968, %v5051
    %v5053 = vpop.f32.mrb[0].mxu0
    %5054 = vmatprep.mubr.f32.mxu0 0.0
    %5055 = vmatmul.mubr.f32.gmra.mrb[0].mxu0 %v4887
    %v5056 = vpop.f32.mrb[0].mxu0
    %v5057 = vadd.f32 %v4968, %v5056
    %v5058 = vpop.f32.mrb[0].mxu0
    %5059 = vmatprep.mubr.f32.mxu0 0.0
    %5060 = vmatmul.mubr.f32.gmra.mrb[0].mxu0 %v4888
    %v5061 = vpop.f32.mrb[0].mxu0
    %v5062 = vadd.f32 %v4968, %v5061
    %v5063 = vpop.f32.mrb[0].mxu0
    %5064 = vmatprep.mubr.f32.mxu0 0.0
    %5065 = vmatmul.mubr.f32.gmra.mrb[0].mxu0 %v4889
    %v5066 = vpop.f32.mrb[0].mxu0
    %v5067 = vadd.f32 %v4968, %v5066
    %v5068 = vpop.f32.mrb[0].mxu0
    %5069 = vmatprep.mubr.f32.mxu0 0.0
    %5070 = vmatmul.mubr.f32.gmra.mrb[0].mxu0 %v4890
    %v5071 = vpop.f32.mrb[0].mxu0
    %v5072 = vadd.f32 %v4968, %v5071
    %v5073 = vpop.f32.mrb[0].mxu0
    %5074 = vmatprep.mubr.f32.mxu0 0.0
    %5075 = vmatmul.mubr.f32.gmra.mrb[0].mxu0 %v4891
    %v5076 = vpop.f32.mrb[0].mxu0
    %v5077 = vadd.f32 %v4968, %v5076
    %v5078 = vpop.f32.mrb[0].mxu0
    %5079 = vmatprep.mubr.f32.mxu0 0.0
    %5080 = vmatmul.mubr.f32.gmra.mrb[0].mxu0 %v4892
    %v5081 = vpop.f32.mrb[0].mxu0
    %v5082 = vadd.f32 %v4968, %v5081
    %v5083 = vpop.f32.mrb[0].mxu0
    %5084 = vmatprep.mubr.f32.mxu0 0.0
    %5085 = vmatmul.mubr.f32.gmra.mrb[0].mxu0 %v4893
    %v5086 = vpop.f32.mrb[0].mxu0
    %v5087 = vadd.f32 %v4968, %v5086
    %v5088 = vpop.f32.mrb[0].mxu0
    %5089 = vmatprep.mubr.f32.mxu0 0.0
    %5090 = vmatmul.mubr.f32.gmra.mrb[0].mxu0 %v4894
    %v5091 = vpop.f32.mrb[0].mxu0
    %v5092 = vadd.f32 %v4968, %v5091
    %v5093 = vpop.f32.mrb[0].mxu0
    %5094 = vmatprep.mubr.f32.mxu0 0.0
    %5095 = vmatmul.mubr.f32.gmra.mrb[0].mxu0 %v4895
    %v5096 = vpop.f32.mrb[0].mxu0
    %v5097 = vadd.f32 %v4968, %v5096
    %v5098 = vpop.f32.mrb[0].mxu0
    %5099 = vmatprep.mubr.f32.mxu0 0.0
    %5100 = vmatmul.mubr.f32.gmra.mrb[0].mxu0 %v4896
    %v5101 = vpop.f32.mrb[0].mxu0
    %v5102 = vadd.f32 %v4968, %v5101
    %v5103 = vpop.f32.mrb[0].mxu0
    %5104 = vmatprep.mubr.f32.mxu0 0.0
    %5105 = vmatmul.mubr.f32.gmra.mrb[0].mxu0 %v4897
    %v5106 = vpop.f32.mrb[0].mxu0
    %v5107 = vadd.f32 %v4968, %v5106
    %v5108 = vpop.f32.mrb[0].mxu0
    %5109 = vmatprep.mubr.f32.mxu0 0.0
    %5110 = vmatmul.mubr.f32.gmra.mrb[0].mxu0 %v4898
    %v5111 = vpop.f32.mrb[0].mxu0
    %v5112 = vadd.f32 %v4968, %v5111
    %v5113 = vpop.f32.mrb[0].mxu0
    %5114 = vmatprep.mubr.f32.mxu0 0.0
    %5115 = vmatmul.mubr.f32.gmra.mrb[0].mxu0 %v4899
    %v5116 = vpop.f32.mrb[0].mxu0
    %v5117 = vadd.f32 %v4968, %v5116
    %v5118 = vpop.f32.mrb[0].mxu0
    %5119 = vmatprep.mubr.f32.mxu0 0.0
    %5120 = vmatmul.mubr.f32.gmra.mrb[0].mxu0 %v4900
    %v5121 = vpop.f32.mrb[0].mxu0
    %v5122 = vadd.f32 %v4968, %v5121
    %v5123 = vpop.f32.mrb[0].mxu0
    %5124 = vmatprep.mubr.f32.mxu0 0.0
    %5125 = vmatmul.mubr.f32.gmra.mrb[0].mxu0 %v4901
    %v5126 = vpop.f32.mrb[0].mxu0
    %v5127 = vadd.f32 %v4968, %v5126
    %v5128 = vpop.f32.mrb[0].mxu0
    %5129 = vmatprep.mubr.f32.mxu0 0.0
    %5130 = vmatmul.mubr.f32.gmra.mrb[0].mxu0 %v4902
    %v5131 = vpop.f32.mrb[0].mxu0
    %v5132 = vadd.f32 %v4968, %v5131
    %v5133 = vpop.f32.mrb[0].mxu0
    %5134 = vmatprep.mubr.f32.mxu0 0.0
    %5135 = vmatmul.mubr.f32.gmra.mrb[0].mxu0 %v4903
    %v5136 = vpop.f32.mrb[0].mxu0
    %v5137 = vadd.f32 %v4968, %v5136
    %v5138 = vpop.f32.mrb[0].mxu0
    %5139 = vmatprep.mubr.f32.mxu0 0.0
    %5140 = vmatmul.mubr.f32.gmra.mrb[0].mxu0 %v4904
    %v5141 = vpop.f32.mrb[0].mxu0
    %v5142 = vadd.f32 %v4968, %v5141
    %v5143 = vpop.f32.mrb[0].mxu0
    %5144 = vmatprep.mubr.f32.mxu0 0.0
    %5145 = vmatmul.mubr.f32.gmra.mrb[0].mxu0 %v4905
    %v5146 = vpop.f32.mrb[0].mxu0
    %v5147 = vadd.f32 %v4968, %v5146
    %v5148 = vpop.f32.mrb[0].mxu0
    %5149 = vmatprep.mubr.f32.mxu0 0.0
    %5150 = vmatmul.mubr.f32.gmra.mrb[0].mxu0 %v4906
    %v5151 = vpop.f32.mrb[0].mxu0
    %v5152 = vadd.f32 %v4968, %v5151
    %v5153 = vpop.f32.mrb[0].mxu0
    %5154 = vmatprep.mubr.f32.mxu0 0.0
    %5155 = vmatmul.mubr.f32.gmra.mrb[0].mxu0 %v4907
    %v5156 = vpop.f32.mrb[0].mxu0
    %v5157 = vadd.f32 %v4968, %v5156
    %v5158 = vpop.f32.mrb[0].mxu0
    %5159 = vmatprep.mubr.f32.mxu0 0.0
    %5160 = vmatmul.mubr.f32.gmra.mrb[0].mxu0 %v4908
    %v5161 = vpop.f32.mrb[0].mxu0
    %v5162 = vadd.f32 %v4968, %v5161
    %v5163 = vpop.f32.mrb[0].mxu0
    %5164 = vmatprep.mubr.f32.mxu0 0.0
    %5165 = vmatmul.mubr.f32.gmra.mrb[0].mxu0 %v4909
    %v5166 = vpop.f32.mrb[0].mxu0
    %v5167 = vadd.f32 %v4968, %v5166
    %v5168 = vpop.f32.mrb[0].mxu0
    %5169 = vmatprep.mubr.f32.mxu0 0.0
    %5170 = vmatmul.mubr.f32.gmra.mrb[0].mxu0 %v4910
    %v5171 = vpop.f32.mrb[0].mxu0
    %v5172 = vadd.f32 %v4968, %v5171
    %v5173 = vpop.f32.mrb[0].mxu0
    %5174 = vmatprep.mubr.f32.mxu0 0.0
    %5175 = vmatmul.mubr.f32.gmra.mrb[0].mxu0 %v4911
    %v5176 = vpop.f32.mrb[0].mxu0
    %v5177 = vadd.f32 %v4968, %v5176
    %v5178 = vpop.f32.mrb[0].mxu0
    %5179 = vmatprep.mubr.f32.mxu0 0.0
    %5180 = vmatmul.mubr.f32.gmra.mrb[0].mxu0 %v4912
    %v5181 = vpop.f32.mrb[0].mxu0
    %v5182 = vadd.f32 %v4968, %v5181
    %v5183 = vpop.f32.mrb[0].mxu0
    %5184 = vmatprep.mubr.f32.mxu0 0.0
    %5185 = vmatmul.mubr.f32.gmra.mrb[0].mxu0 %v4913
    %v5186 = vpop.f32.mrb[0].mxu0
    %v5187 = vadd.f32 %v4968, %v5186
    %v5188 = vpop.f32.mrb[0].mxu0
    %5189 = vmatprep.mubr.f32.mxu0 0.0
    %5190 = vmatmul.mubr.f32.gmra.mrb[0].mxu0 %v4914
    %v5191 = vpop.f32.mrb[0].mxu0
    %v5192 = vadd.f32 %v4968, %v5191
    %v5193 = vpop.f32.mrb[0].mxu0
    %5194 = vmatprep.mubr.f32.mxu0 0.0
    %5195 = vmatmul.mubr.f32.gmra.mrb[0].mxu0 %v4915
    %v5196 = vpop.f32.mrb[0].mxu0
    %v5197 = vadd.f32 %v4968, %v5196
    %v5198 = vpop.f32.mrb[0].mxu0
    %5199 = vmatprep.mubr.f32.mxu0 0.0
    %5200 = vmatmul.mubr.f32.gmra.mrb[0].mxu0 %v4916
    %v5201 = vpop.f32.mrb[0].mxu0
    %v5202 = vadd.f32 %v4968, %v5201
    %v5203 = vpop.f32.mrb[0].mxu0
    %5204 = vmatprep.mubr.f32.mxu0 0.0
    %5205 = vmatmul.mubr.f32.gmra.mrb[0].mxu0 %v4917
    %v5206 = vpop.f32.mrb[0].mxu0
    %v5207 = vadd.f32 %v4968, %v5206
    %v5208 = vpop.f32.mrb[0].mxu0
    %5209 = vmatprep.mubr.f32.mxu0 0.0
    %5210 = vmatmul.mubr.f32.gmra.mrb[0].mxu0 %v4918
    %v5211 = vpop.f32.mrb[0].mxu0
    %v5212 = vadd.f32 %v4968, %v5211
    %v5213 = vpop.f32.mrb[0].mxu0
    %5214 = vmatprep.mubr.f32.mxu0 0.0
    %5215 = vmatmul.mubr.f32.gmra.mrb[0].mxu0 %v4919
    %v5216 = vpop.f32.mrb[0].mxu0
    %v5217 = vadd.f32 %v4968, %v5216
    %v5218 = vpop.f32.mrb[0].mxu0
    %5219 = vmatprep.mubr.f32.mxu0 0.0
    %5220 = vmatmul.mubr.f32.gmra.mrb[0].mxu0 %v4920
    %v5221 = vpop.f32.mrb[0].mxu0
    %v5222 = vadd.f32 %v4968, %v5221
    %v5223 = vpop.f32.mrb[0].mxu0
    %5224 = vmatprep.mubr.f32.mxu0 0.0
    %5225 = vmatmul.mubr.f32.gmra.mrb[0].mxu0 %v4921
    %v5226 = vpop.f32.mrb[0].mxu0
    %v5227 = vadd.f32 %v4968, %v5226
    %v5228 = vpop.f32.mrb[0].mxu0
    %5229 = vmatprep.mubr.f32.mxu0 0.0
    %5230 = vmatmul.mubr.f32.gmra.mrb[0].mxu0 %v4922
    %v5231 = vpop.f32.mrb[0].mxu0
    %v5232 = vadd.f32 %v4968, %v5231
    %v5233 = vpop.f32.mrb[0].mxu0
    %5234 = vmatprep.mubr.f32.mxu0 0.0
    %5235 = vmatmul.mubr.f32.gmra.mrb[0].mxu0 %v4923
    %v5236 = vpop.f32.mrb[0].mxu0
    %v5237 = vadd.f32 %v4968, %v5236
    %v5238 = vpop.f32.mrb[0].mxu0
    %5239 = vmatprep.mubr.f32.mxu0 0.0
    %5240 = vmatmul.mubr.f32.gmra.mrb[0].mxu0 %v4924
    %v5241 = vpop.f32.mrb[0].mxu0
    %v5242 = vadd.f32 %v4968, %v5241
    %v5243 = vpop.f32.mrb[0].mxu0
    %5244 = vmatprep.mubr.f32.mxu0 0.0
    %5245 = vmatmul.mubr.f32.gmra.mrb[0].mxu0 %v4925
    %v5246 = vpop.f32.mrb[0].mxu0
    %v5247 = vadd.f32 %v4968, %v5246
    %v5248 = vpop.f32.mrb[0].mxu0
    %5249 = vmatprep.mubr.f32.mxu0 0.0
    %5250 = vmatmul.mubr.f32.gmra.mrb[0].mxu0 %v4926
    %v5251 = vpop.f32.mrb[0].mxu0
    %v5252 = vadd.f32 %v4968, %v5251
    %v5253 = vpop.f32.mrb[0].mxu0
    %5254 = vmatprep.mubr.f32.mxu0 0.0
    %5255 = vmatmul.mubr.f32.gmra.mrb[0].mxu0 %v4927
    %v5256 = vpop.f32.mrb[0].mxu0
    %v5257 = vadd.f32 %v4968, %v5256
    %v5258 = vpop.f32.mrb[0].mxu0
    %5259 = vmatprep.mubr.f32.mxu0 0.0
    %5260 = vmatmul.mubr.f32.gmra.mrb[0].mxu0 %v4928
    %v5261 = vpop.f32.mrb[0].mxu0
    %v5262 = vadd.f32 %v4968, %v5261
    %v5263 = vpop.f32.mrb[0].mxu0
    %5264 = vmatprep.mubr.f32.mxu0 0.0
    %5265 = vmatmul.mubr.f32.gmra.mrb[0].mxu0 %v4929
    %v5266 = vpop.f32.mrb[0].mxu0
    %v5267 = vadd.f32 %v4968, %v5266
    %v5268 = vpop.f32.mrb[0].mxu0
    %5269 = vmatprep.mubr.f32.mxu0 0.0
    %5270 = vmatmul.mubr.f32.gmra.mrb[0].mxu0 %v4930
    %v5271 = vpop.f32.mrb[0].mxu0
    %v5272 = vadd.f32 %v4968, %v5271
    %v5273 = vpop.f32.mrb[0].mxu0
    %5274 = vmatprep.mubr.f32.mxu0 0.0
    %5275 = vmatmul.mubr.f32.gmra.mrb[0].mxu0 %v4931
    %v5276 = vpop.f32.mrb[0].mxu0
    %v5277 = vadd.f32 %v4968, %v5276
    %v5278 = vpop.f32.mrb[0].mxu0
    %5279 = vmatprep.mubr.f32.mxu0 0.0
    %5280 = vmatmul.mubr.f32.gmra.mrb[0].mxu0 %v4932
    %v5281 = vpop.f32.mrb[0].mxu0
    %v5282 = vadd.f32 %v4968, %v5281
    %v5283 = vpop.f32.mrb[0].mxu0
    %5284 = vmatprep.mubr.f32.mxu0 0.0
    %5285 = vmatmul.mubr.f32.gmra.mrb[0].mxu0 %v4933
    %v5286 = vpop.f32.mrb[0].mxu0
    %v5287 = vadd.f32 %v4968, %v5286
    %v5288 = vpop.f32.mrb[0].mxu0
    %5289 = vmatprep.mubr.f32.mxu0 0.0
    %5290 = vmatmul.mubr.f32.gmra.mrb[0].mxu0 %v4934
    %v5291 = vpop.f32.mrb[0].mxu0
    %v5292 = vadd.f32 %v4968, %v5291
    %v5293 = vpop.f32.mrb[0].mxu0
    %5294 = vmatprep.mubr.f32.mxu0 0.0
    %5295 = vmatmul.mubr.f32.gmra.mrb[0].mxu0 %v4935
    %v5296 = vpop.f32.mrb[0].mxu0
    %v5297 = vadd.f32 %v4968, %v5296
    %v5298 = vpop.f32.mrb[0].mxu0
    %5299 = vmatprep.mubr.f32.mxu0 0.0
    %5300 = vmatmul.mubr.f32.gmra.mrb[0].mxu0 %v4936
    %v5301 = vpop.f32.mrb[0].mxu0
    %v5302 = vadd.f32 %v4968, %v5301
    %v5303 = vpop.f32.mrb[0].mxu0
    %5304 = vmatprep.mubr.f32.mxu0 0.0
    %5305 = vmatmul.mubr.f32.gmra.mrb[0].mxu0 %v4937
    %v5306 = vpop.f32.mrb[0].mxu0
    %v5307 = vadd.f32 %v4968, %v5306
    %v5308 = vpop.f32.mrb[0].mxu0
    %5309 = vmatprep.mubr.f32.mxu0 0.0
    %5310 = vmatmul.mubr.f32.gmra.mrb[0].mxu0 %v4938
    %v5311 = vpop.f32.mrb[0].mxu0
    %v5312 = vadd.f32 %v4968, %v5311
    %v5313 = vpop.f32.mrb[0].mxu0
    %5314 = vmatprep.mubr.f32.mxu0 0.0
    %5315 = vmatmul.mubr.f32.gmra.mrb[0].mxu0 %v4939
    %v5316 = vpop.f32.mrb[0].mxu0
    %v5317 = vadd.f32 %v4968, %v5316
    %v5318 = vpop.f32.mrb[0].mxu0
    %5319 = vmatprep.mubr.f32.mxu0 0.0
    %5320 = vmatmul.mubr.f32.gmra.mrb[0].mxu0 %v4940
    %v5321 = vpop.f32.mrb[0].mxu0
    %v5322 = vadd.f32 %v4968, %v5321
    %v5323 = vpop.f32.mrb[0].mxu0
    %5324 = vmatprep.mubr.f32.mxu0 0.0
    %5325 = vmatmul.mubr.f32.gmra.mrb[0].mxu0 %v4941
    %v5326 = vpop.f32.mrb[0].mxu0
    %v5327 = vadd.f32 %v4968, %v5326
    %v5328 = vpop.f32.mrb[0].mxu0
    %5329 = vmatprep.mubr.f32.mxu0 0.0
    %5330 = vmatmul.mubr.f32.gmra.mrb[0].mxu0 %v4942
    %v5331 = vpop.f32.mrb[0].mxu0
    %v5332 = vadd.f32 %v4968, %v5331
    %v5333 = vpop.f32.mrb[0].mxu0
    %5334 = vmatprep.mubr.f32.mxu0 0.0
    %5335 = vmatmul.mubr.f32.gmra.mrb[0].mxu0 %v4943
    %v5336 = vpop.f32.mrb[0].mxu0
    %v5337 = vadd.f32 %v4968, %v5336
    %v5338 = vpop.f32.mrb[0].mxu0
    %5339 = vmatprep.mubr.f32.mxu0 0.0
    %5340 = vmatmul.mubr.f32.gmra.mrb[0].mxu0 %v4944
    %v5341 = vpop.f32.mrb[0].mxu0
    %v5342 = vadd.f32 %v4968, %v5341
    %v5343 = vpop.f32.mrb[0].mxu0
    %5344 = vmatprep.mubr.f32.mxu0 0.0
    %5345 = vmatmul.mubr.f32.gmra.mrb[0].mxu0 %v4945
    %v5346 = vpop.f32.mrb[0].mxu0
    %v5347 = vadd.f32 %v4968, %v5346
    %v5348 = vpop.f32.mrb[0].mxu0
    %5349 = vmatprep.mubr.f32.mxu0 0.0
    %5350 = vmatmul.mubr.f32.gmra.mrb[0].mxu0 %v4946
    %v5351 = vpop.f32.mrb[0].mxu0
    %v5352 = vadd.f32 %v4968, %v5351
    %v5353 = vpop.f32.mrb[0].mxu0
    %5354 = vdwg.mxu0
    %v5355 = vlaneseq
    %v5356 = vand.u32 %v5355, 127
    %v5357 = vadd.s32 %v5356, 128
    %v5358 = vadd.s32 %v5356, 256
    %v5359 = vadd.s32 %v5356, 384
    %v5360 = vadd.s32 %v5356, %v130
    %v5361 = vadd.s32 %v5357, %v130
    %v5362 = vadd.s32 %v5358, %v130
    %v5363 = vadd.s32 %v5359, %v130
    %vm5364 = vcmp.lt.s32.totalorder %v5360, 500
    %vm5365 = vcmp.lt.s32.totalorder %v5361, 500
    %vm5366 = vcmp.lt.s32.totalorder %v5362, 500
    %vm5367 = vcmp.lt.s32.totalorder %v5363, 500
    %5432 = vset.pattern.permute.xlu0 0
    %5433 = vperm.xlu0 %5432, %v5037
    %v5434 = vpop.permute.xlu0 %5433
    %5435 = vset.pattern.permute.xlu0 0
    %5436 = vperm.xlu0 %5435, %v5042
    %v5437 = vpop.permute.xlu0 %5436
    %5438 = vset.pattern.permute.xlu0 0
    %5439 = vperm.xlu0 %5438, %v5047
    %v5440 = vpop.permute.xlu0 %5439
    %5441 = vset.pattern.permute.xlu0 0
    %5442 = vperm.xlu0 %5441, %v5052
    %v5443 = vpop.permute.xlu0 %5442
    %5444 = vset.pattern.permute.xlu0 0
    %5445 = vperm.xlu0 %5444, %v5057
    %v5446 = vpop.permute.xlu0 %5445
    %5447 = vset.pattern.permute.xlu0 0
    %5448 = vperm.xlu0 %5447, %v5062
    %v5449 = vpop.permute.xlu0 %5448
    %5450 = vset.pattern.permute.xlu0 0
    %5451 = vperm.xlu0 %5450, %v5067
    %v5452 = vpop.permute.xlu0 %5451
    %5453 = vset.pattern.permute.xlu0 0
    %5454 = vperm.xlu0 %5453, %v5072
    %v5455 = vpop.permute.xlu0 %5454
    %5456 = vset.pattern.permute.xlu0 0
    %5457 = vperm.xlu0 %5456, %v5077
    %v5458 = vpop.permute.xlu0 %5457
    %5459 = vset.pattern.permute.xlu0 0
    %5460 = vperm.xlu0 %5459, %v5082
    %v5461 = vpop.permute.xlu0 %5460
    %5462 = vset.pattern.permute.xlu0 0
    %5463 = vperm.xlu0 %5462, %v5087
    %v5464 = vpop.permute.xlu0 %5463
    %5465 = vset.pattern.permute.xlu0 0
    %5466 = vperm.xlu0 %5465, %v5092
    %v5467 = vpop.permute.xlu0 %5466
    %5468 = vset.pattern.permute.xlu0 0
    %5469 = vperm.xlu0 %5468, %v5097
    %v5470 = vpop.permute.xlu0 %5469
    %5471 = vset.pattern.permute.xlu0 0
    %5472 = vperm.xlu0 %5471, %v5102
    %v5473 = vpop.permute.xlu0 %5472
    %5474 = vset.pattern.permute.xlu0 0
    %5475 = vperm.xlu0 %5474, %v5107
    %v5476 = vpop.permute.xlu0 %5475
    %5477 = vset.pattern.permute.xlu0 0
    %5478 = vperm.xlu0 %5477, %v5112
    %v5479 = vpop.permute.xlu0 %5478
    %5480 = vset.pattern.permute.xlu0 0
    %5481 = vperm.xlu0 %5480, %v5117
    %v5482 = vpop.permute.xlu0 %5481
    %5483 = vset.pattern.permute.xlu0 0
    %5484 = vperm.xlu0 %5483, %v5122
    %v5485 = vpop.permute.xlu0 %5484
    %5486 = vset.pattern.permute.xlu0 0
    %5487 = vperm.xlu0 %5486, %v5127
    %v5488 = vpop.permute.xlu0 %5487
    %5489 = vset.pattern.permute.xlu0 0
    %5490 = vperm.xlu0 %5489, %v5132
    %v5491 = vpop.permute.xlu0 %5490
    %5492 = vset.pattern.permute.xlu0 0
    %5493 = vperm.xlu0 %5492, %v5137
    %v5494 = vpop.permute.xlu0 %5493
    %5495 = vset.pattern.permute.xlu0 0
    %5496 = vperm.xlu0 %5495, %v5142
    %v5497 = vpop.permute.xlu0 %5496
    %5498 = vset.pattern.permute.xlu0 0
    %5499 = vperm.xlu0 %5498, %v5147
    %v5500 = vpop.permute.xlu0 %5499
    %5501 = vset.pattern.permute.xlu0 0
    %5502 = vperm.xlu0 %5501, %v5152
    %v5503 = vpop.permute.xlu0 %5502
    %5504 = vset.pattern.permute.xlu0 0
    %5505 = vperm.xlu0 %5504, %v5157
    %v5506 = vpop.permute.xlu0 %5505
    %5507 = vset.pattern.permute.xlu0 0
    %5508 = vperm.xlu0 %5507, %v5162
    %v5509 = vpop.permute.xlu0 %5508
    %5510 = vset.pattern.permute.xlu0 0
    %5511 = vperm.xlu0 %5510, %v5167
    %v5512 = vpop.permute.xlu0 %5511
    %5513 = vset.pattern.permute.xlu0 0
    %5514 = vperm.xlu0 %5513, %v5172
    %v5515 = vpop.permute.xlu0 %5514
    %5516 = vset.pattern.permute.xlu0 0
    %5517 = vperm.xlu0 %5516, %v5177
    %v5518 = vpop.permute.xlu0 %5517
    %5519 = vset.pattern.permute.xlu0 0
    %5520 = vperm.xlu0 %5519, %v5182
    %v5521 = vpop.permute.xlu0 %5520
    %5522 = vset.pattern.permute.xlu0 0
    %5523 = vperm.xlu0 %5522, %v5187
    %v5524 = vpop.permute.xlu0 %5523
    %5525 = vset.pattern.permute.xlu0 0
    %5526 = vperm.xlu0 %5525, %v5192
    %v5527 = vpop.permute.xlu0 %5526
    %5528 = vset.pattern.permute.xlu0 0
    %5529 = vperm.xlu0 %5528, %v5197
    %v5530 = vpop.permute.xlu0 %5529
    %5531 = vset.pattern.permute.xlu0 0
    %5532 = vperm.xlu0 %5531, %v5202
    %v5533 = vpop.permute.xlu0 %5532
    %5534 = vset.pattern.permute.xlu0 0
    %5535 = vperm.xlu0 %5534, %v5207
    %v5536 = vpop.permute.xlu0 %5535
    %5537 = vset.pattern.permute.xlu0 0
    %5538 = vperm.xlu0 %5537, %v5212
    %v5539 = vpop.permute.xlu0 %5538
    %5540 = vset.pattern.permute.xlu0 0
    %5541 = vperm.xlu0 %5540, %v5217
    %v5542 = vpop.permute.xlu0 %5541
    %5543 = vset.pattern.permute.xlu0 0
    %5544 = vperm.xlu0 %5543, %v5222
    %v5545 = vpop.permute.xlu0 %5544
    %5546 = vset.pattern.permute.xlu0 0
    %5547 = vperm.xlu0 %5546, %v5227
    %v5548 = vpop.permute.xlu0 %5547
    %5549 = vset.pattern.permute.xlu0 0
    %5550 = vperm.xlu0 %5549, %v5232
    %v5551 = vpop.permute.xlu0 %5550
    %5552 = vset.pattern.permute.xlu0 0
    %5553 = vperm.xlu0 %5552, %v5237
    %v5554 = vpop.permute.xlu0 %5553
    %5555 = vset.pattern.permute.xlu0 0
    %5556 = vperm.xlu0 %5555, %v5242
    %v5557 = vpop.permute.xlu0 %5556
    %5558 = vset.pattern.permute.xlu0 0
    %5559 = vperm.xlu0 %5558, %v5247
    %v5560 = vpop.permute.xlu0 %5559
    %5561 = vset.pattern.permute.xlu0 0
    %5562 = vperm.xlu0 %5561, %v5252
    %v5563 = vpop.permute.xlu0 %5562
    %5564 = vset.pattern.permute.xlu0 0
    %5565 = vperm.xlu0 %5564, %v5257
    %v5566 = vpop.permute.xlu0 %5565
    %5567 = vset.pattern.permute.xlu0 0
    %5568 = vperm.xlu0 %5567, %v5262
    %v5569 = vpop.permute.xlu0 %5568
    %5570 = vset.pattern.permute.xlu0 0
    %5571 = vperm.xlu0 %5570, %v5267
    %v5572 = vpop.permute.xlu0 %5571
    %5573 = vset.pattern.permute.xlu0 0
    %5574 = vperm.xlu0 %5573, %v5272
    %v5575 = vpop.permute.xlu0 %5574
    %5576 = vset.pattern.permute.xlu0 0
    %5577 = vperm.xlu0 %5576, %v5277
    %v5578 = vpop.permute.xlu0 %5577
    %5579 = vset.pattern.permute.xlu0 0
    %5580 = vperm.xlu0 %5579, %v5282
    %v5581 = vpop.permute.xlu0 %5580
    %5582 = vset.pattern.permute.xlu0 0
    %5583 = vperm.xlu0 %5582, %v5287
    %v5584 = vpop.permute.xlu0 %5583
    %5585 = vset.pattern.permute.xlu0 0
    %5586 = vperm.xlu0 %5585, %v5292
    %v5587 = vpop.permute.xlu0 %5586
    %5588 = vset.pattern.permute.xlu0 0
    %5589 = vperm.xlu0 %5588, %v5297
    %v5590 = vpop.permute.xlu0 %5589
    %5591 = vset.pattern.permute.xlu0 0
    %5592 = vperm.xlu0 %5591, %v5302
    %v5593 = vpop.permute.xlu0 %5592
    %5594 = vset.pattern.permute.xlu0 0
    %5595 = vperm.xlu0 %5594, %v5307
    %v5596 = vpop.permute.xlu0 %5595
    %5597 = vset.pattern.permute.xlu0 0
    %5598 = vperm.xlu0 %5597, %v5312
    %v5599 = vpop.permute.xlu0 %5598
    %5600 = vset.pattern.permute.xlu0 0
    %5601 = vperm.xlu0 %5600, %v5317
    %v5602 = vpop.permute.xlu0 %5601
    %5603 = vset.pattern.permute.xlu0 0
    %5604 = vperm.xlu0 %5603, %v5322
    %v5605 = vpop.permute.xlu0 %5604
    %5606 = vset.pattern.permute.xlu0 0
    %5607 = vperm.xlu0 %5606, %v5327
    %v5608 = vpop.permute.xlu0 %5607
    %5609 = vset.pattern.permute.xlu0 0
    %5610 = vperm.xlu0 %5609, %v5332
    %v5611 = vpop.permute.xlu0 %5610
    %5612 = vset.pattern.permute.xlu0 0
    %5613 = vperm.xlu0 %5612, %v5337
    %v5614 = vpop.permute.xlu0 %5613
    %5615 = vset.pattern.permute.xlu0 0
    %5616 = vperm.xlu0 %5615, %v5342
    %v5617 = vpop.permute.xlu0 %5616
    %5618 = vset.pattern.permute.xlu0 0
    %5619 = vperm.xlu0 %5618, %v5347
    %v5620 = vpop.permute.xlu0 %5619
    %5621 = vset.pattern.permute.xlu0 0
    %5622 = vperm.xlu0 %5621, %v5352
    %v5623 = vpop.permute.xlu0 %5622
    %v5624 = vlaneseq
    %v5625 = vshrl.u32 %v5624, 7
    %v5626 = vsub.s32 %v5356, %v5625
    %v5627 = vrot.slane %v5434, %v5626
    %v5628 = vadd.s32 %v5356, 4294967288
    %v5629 = vlaneseq
    %v5630 = vshrl.u32 %v5629, 7
    %v5631 = vsub.s32 %v5628, %v5630
    %v5632 = vrot.slane %v5437, %v5631
    %vm5633 = vcmask 130112
    %v5634 = vsel %vm5633, %v5632, %v5627
    %v5635 = vadd.s32 %v5356, 4294967280
    %v5636 = vlaneseq
    %v5637 = vshrl.u32 %v5636, 7
    %v5638 = vsub.s32 %v5635, %v5637
    %v5639 = vrot.slane %v5440, %v5638
    %vm5640 = vcmask 195712
    %v5641 = vsel %vm5640, %v5639, %v5634
    %v5642 = vadd.s32 %v5356, 4294967272
    %v5643 = vlaneseq
    %v5644 = vshrl.u32 %v5643, 7
    %v5645 = vsub.s32 %v5642, %v5644
    %v5646 = vrot.slane %v5443, %v5645
    %vm5647 = vcmask 261312
    %v5648 = vsel %vm5647, %v5646, %v5641
    %v5649 = vadd.s32 %v5356, 4294967264
    %v5650 = vlaneseq
    %v5651 = vshrl.u32 %v5650, 7
    %v5652 = vsub.s32 %v5649, %v5651
    %v5653 = vrot.slane %v5446, %v5652
    %vm5654 = vcmask 326912
    %v5655 = vsel %vm5654, %v5653, %v5648
    %v5656 = vadd.s32 %v5356, 4294967256
    %v5657 = vlaneseq
    %v5658 = vshrl.u32 %v5657, 7
    %v5659 = vsub.s32 %v5656, %v5658
    %v5660 = vrot.slane %v5449, %v5659
    %vm5661 = vcmask 392512
    %v5662 = vsel %vm5661, %v5660, %v5655
    %v5663 = vadd.s32 %v5356, 4294967248
    %v5664 = vlaneseq
    %v5665 = vshrl.u32 %v5664, 7
    %v5666 = vsub.s32 %v5663, %v5665
    %v5667 = vrot.slane %v5452, %v5666
    %vm5668 = vcmask 458112
    %v5669 = vsel %vm5668, %v5667, %v5662
    %v5670 = vadd.s32 %v5356, 4294967240
    %v5671 = vlaneseq
    %v5672 = vshrl.u32 %v5671, 7
    %v5673 = vsub.s32 %v5670, %v5672
    %v5674 = vrot.slane %v5455, %v5673
    %vm5675 = vcmask 523712
    %v5676 = vsel %vm5675, %v5674, %v5669
    %v5677 = vadd.s32 %v5356, 4294967232
    %v5678 = vlaneseq
    %v5679 = vshrl.u32 %v5678, 7
    %v5680 = vsub.s32 %v5677, %v5679
    %v5681 = vrot.slane %v5458, %v5680
    %vm5682 = vcmask 589312
    %v5683 = vsel %vm5682, %v5681, %v5676
    %v5684 = vadd.s32 %v5356, 4294967224
    %v5685 = vlaneseq
    %v5686 = vshrl.u32 %v5685, 7
    %v5687 = vsub.s32 %v5684, %v5686
    %v5688 = vrot.slane %v5461, %v5687
    %vm5689 = vcmask 654912
    %v5690 = vsel %vm5689, %v5688, %v5683
    %v5691 = vadd.s32 %v5356, 4294967216
    %v5692 = vlaneseq
    %v5693 = vshrl.u32 %v5692, 7
    %v5694 = vsub.s32 %v5691, %v5693
    %v5695 = vrot.slane %v5464, %v5694
    %vm5696 = vcmask 720512
    %v5697 = vsel %vm5696, %v5695, %v5690
    %v5698 = vadd.s32 %v5356, 4294967208
    %v5699 = vlaneseq
    %v5700 = vshrl.u32 %v5699, 7
    %v5701 = vsub.s32 %v5698, %v5700
    %v5702 = vrot.slane %v5467, %v5701
    %vm5703 = vcmask 786112
    %v5704 = vsel %vm5703, %v5702, %v5697
    %v5705 = vadd.s32 %v5356, 4294967200
    %v5706 = vlaneseq
    %v5707 = vshrl.u32 %v5706, 7
    %v5708 = vsub.s32 %v5705, %v5707
    %v5709 = vrot.slane %v5470, %v5708
    %vm5710 = vcmask 851712
    %v5711 = vsel %vm5710, %v5709, %v5704
    %v5712 = vadd.s32 %v5356, 4294967192
    %v5713 = vlaneseq
    %v5714 = vshrl.u32 %v5713, 7
    %v5715 = vsub.s32 %v5712, %v5714
    %v5716 = vrot.slane %v5473, %v5715
    %vm5717 = vcmask 917312
    %v5718 = vsel %vm5717, %v5716, %v5711
    %v5719 = vadd.s32 %v5356, 4294967184
    %v5720 = vlaneseq
    %v5721 = vshrl.u32 %v5720, 7
    %v5722 = vsub.s32 %v5719, %v5721
    %v5723 = vrot.slane %v5476, %v5722
    %vm5724 = vcmask 982912
    %v5725 = vsel %vm5724, %v5723, %v5718
    %v5726 = vadd.s32 %v5356, 4294967176
    %v5727 = vlaneseq
    %v5728 = vshrl.u32 %v5727, 7
    %v5729 = vsub.s32 %v5726, %v5728
    %v5730 = vrot.slane %v5479, %v5729
    %vm5731 = vcmask 1048512
    %v5732 = vsel %vm5731, %v5730, %v5725
    %v5733 = vlaneseq
    %v5734 = vshrl.u32 %v5733, 7
    %v5735 = vsub.s32 %v5356, %v5734
    %v5736 = vrot.slane %v5482, %v5735
    %v5737 = vlaneseq
    %v5738 = vshrl.u32 %v5737, 7
    %v5739 = vsub.s32 %v5628, %v5738
    %v5740 = vrot.slane %v5485, %v5739
    %v5741 = vsel %vm5633, %v5740, %v5736
    %v5742 = vlaneseq
    %v5743 = vshrl.u32 %v5742, 7
    %v5744 = vsub.s32 %v5635, %v5743
    %v5745 = vrot.slane %v5488, %v5744
    %v5746 = vsel %vm5640, %v5745, %v5741
    %v5747 = vlaneseq
    %v5748 = vshrl.u32 %v5747, 7
    %v5749 = vsub.s32 %v5642, %v5748
    %v5750 = vrot.slane %v5491, %v5749
    %v5751 = vsel %vm5647, %v5750, %v5746
    %v5752 = vlaneseq
    %v5753 = vshrl.u32 %v5752, 7
    %v5754 = vsub.s32 %v5649, %v5753
    %v5755 = vrot.slane %v5494, %v5754
    %v5756 = vsel %vm5654, %v5755, %v5751
    %v5757 = vlaneseq
    %v5758 = vshrl.u32 %v5757, 7
    %v5759 = vsub.s32 %v5656, %v5758
    %v5760 = vrot.slane %v5497, %v5759
    %v5761 = vsel %vm5661, %v5760, %v5756
    %v5762 = vlaneseq
    %v5763 = vshrl.u32 %v5762, 7
    %v5764 = vsub.s32 %v5663, %v5763
    %v5765 = vrot.slane %v5500, %v5764
    %v5766 = vsel %vm5668, %v5765, %v5761
    %v5767 = vlaneseq
    %v5768 = vshrl.u32 %v5767, 7
    %v5769 = vsub.s32 %v5670, %v5768
    %v5770 = vrot.slane %v5503, %v5769
    %v5771 = vsel %vm5675, %v5770, %v5766
    %v5772 = vlaneseq
    %v5773 = vshrl.u32 %v5772, 7
    %v5774 = vsub.s32 %v5677, %v5773
    %v5775 = vrot.slane %v5506, %v5774
    %v5776 = vsel %vm5682, %v5775, %v5771
    %v5777 = vlaneseq
    %v5778 = vshrl.u32 %v5777, 7
    %v5779 = vsub.s32 %v5684, %v5778
    %v5780 = vrot.slane %v5509, %v5779
    %v5781 = vsel %vm5689, %v5780, %v5776
    %v5782 = vlaneseq
    %v5783 = vshrl.u32 %v5782, 7
    %v5784 = vsub.s32 %v5691, %v5783
    %v5785 = vrot.slane %v5512, %v5784
    %v5786 = vsel %vm5696, %v5785, %v5781
    %v5787 = vlaneseq
    %v5788 = vshrl.u32 %v5787, 7
    %v5789 = vsub.s32 %v5698, %v5788
    %v5790 = vrot.slane %v5515, %v5789
    %v5791 = vsel %vm5703, %v5790, %v5786
    %v5792 = vlaneseq
    %v5793 = vshrl.u32 %v5792, 7
    %v5794 = vsub.s32 %v5705, %v5793
    %v5795 = vrot.slane %v5518, %v5794
    %v5796 = vsel %vm5710, %v5795, %v5791
    %v5797 = vlaneseq
    %v5798 = vshrl.u32 %v5797, 7
    %v5799 = vsub.s32 %v5712, %v5798
    %v5800 = vrot.slane %v5521, %v5799
    %v5801 = vsel %vm5717, %v5800, %v5796
    %v5802 = vlaneseq
    %v5803 = vshrl.u32 %v5802, 7
    %v5804 = vsub.s32 %v5719, %v5803
    %v5805 = vrot.slane %v5524, %v5804
    %v5806 = vsel %vm5724, %v5805, %v5801
    %v5807 = vlaneseq
    %v5808 = vshrl.u32 %v5807, 7
    %v5809 = vsub.s32 %v5726, %v5808
    %v5810 = vrot.slane %v5527, %v5809
    %v5811 = vsel %vm5731, %v5810, %v5806
    %v5812 = vlaneseq
    %v5813 = vshrl.u32 %v5812, 7
    %v5814 = vsub.s32 %v5356, %v5813
    %v5815 = vrot.slane %v5530, %v5814
    %v5816 = vlaneseq
    %v5817 = vshrl.u32 %v5816, 7
    %v5818 = vsub.s32 %v5628, %v5817
    %v5819 = vrot.slane %v5533, %v5818
    %v5820 = vsel %vm5633, %v5819, %v5815
    %v5821 = vlaneseq
    %v5822 = vshrl.u32 %v5821, 7
    %v5823 = vsub.s32 %v5635, %v5822
    %v5824 = vrot.slane %v5536, %v5823
    %v5825 = vsel %vm5640, %v5824, %v5820
    %v5826 = vlaneseq
    %v5827 = vshrl.u32 %v5826, 7
    %v5828 = vsub.s32 %v5642, %v5827
    %v5829 = vrot.slane %v5539, %v5828
    %v5830 = vsel %vm5647, %v5829, %v5825
    %v5831 = vlaneseq
    %v5832 = vshrl.u32 %v5831, 7
    %v5833 = vsub.s32 %v5649, %v5832
    %v5834 = vrot.slane %v5542, %v5833
    %v5835 = vsel %vm5654, %v5834, %v5830
    %v5836 = vlaneseq
    %v5837 = vshrl.u32 %v5836, 7
    %v5838 = vsub.s32 %v5656, %v5837
    %v5839 = vrot.slane %v5545, %v5838
    %v5840 = vsel %vm5661, %v5839, %v5835
    %v5841 = vlaneseq
    %v5842 = vshrl.u32 %v5841, 7
    %v5843 = vsub.s32 %v5663, %v5842
    %v5844 = vrot.slane %v5548, %v5843
    %v5845 = vsel %vm5668, %v5844, %v5840
    %v5846 = vlaneseq
    %v5847 = vshrl.u32 %v5846, 7
    %v5848 = vsub.s32 %v5670, %v5847
    %v5849 = vrot.slane %v5551, %v5848
    %v5850 = vsel %vm5675, %v5849, %v5845
    %v5851 = vlaneseq
    %v5852 = vshrl.u32 %v5851, 7
    %v5853 = vsub.s32 %v5677, %v5852
    %v5854 = vrot.slane %v5554, %v5853
    %v5855 = vsel %vm5682, %v5854, %v5850
    %v5856 = vlaneseq
    %v5857 = vshrl.u32 %v5856, 7
    %v5858 = vsub.s32 %v5684, %v5857
    %v5859 = vrot.slane %v5557, %v5858
    %v5860 = vsel %vm5689, %v5859, %v5855
    %v5861 = vlaneseq
    %v5862 = vshrl.u32 %v5861, 7
    %v5863 = vsub.s32 %v5691, %v5862
    %v5864 = vrot.slane %v5560, %v5863
    %v5865 = vsel %vm5696, %v5864, %v5860
    %v5866 = vlaneseq
    %v5867 = vshrl.u32 %v5866, 7
    %v5868 = vsub.s32 %v5698, %v5867
    %v5869 = vrot.slane %v5563, %v5868
    %v5870 = vsel %vm5703, %v5869, %v5865
    %v5871 = vlaneseq
    %v5872 = vshrl.u32 %v5871, 7
    %v5873 = vsub.s32 %v5705, %v5872
    %v5874 = vrot.slane %v5566, %v5873
    %v5875 = vsel %vm5710, %v5874, %v5870
    %v5876 = vlaneseq
    %v5877 = vshrl.u32 %v5876, 7
    %v5878 = vsub.s32 %v5712, %v5877
    %v5879 = vrot.slane %v5569, %v5878
    %v5880 = vsel %vm5717, %v5879, %v5875
    %v5881 = vlaneseq
    %v5882 = vshrl.u32 %v5881, 7
    %v5883 = vsub.s32 %v5719, %v5882
    %v5884 = vrot.slane %v5572, %v5883
    %v5885 = vsel %vm5724, %v5884, %v5880
    %v5886 = vlaneseq
    %v5887 = vshrl.u32 %v5886, 7
    %v5888 = vsub.s32 %v5726, %v5887
    %v5889 = vrot.slane %v5575, %v5888
    %v5890 = vsel %vm5731, %v5889, %v5885
    %v5891 = vlaneseq
    %v5892 = vshrl.u32 %v5891, 7
    %v5893 = vsub.s32 %v5356, %v5892
    %v5894 = vrot.slane %v5578, %v5893
    %v5895 = vlaneseq
    %v5896 = vshrl.u32 %v5895, 7
    %v5897 = vsub.s32 %v5628, %v5896
    %v5898 = vrot.slane %v5581, %v5897
    %v5899 = vsel %vm5633, %v5898, %v5894
    %v5900 = vlaneseq
    %v5901 = vshrl.u32 %v5900, 7
    %v5902 = vsub.s32 %v5635, %v5901
    %v5903 = vrot.slane %v5584, %v5902
    %v5904 = vsel %vm5640, %v5903, %v5899
    %v5905 = vlaneseq
    %v5906 = vshrl.u32 %v5905, 7
    %v5907 = vsub.s32 %v5642, %v5906
    %v5908 = vrot.slane %v5587, %v5907
    %v5909 = vsel %vm5647, %v5908, %v5904
    %v5910 = vlaneseq
    %v5911 = vshrl.u32 %v5910, 7
    %v5912 = vsub.s32 %v5649, %v5911
    %v5913 = vrot.slane %v5590, %v5912
    %v5914 = vsel %vm5654, %v5913, %v5909
    %v5915 = vlaneseq
    %v5916 = vshrl.u32 %v5915, 7
    %v5917 = vsub.s32 %v5656, %v5916
    %v5918 = vrot.slane %v5593, %v5917
    %v5919 = vsel %vm5661, %v5918, %v5914
    %v5920 = vlaneseq
    %v5921 = vshrl.u32 %v5920, 7
    %v5922 = vsub.s32 %v5663, %v5921
    %v5923 = vrot.slane %v5596, %v5922
    %v5924 = vsel %vm5668, %v5923, %v5919
    %v5925 = vlaneseq
    %v5926 = vshrl.u32 %v5925, 7
    %v5927 = vsub.s32 %v5670, %v5926
    %v5928 = vrot.slane %v5599, %v5927
    %v5929 = vsel %vm5675, %v5928, %v5924
    %v5930 = vlaneseq
    %v5931 = vshrl.u32 %v5930, 7
    %v5932 = vsub.s32 %v5677, %v5931
    %v5933 = vrot.slane %v5602, %v5932
    %v5934 = vsel %vm5682, %v5933, %v5929
    %v5935 = vlaneseq
    %v5936 = vshrl.u32 %v5935, 7
    %v5937 = vsub.s32 %v5684, %v5936
    %v5938 = vrot.slane %v5605, %v5937
    %v5939 = vsel %vm5689, %v5938, %v5934
    %v5940 = vlaneseq
    %v5941 = vshrl.u32 %v5940, 7
    %v5942 = vsub.s32 %v5691, %v5941
    %v5943 = vrot.slane %v5608, %v5942
    %v5944 = vsel %vm5696, %v5943, %v5939
    %v5945 = vlaneseq
    %v5946 = vshrl.u32 %v5945, 7
    %v5947 = vsub.s32 %v5698, %v5946
    %v5948 = vrot.slane %v5611, %v5947
    %v5949 = vsel %vm5703, %v5948, %v5944
    %v5950 = vlaneseq
    %v5951 = vshrl.u32 %v5950, 7
    %v5952 = vsub.s32 %v5705, %v5951
    %v5953 = vrot.slane %v5614, %v5952
    %v5954 = vsel %vm5710, %v5953, %v5949
    %v5955 = vlaneseq
    %v5956 = vshrl.u32 %v5955, 7
    %v5957 = vsub.s32 %v5712, %v5956
    %v5958 = vrot.slane %v5617, %v5957
    %v5959 = vsel %vm5717, %v5958, %v5954
    %v5960 = vlaneseq
    %v5961 = vshrl.u32 %v5960, 7
    %v5962 = vsub.s32 %v5719, %v5961
    %v5963 = vrot.slane %v5620, %v5962
    %v5964 = vsel %vm5724, %v5963, %v5959
    %v5965 = vlaneseq
    %v5966 = vshrl.u32 %v5965, 7
    %v5967 = vsub.s32 %v5726, %v5966
    %v5968 = vrot.slane %v5623, %v5967
    %v5969 = vsel %vm5731, %v5968, %v5964
    %v5974 = vsel %vm5364, %v5732, -1e+30
    %v5975 = vsel %vm5365, %v5811, -1e+30
    %v5976 = vsel %vm5366, %v5890, -1e+30
    %v5977 = vsel %vm5367, %v5969, -1e+30
    %v5978 = vld [vmem:[#allocation2] sm:$0x1]
    %vm5979 = vcmask 1040384
    %v5980 = vsel %vm5979, %v5974, -inf
    %v5981 = vsel %vm5979, %v5975, -inf
    %v5982 = vsel %vm5979, %v5976, -inf
    %v5983 = vsel %vm5979, %v5977, -inf
    %v5984 = vmax.f32 %v5980, %v5981
    %v5985 = vmax.f32 %v5982, %v5983
    %v5986 = vmax.f32 %v5984, %v5985
    %5987 = vmax.xlane.f32.xlu0 %v5986
    %v5988 = vpop.xlane.xlu0 %5987
    %v5989 = vmax.f32 %v5978, %v5988
    %v5990 = vsub.f32 %v5978, %v5989
    %v5991 = vmul.f32 %v5990, 1.442695
    %v5992 = vpow.pop %v5991
    %5994 = vset.pattern.permute.xlu0 0
    %5995 = vperm.xlu0 %5994, %v5989
    %v5996 = vpop.permute.xlu0 %5995
    %v5998 = vlaneseq
    %v5999 = vshrl.u32 %v5998, 7
    %v6000 = vsub.s32 0, %v5999
    %v6001 = vrot.slane %v5996, %v6000
    %v6002 = vsub.f32 %v5974, %v6001
    %v6003 = vsub.f32 %v5975, %v6001
    %v6004 = vsub.f32 %v5976, %v6001
    %v6005 = vsub.f32 %v5977, %v6001
    %v6006 = vmul.f32 %v6002, 1.442695
    %v6007 = vpow.pop %v6006
    %v6008 = vmul.f32 %v6003, 1.442695
    %v6009 = vpow.pop %v6008
    %v6010 = vmul.f32 %v6004, 1.442695
    %v6011 = vpow.pop %v6010
    %v6012 = vmul.f32 %v6005, 1.442695
    %v6013 = vpow.pop %v6012
    %v6014 = vld [vmem:[#allocation3] sm:$0x1]
    %v6015 = vmul.f32 %v5992, %v6014
    %v6016 = vsel %vm5979, %v6007, 0.0
    %v6017 = vsel %vm5979, %v6009, 0.0
    %v6018 = vadd.f32 %v6016, %v6017
    %v6019 = vsel %vm5979, %v6011, 0.0
    %v6020 = vadd.f32 %v6018, %v6019
    %v6021 = vsel %vm5979, %v6013, 0.0
    %v6022 = vadd.f32 %v6020, %v6021
    %6023 = vadd.xlane.f32.xlu0 %v6022
    %v6024 = vpop.xlane.xlu0 %6023
    %v6025 = vadd.f32 %v6015, %v6024
    %vm6026 = vcmask 0
    %6027 = vst.msk [vmem:[#allocation3] sm:$0x1] %vm6026, %v6025
    %v6028 = vld [vmem:[#allocation4] sm:$0xff]
    %6030 = vset.pattern.permute.xlu0 0
    %6031 = vperm.xlu0 %6030, %v5992
    %v6032 = vpop.permute.xlu0 %6031
    %v6034 = vlaneseq
    %v6035 = vshrl.u32 %v6034, 7
    %v6036 = vsub.s32 0, %v6035
    %v6037 = vrot.slane %v6032, %v6036
    %v6038 = vmul.f32 %v6037, %v6028
    %v6039 = vpack.c.bf16 %v6007, %v6007
    %v6040 = vpack.c.bf16 %v6009, %v6009
    %v6041 = vpack.c.bf16 %v6011, %v6011
    %v6042 = vpack.c.bf16 %v6013, %v6013
    %6043 = vmatprep.subr.bf16.mxu0 %v1872
    %6044 = vmatpush1.bf16.msra.mxu0 %v1871
    %6045 = vmatprep.subr.bf16.mxu0 %v1880
    %6046 = vmatpush1.bf16.msra.mxu0 %v1879
    %6047 = vmatprep.subr.bf16.mxu0 %v1888
    %6048 = vmatpush1.bf16.msra.mxu0 %v1887
    %6049 = vmatprep.subr.bf16.mxu0 %v1896
    %6050 = vmatpush1.bf16.msra.mxu0 %v1895
    %6051 = vmatprep.subr.bf16.mxu0 %v1904
    %6052 = vmatpush1.bf16.msra.mxu0 %v1903
    %6053 = vmatprep.subr.bf16.mxu0 %v1912
    %6054 = vmatpush1.bf16.msra.mxu0 %v1911
    %6055 = vmatprep.subr.bf16.mxu0 %v1920
    %6056 = vmatpush1.bf16.msra.mxu0 %v1919
    %6057 = vmatprep.subr.bf16.mxu0 %v1928
    %6058 = vmatpush1.bf16.msra.mxu0 %v1927
    %6059 = vmatprep.subr.bf16.mxu0 %v1936
    %6060 = vmatpush1.bf16.msra.mxu0 %v1935
    %6061 = vmatprep.subr.bf16.mxu0 %v1944
    %6062 = vmatpush1.bf16.msra.mxu0 %v1943
    %6063 = vmatprep.subr.bf16.mxu0 %v1952
    %6064 = vmatpush1.bf16.msra.mxu0 %v1951
    %6065 = vmatprep.subr.bf16.mxu0 %v1960
    %6066 = vmatpush1.bf16.msra.mxu0 %v1959
    %6067 = vmatprep.subr.bf16.mxu0 %v1968
    %6068 = vmatpush1.bf16.msra.mxu0 %v1967
    %6069 = vmatprep.subr.bf16.mxu0 %v1976
    %6070 = vmatpush1.bf16.msra.mxu0 %v1975
    %6071 = vmatprep.subr.bf16.mxu0 %v1984
    %6072 = vmatpush1.bf16.msra.mxu0 %v1983
    %6073 = vmatprep.subr.bf16.mxu0 %v1992
    %6074 = vmatpush1.bf16.msra.mxu0 %v1991
    %6075 = vmatprep.mubr.bf16.mxu0 %v6040
    %6076 = vmatmul.mubr.bf16.gmra.mrb[0].mxu0 %v6039
    %v6077 = vpop.f32.mrb[0].mxu0
    %v6078 = vadd.f32 0.0, %v6077
    %v6079 = vpop.f32.mrb[0].mxu0
    %v6080 = vadd.f32 0.0, %v6079
    %v6081 = vpop.f32.mrb[0].mxu0
    %v6082 = vpop.f32.mrb[0].mxu0
    %6083 = vdwg.mxu0
    %6084 = vmatprep.subr.bf16.mxu0 %v2000
    %6085 = vmatpush1.bf16.msra.mxu0 %v1999
    %6086 = vmatprep.subr.bf16.mxu0 %v2008
    %6087 = vmatpush1.bf16.msra.mxu0 %v2007
    %6088 = vmatprep.subr.bf16.mxu0 %v2016
    %6089 = vmatpush1.bf16.msra.mxu0 %v2015
    %6090 = vmatprep.subr.bf16.mxu0 %v2024
    %6091 = vmatpush1.bf16.msra.mxu0 %v2023
    %6092 = vmatprep.subr.bf16.mxu0 %v2032
    %6093 = vmatpush1.bf16.msra.mxu0 %v2031
    %6094 = vmatprep.subr.bf16.mxu0 %v2040
    %6095 = vmatpush1.bf16.msra.mxu0 %v2039
    %6096 = vmatprep.subr.bf16.mxu0 %v2048
    %6097 = vmatpush1.bf16.msra.mxu0 %v2047
    %6098 = vmatprep.subr.bf16.mxu0 %v2056
    %6099 = vmatpush1.bf16.msra.mxu0 %v2055
    %6100 = vmatprep.subr.bf16.mxu0 %v2064
    %6101 = vmatpush1.bf16.msra.mxu0 %v2063
    %6102 = vmatprep.subr.bf16.mxu0 %v2072
    %6103 = vmatpush1.bf16.msra.mxu0 %v2071
    %6104 = vmatprep.subr.bf16.mxu0 %v2080
    %6105 = vmatpush1.bf16.msra.mxu0 %v2079
    %6106 = vmatprep.subr.bf16.mxu0 %v2088
    %6107 = vmatpush1.bf16.msra.mxu0 %v2087
    %6108 = vmatprep.subr.bf16.mxu0 %v2096
    %6109 = vmatpush1.bf16.msra.mxu0 %v2095
    %6110 = vmatprep.subr.bf16.mxu0 %v2104
    %6111 = vmatpush1.bf16.msra.mxu0 %v2103
    %6112 = vmatprep.subr.bf16.mxu0 %v2112
    %6113 = vmatpush1.bf16.msra.mxu0 %v2111
    %6114 = vmatprep.subr.bf16.mxu0 %v2120
    %6115 = vmatpush1.bf16.msra.mxu0 %v2119
    %6116 = vmatprep.mubr.bf16.mxu0 %v6042
    %6117 = vmatmul.mubr.bf16.gmra.mrb[0].mxu0 %v6041
    %v6118 = vpop.f32.mrb[0].mxu0
    %v6119 = vadd.f32 %v6078, %v6118
    %v6120 = vpop.f32.mrb[0].mxu0
    %v6121 = vadd.f32 %v6080, %v6120
    %v6122 = vpop.f32.mrb[0].mxu0
    %v6123 = vpop.f32.mrb[0].mxu0
    %6124 = vdwg.mxu0
    %6125 = vmatprep.subr.bf16.mxu0 %v1874
    %6126 = vmatpush1.bf16.msra.mxu0 %v1873
    %6127 = vmatprep.subr.bf16.mxu0 %v1882
    %6128 = vmatpush1.bf16.msra.mxu0 %v1881
    %6129 = vmatprep.subr.bf16.mxu0 %v1890
    %6130 = vmatpush1.bf16.msra.mxu0 %v1889
    %6131 = vmatprep.subr.bf16.mxu0 %v1898
    %6132 = vmatpush1.bf16.msra.mxu0 %v1897
    %6133 = vmatprep.subr.bf16.mxu0 %v1906
    %6134 = vmatpush1.bf16.msra.mxu0 %v1905
    %6135 = vmatprep.subr.bf16.mxu0 %v1914
    %6136 = vmatpush1.bf16.msra.mxu0 %v1913
    %6137 = vmatprep.subr.bf16.mxu0 %v1922
    %6138 = vmatpush1.bf16.msra.mxu0 %v1921
    %6139 = vmatprep.subr.bf16.mxu0 %v1930
    %6140 = vmatpush1.bf16.msra.mxu0 %v1929
    %6141 = vmatprep.subr.bf16.mxu0 %v1938
    %6142 = vmatpush1.bf16.msra.mxu0 %v1937
    %6143 = vmatprep.subr.bf16.mxu0 %v1946
    %6144 = vmatpush1.bf16.msra.mxu0 %v1945
    %6145 = vmatprep.subr.bf16.mxu0 %v1954
    %6146 = vmatpush1.bf16.msra.mxu0 %v1953
    %6147 = vmatprep.subr.bf16.mxu0 %v1962
    %6148 = vmatpush1.bf16.msra.mxu0 %v1961
    %6149 = vmatprep.subr.bf16.mxu0 %v1970
    %6150 = vmatpush1.bf16.msra.mxu0 %v1969
    %6151 = vmatprep.subr.bf16.mxu0 %v1978
    %6152 = vmatpush1.bf16.msra.mxu0 %v1977
    %6153 = vmatprep.subr.bf16.mxu0 %v1986
    %6154 = vmatpush1.bf16.msra.mxu0 %v1985
    %6155 = vmatprep.subr.bf16.mxu0 %v1994
    %6156 = vmatpush1.bf16.msra.mxu0 %v1993
    %6157 = vmatprep.mubr.bf16.mxu0 %v6040
    %6158 = vmatmul.mubr.bf16.gmra.mrb[0].mxu0 %v6039
    %v6159 = vpop.f32.mrb[0].mxu0
    %v6160 = vadd.f32 0.0, %v6159
    %v6161 = vpop.f32.mrb[0].mxu0
    %v6162 = vadd.f32 0.0, %v6161
    %v6163 = vpop.f32.mrb[0].mxu0
    %v6164 = vpop.f32.mrb[0].mxu0
    %6165 = vdwg.mxu0
    %6166 = vmatprep.subr.bf16.mxu0 %v2002
    %6167 = vmatpush1.bf16.msra.mxu0 %v2001
    %6168 = vmatprep.subr.bf16.mxu0 %v2010
    %6169 = vmatpush1.bf16.msra.mxu0 %v2009
    %6170 = vmatprep.subr.bf16.mxu0 %v2018
    %6171 = vmatpush1.bf16.msra.mxu0 %v2017
    %6172 = vmatprep.subr.bf16.mxu0 %v2026
    %6173 = vmatpush1.bf16.msra.mxu0 %v2025
    %6174 = vmatprep.subr.bf16.mxu0 %v2034
    %6175 = vmatpush1.bf16.msra.mxu0 %v2033
    %6176 = vmatprep.subr.bf16.mxu0 %v2042
    %6177 = vmatpush1.bf16.msra.mxu0 %v2041
    %6178 = vmatprep.subr.bf16.mxu0 %v2050
    %6179 = vmatpush1.bf16.msra.mxu0 %v2049
    %6180 = vmatprep.subr.bf16.mxu0 %v2058
    %6181 = vmatpush1.bf16.msra.mxu0 %v2057
    %6182 = vmatprep.subr.bf16.mxu0 %v2066
    %6183 = vmatpush1.bf16.msra.mxu0 %v2065
    %6184 = vmatprep.subr.bf16.mxu0 %v2074
    %6185 = vmatpush1.bf16.msra.mxu0 %v2073
    %6186 = vmatprep.subr.bf16.mxu0 %v2082
    %6187 = vmatpush1.bf16.msra.mxu0 %v2081
    %6188 = vmatprep.subr.bf16.mxu0 %v2090
    %6189 = vmatpush1.bf16.msra.mxu0 %v2089
    %6190 = vmatprep.subr.bf16.mxu0 %v2098
    %6191 = vmatpush1.bf16.msra.mxu0 %v2097
    %6192 = vmatprep.subr.bf16.mxu0 %v2106
    %6193 = vmatpush1.bf16.msra.mxu0 %v2105
    %6194 = vmatprep.subr.bf16.mxu0 %v2114
    %6195 = vmatpush1.bf16.msra.mxu0 %v2113
    %6196 = vmatprep.subr.bf16.mxu0 %v2122
    %6197 = vmatpush1.bf16.msra.mxu0 %v2121
    %6198 = vmatprep.mubr.bf16.mxu0 %v6042
    %6199 = vmatmul.mubr.bf16.gmra.mrb[0].mxu0 %v6041
    %v6200 = vpop.f32.mrb[0].mxu0
    %v6201 = vadd.f32 %v6160, %v6200
    %v6202 = vpop.f32.mrb[0].mxu0
    %v6203 = vadd.f32 %v6162, %v6202
    %v6204 = vpop.f32.mrb[0].mxu0
    %v6205 = vpop.f32.mrb[0].mxu0
    %6206 = vdwg.mxu0
    %6207 = vmatprep.subr.bf16.mxu0 %v1876
    %6208 = vmatpush1.bf16.msra.mxu0 %v1875
    %6209 = vmatprep.subr.bf16.mxu0 %v1884
    %6210 = vmatpush1.bf16.msra.mxu0 %v1883
    %6211 = vmatprep.subr.bf16.mxu0 %v1892
    %6212 = vmatpush1.bf16.msra.mxu0 %v1891
    %6213 = vmatprep.subr.bf16.mxu0 %v1900
    %6214 = vmatpush1.bf16.msra.mxu0 %v1899
    %6215 = vmatprep.subr.bf16.mxu0 %v1908
    %6216 = vmatpush1.bf16.msra.mxu0 %v1907
    %6217 = vmatprep.subr.bf16.mxu0 %v1916
    %6218 = vmatpush1.bf16.msra.mxu0 %v1915
    %6219 = vmatprep.subr.bf16.mxu0 %v1924
    %6220 = vmatpush1.bf16.msra.mxu0 %v1923
    %6221 = vmatprep.subr.bf16.mxu0 %v1932
    %6222 = vmatpush1.bf16.msra.mxu0 %v1931
    %6223 = vmatprep.subr.bf16.mxu0 %v1940
    %6224 = vmatpush1.bf16.msra.mxu0 %v1939
    %6225 = vmatprep.subr.bf16.mxu0 %v1948
    %6226 = vmatpush1.bf16.msra.mxu0 %v1947
    %6227 = vmatprep.subr.bf16.mxu0 %v1956
    %6228 = vmatpush1.bf16.msra.mxu0 %v1955
    %6229 = vmatprep.subr.bf16.mxu0 %v1964
    %6230 = vmatpush1.bf16.msra.mxu0 %v1963
    %6231 = vmatprep.subr.bf16.mxu0 %v1972
    %6232 = vmatpush1.bf16.msra.mxu0 %v1971
    %6233 = vmatprep.subr.bf16.mxu0 %v1980
    %6234 = vmatpush1.bf16.msra.mxu0 %v1979
    %6235 = vmatprep.subr.bf16.mxu0 %v1988
    %6236 = vmatpush1.bf16.msra.mxu0 %v1987
    %6237 = vmatprep.subr.bf16.mxu0 %v1996
    %6238 = vmatpush1.bf16.msra.mxu0 %v1995
    %6239 = vmatprep.mubr.bf16.mxu0 %v6040
    %6240 = vmatmul.mubr.bf16.gmra.mrb[0].mxu0 %v6039
    %v6241 = vpop.f32.mrb[0].mxu0
    %v6242 = vadd.f32 0.0, %v6241
    %v6243 = vpop.f32.mrb[0].mxu0
    %v6244 = vadd.f32 0.0, %v6243
    %v6245 = vpop.f32.mrb[0].mxu0
    %v6246 = vpop.f32.mrb[0].mxu0
    %6247 = vdwg.mxu0
    %6248 = vmatprep.subr.bf16.mxu0 %v2004
    %6249 = vmatpush1.bf16.msra.mxu0 %v2003
    %6250 = vmatprep.subr.bf16.mxu0 %v2012
    %6251 = vmatpush1.bf16.msra.mxu0 %v2011
    %6252 = vmatprep.subr.bf16.mxu0 %v2020
    %6253 = vmatpush1.bf16.msra.mxu0 %v2019
    %6254 = vmatprep.subr.bf16.mxu0 %v2028
    %6255 = vmatpush1.bf16.msra.mxu0 %v2027
    %6256 = vmatprep.subr.bf16.mxu0 %v2036
    %6257 = vmatpush1.bf16.msra.mxu0 %v2035
    %6258 = vmatprep.subr.bf16.mxu0 %v2044
    %6259 = vmatpush1.bf16.msra.mxu0 %v2043
    %6260 = vmatprep.subr.bf16.mxu0 %v2052
    %6261 = vmatpush1.bf16.msra.mxu0 %v2051
    %6262 = vmatprep.subr.bf16.mxu0 %v2060
    %6263 = vmatpush1.bf16.msra.mxu0 %v2059
    %6264 = vmatprep.subr.bf16.mxu0 %v2068
    %6265 = vmatpush1.bf16.msra.mxu0 %v2067
    %6266 = vmatprep.subr.bf16.mxu0 %v2076
    %6267 = vmatpush1.bf16.msra.mxu0 %v2075
    %6268 = vmatprep.subr.bf16.mxu0 %v2084
    %6269 = vmatpush1.bf16.msra.mxu0 %v2083
    %6270 = vmatprep.subr.bf16.mxu0 %v2092
    %6271 = vmatpush1.bf16.msra.mxu0 %v2091
    %6272 = vmatprep.subr.bf16.mxu0 %v2100
    %6273 = vmatpush1.bf16.msra.mxu0 %v2099
    %6274 = vmatprep.subr.bf16.mxu0 %v2108
    %6275 = vmatpush1.bf16.msra.mxu0 %v2107
    %6276 = vmatprep.subr.bf16.mxu0 %v2116
    %6277 = vmatpush1.bf16.msra.mxu0 %v2115
    %6278 = vmatprep.subr.bf16.mxu0 %v2124
    %6279 = vmatpush1.bf16.msra.mxu0 %v2123
    %6280 = vmatprep.mubr.bf16.mxu0 %v6042
    %6281 = vmatmul.mubr.bf16.gmra.mrb[0].mxu0 %v6041
    %v6282 = vpop.f32.mrb[0].mxu0
    %v6283 = vadd.f32 %v6242, %v6282
    %v6284 = vpop.f32.mrb[0].mxu0
    %v6285 = vadd.f32 %v6244, %v6284
    %v6286 = vpop.f32.mrb[0].mxu0
    %v6287 = vpop.f32.mrb[0].mxu0
    %6288 = vdwg.mxu0
    %6289 = vmatprep.subr.bf16.mxu0 %v1878
    %6290 = vmatpush1.bf16.msra.mxu0 %v1877
    %6291 = vmatprep.subr.bf16.mxu0 %v1886
    %6292 = vmatpush1.bf16.msra.mxu0 %v1885
    %6293 = vmatprep.subr.bf16.mxu0 %v1894
    %6294 = vmatpush1.bf16.msra.mxu0 %v1893
    %6295 = vmatprep.subr.bf16.mxu0 %v1902
    %6296 = vmatpush1.bf16.msra.mxu0 %v1901
    %6297 = vmatprep.subr.bf16.mxu0 %v1910
    %6298 = vmatpush1.bf16.msra.mxu0 %v1909
    %6299 = vmatprep.subr.bf16.mxu0 %v1918
    %6300 = vmatpush1.bf16.msra.mxu0 %v1917
    %6301 = vmatprep.subr.bf16.mxu0 %v1926
    %6302 = vmatpush1.bf16.msra.mxu0 %v1925
    %6303 = vmatprep.subr.bf16.mxu0 %v1934
    %6304 = vmatpush1.bf16.msra.mxu0 %v1933
    %6305 = vmatprep.subr.bf16.mxu0 %v1942
    %6306 = vmatpush1.bf16.msra.mxu0 %v1941
    %6307 = vmatprep.subr.bf16.mxu0 %v1950
    %6308 = vmatpush1.bf16.msra.mxu0 %v1949
    %6309 = vmatprep.subr.bf16.mxu0 %v1958
    %6310 = vmatpush1.bf16.msra.mxu0 %v1957
    %6311 = vmatprep.subr.bf16.mxu0 %v1966
    %6312 = vmatpush1.bf16.msra.mxu0 %v1965
    %6313 = vmatprep.subr.bf16.mxu0 %v1974
    %6314 = vmatpush1.bf16.msra.mxu0 %v1973
    %6315 = vmatprep.subr.bf16.mxu0 %v1982
    %6316 = vmatpush1.bf16.msra.mxu0 %v1981
    %6317 = vmatprep.subr.bf16.mxu0 %v1990
    %6318 = vmatpush1.bf16.msra.mxu0 %v1989
    %6319 = vmatprep.subr.bf16.mxu0 %v1998
    %6320 = vmatpush1.bf16.msra.mxu0 %v1997
    %6321 = vmatprep.mubr.bf16.mxu0 %v6040
    %6322 = vmatmul.mubr.bf16.gmra.mrb[0].mxu0 %v6039
    %v6323 = vpop.f32.mrb[0].mxu0
    %v6324 = vadd.f32 0.0, %v6323
    %v6325 = vpop.f32.mrb[0].mxu0
    %v6326 = vadd.f32 0.0, %v6325
    %v6327 = vpop.f32.mrb[0].mxu0
    %v6328 = vpop.f32.mrb[0].mxu0
    %6329 = vdwg.mxu0
    %6330 = vmatprep.subr.bf16.mxu0 %v2006
    %6331 = vmatpush1.bf16.msra.mxu0 %v2005
    %6332 = vmatprep.subr.bf16.mxu0 %v2014
    %6333 = vmatpush1.bf16.msra.mxu0 %v2013
    %6334 = vmatprep.subr.bf16.mxu0 %v2022
    %6335 = vmatpush1.bf16.msra.mxu0 %v2021
    %6336 = vmatprep.subr.bf16.mxu0 %v2030
    %6337 = vmatpush1.bf16.msra.mxu0 %v2029
    %6338 = vmatprep.subr.bf16.mxu0 %v2038
    %6339 = vmatpush1.bf16.msra.mxu0 %v2037
    %6340 = vmatprep.subr.bf16.mxu0 %v2046
    %6341 = vmatpush1.bf16.msra.mxu0 %v2045
    %6342 = vmatprep.subr.bf16.mxu0 %v2054
    %6343 = vmatpush1.bf16.msra.mxu0 %v2053
    %6344 = vmatprep.subr.bf16.mxu0 %v2062
    %6345 = vmatpush1.bf16.msra.mxu0 %v2061
    %6346 = vmatprep.subr.bf16.mxu0 %v2070
    %6347 = vmatpush1.bf16.msra.mxu0 %v2069
    %6348 = vmatprep.subr.bf16.mxu0 %v2078
    %6349 = vmatpush1.bf16.msra.mxu0 %v2077
    %6350 = vmatprep.subr.bf16.mxu0 %v2086
    %6351 = vmatpush1.bf16.msra.mxu0 %v2085
    %6352 = vmatprep.subr.bf16.mxu0 %v2094
    %6353 = vmatpush1.bf16.msra.mxu0 %v2093
    %6354 = vmatprep.subr.bf16.mxu0 %v2102
    %6355 = vmatpush1.bf16.msra.mxu0 %v2101
    %6356 = vmatprep.subr.bf16.mxu0 %v2110
    %6357 = vmatpush1.bf16.msra.mxu0 %v2109
    %6358 = vmatprep.subr.bf16.mxu0 %v2118
    %6359 = vmatpush1.bf16.msra.mxu0 %v2117
    %6360 = vmatprep.subr.bf16.mxu0 %v2126
    %6361 = vmatpush1.bf16.msra.mxu0 %v2125
    %6362 = vmatprep.mubr.bf16.mxu0 %v6042
    %6363 = vmatmul.mubr.bf16.gmra.mrb[0].mxu0 %v6041
    %v6364 = vpop.f32.mrb[0].mxu0
    %v6365 = vadd.f32 %v6324, %v6364
    %v6366 = vpop.f32.mrb[0].mxu0
    %v6367 = vadd.f32 %v6326, %v6366
    %v6368 = vpop.f32.mrb[0].mxu0
    %v6369 = vpop.f32.mrb[0].mxu0
    %6370 = vdwg.mxu0
    %v6379 = vcombine.low %v6119, %v6121
    %v6380 = vcombine.low %v6201, %v6203
    %v6381 = vcombine.low %v6283, %v6285
    %v6382 = vcombine.low %v6365, %v6367
    %v6384 = vunpack.c.l.s4 1966171168
    %v6385 = vunpack.c.0.s8 %v6384
    %v6386 = vlaneseq
    %v6387 = vshrl.u32 %v6386, 7
    %v6388 = vsub.s32 %v6385, %v6387
    %v6389 = vrot.slane %v6379, %v6388
    %v6391 = vunpack.c.l.s4 1966171168
    %v6392 = vunpack.c.0.s8 %v6391
    %v6393 = vlaneseq
    %v6394 = vshrl.u32 %v6393, 7
    %v6395 = vsub.s32 %v6392, %v6394
    %v6396 = vrot.slane %v6380, %v6395
    %v6398 = vunpack.c.l.s4 1966171168
    %v6399 = vunpack.c.0.s8 %v6398
    %v6400 = vlaneseq
    %v6401 = vshrl.u32 %v6400, 7
    %v6402 = vsub.s32 %v6399, %v6401
    %v6403 = vrot.slane %v6381, %v6402
    %v6405 = vunpack.c.l.s4 1966171168
    %v6406 = vunpack.c.0.s8 %v6405
    %v6407 = vlaneseq
    %v6408 = vshrl.u32 %v6407, 7
    %v6409 = vsub.s32 %v6406, %v6408
    %v6410 = vrot.slane %v6382, %v6409
    %v6411 = vcombine.low %v6389, %v6396
    %v6412 = vcombine.low %v6403, %v6410
    %v6414 = vunpack.c.l.s4 1966171168
    %v6415 = vunpack.c.0.s8 %v6414
    %v6416 = vlaneseq
    %v6417 = vshrl.u32 %v6416, 7
    %v6418 = vsub.s32 %v6415, %v6417
    %v6419 = vrot.slane %v6411, %v6418
    %v6421 = vunpack.c.l.s4 1966171168
    %v6422 = vunpack.c.0.s8 %v6421
    %v6423 = vlaneseq
    %v6424 = vshrl.u32 %v6423, 7
    %v6425 = vsub.s32 %v6422, %v6424
    %v6426 = vrot.slane %v6412, %v6425
    %v6427 = vcombine.low %v6419, %v6426
    %v6429 = vadd.f32 %v6038, %v6427
    %6430 = vst [vmem:[#allocation4] sm:$0xff] %v6429
    %6431 = vst.msk [vmem:[#allocation2] sm:$0x1] %vm6026, %v5989
    %v6436 = vcombine.low %v5974, %v5975
    %v6437 = vcombine.low %v5976, %v5977
    %v6439 = vunpack.c.l.s4 1966171168
    %v6440 = vunpack.c.0.s8 %v6439
    %v6441 = vlaneseq
    %v6442 = vshrl.u32 %v6441, 7
    %v6443 = vsub.s32 %v6440, %v6442
    %v6444 = vrot.slane %v6436, %v6443
    %v6446 = vunpack.c.l.s4 1966171168
    %v6447 = vunpack.c.0.s8 %v6446
    %v6448 = vlaneseq
    %v6449 = vshrl.u32 %v6448, 7
    %v6450 = vsub.s32 %v6447, %v6449
    %v6451 = vrot.slane %v6437, %v6450
    %v6452 = vcombine.low %v6444, %v6451
    %v6454 = vunpack.c.l.s4 1966171168
    %v6455 = vunpack.c.0.s8 %v6454
    %v6456 = vlaneseq
    %v6457 = vshrl.u32 %v6456, 7
    %v6458 = vsub.s32 %v6455, %v6457
    %v6459 = vrot.slane %v6452, %v6458
    %v6461 = vlaneseq
    %vm6462 = vcmp.ge.s32.totalorder %v6461, 0
    %vm6463 = vcmp.lt.s32.totalorder %v6461, 512
    %vm6464 = vmand %vm6462, %vm6463
    %6465 = vst.msk [vmem:[#allocation12] sm:$0xf] %vm6464, %v6459
    // Predicated region
    $region34: #{tpu_custom_call.1} parent=1 // pred_check
      %p6466 = pneg %p56
    $region35: #{tpu_custom_call.1} parent=1 // pred_check_branch
      %6468 = sbr.rel (%p6466) target = $region37
    $region36: #{tpu_custom_call.1} parent=1 // pred_region
      %v6469 = vld [vmem:[#allocation4] sm:$0xff]
      %v6470 = vld [vmem:[#allocation3] sm:$0x1]
      %6472 = vset.pattern.permute.xlu0 0
      %6473 = vperm.xlu0 %6472, %v6470
      %v6474 = vpop.permute.xlu0 %6473
      %v6476 = vlaneseq
      %v6477 = vshrl.u32 %v6476, 7
      %v6478 = vsub.s32 0, %v6477
      %v6479 = vrot.slane %v6474, %v6478
      %v6480 = vrcp.pop %v6479
      %v6481 = vmul.f32 %v6469, %v6480
      %6482 = vst [vmem:[#allocation11] sm:$0xff] %v6481
      %v6483 = vld [vmem:[#allocation2] sm:$0x1]
      %v6484 = vld [vmem:[#allocation3] sm:$0x1]
      %v6485 = vlog2.pop %v6484
      %v6486 = vmul.f32 %v6485, 0.6931472
      %v6487 = vadd.f32 %v6483, %v6486
      %6488 = vst.msk [vmem:[#allocation14] sm:$0x1] %vm6026, %v6487
    $region37: #{tpu_custom_call.1} parent=1 // pred_fallthru
      _
    // Predicated region
    $region38: #{tpu_custom_call.1} parent=1 // pred_check
      _
    $region39: #{tpu_custom_call.1} parent=1 // pred_check_branch
      %6490 = sbr.rel (0) target = $region41
    $region40: #{tpu_custom_call.1} parent=1 // pred_region
      %s6492 = ssub.s32 128, 128
      %6493 = vsyncadd [#allocation8], %s6492
      %s6495 = sshll.u32 [#allocation11], 4
      %s6496 = int_to_ptr.vmem [resolvable:$true] %s6495
      %6498 = dma.vmem_to_hbm [thread:$0]  %s6496, 128, %s5, [#allocation8]
    $region41: #{tpu_custom_call.1} parent=1 // pred_fallthru
      _
    // Predicated region
    $region42: #{tpu_custom_call.1} parent=1 // pred_check
      _
    $region43: #{tpu_custom_call.1} parent=1 // pred_check_branch
      %6500 = sbr.rel (0) target = $region45
    $region44: #{tpu_custom_call.1} parent=1 // pred_region
      %s6502 = ssub.s32 64, 64
      %6503 = vsyncadd [#allocation13], %s6502
      %s6505 = sshll.u32 [#allocation12], 4
      %s6506 = int_to_ptr.vmem [resolvable:$true] %s6505
      %6508 = dma.vmem_to_hbm [thread:$0]  %s6506, 64, %s6, [#allocation13]
    $region45: #{tpu_custom_call.1} parent=1 // pred_fallthru
      _
    // Predicated region
    $region46: #{tpu_custom_call.1} parent=1 // pred_check
      _
    $region47: #{tpu_custom_call.1} parent=1 // pred_check_branch
      %6510 = sbr.rel (0) target = $region49
    $region48: #{tpu_custom_call.1} parent=1 // pred_region
      %s6512 = ssub.s32 16, 16
      %6513 = vsyncadd [#allocation13], %s6512
      %s6515 = sshll.u32 [#allocation14], 4
      %s6516 = int_to_ptr.vmem [resolvable:$true] %s6515
      %6518 = dma.vmem_to_hbm [thread:$0]  %s6516, 16, %s7, [#allocation13]
    $region49: #{tpu_custom_call.1} parent=1 // pred_fallthru
      _
    // Predicated region
    $region50: #{tpu_custom_call.1} parent=1 // pred_check
      _
    $region51: #{tpu_custom_call.1} parent=1 // pred_check_branch
      %6520 = sbr.rel (0) target = $region53
    $region52: #{tpu_custom_call.1} parent=1 // pred_region
      %6521 = dma.done [#allocation8], 128
    $region53: #{tpu_custom_call.1} parent=1 // pred_fallthru
      _
    // Predicated region
    $region54: #{tpu_custom_call.1} parent=1 // pred_check
      _
    $region55: #{tpu_custom_call.1} parent=1 // pred_check_branch
      %6523 = sbr.rel (0) target = $region57
    $region56: #{tpu_custom_call.1} parent=1 // pred_region
      %6524 = dma.done [#allocation13], 64
    $region57: #{tpu_custom_call.1} parent=1 // pred_fallthru
      _
    // Predicated region
    $region58: #{tpu_custom_call.1} parent=1 // pred_check
      _
    $region59: #{tpu_custom_call.1} parent=1 // pred_check_branch
      %6526 = sbr.rel (0) target = $region61
    $region60: #{tpu_custom_call.1} parent=1 // pred_region
      %6527 = dma.done [#allocation13], 16
    $region61: #{tpu_custom_call.1} parent=1 // pred_fallthru
      _
    %6528 = vsyncpa [#allocation7], 1
    %6529 = vsyncpa [#allocation10], 1
    %6530 = vsyncpa [#allocation8], 1
    %6531 = vsyncpa [#allocation13], 1

</llo_original>
